<compile_context>
chip_gen: v5e
topology: v5e:2x2
jax: 0.10.0
libtpu: 0.0.40
codegen_flags: <defaults>
</compile_context>

<pallas_src>
import jax
import jax.numpy as jnp
from jax.experimental import pallas as pl
from jax.experimental.pallas import tpu as pltpu


def mlp_kernel(x_ref, w1_ref, b1_ref, w2_ref, b2_ref, w3_ref, b3_ref,
               out_ref, h1_ref, h2_ref):
    # Layer 1: bf16 MXU matmul, f32 accumulation, bias + ReLU, bf16 scratch.
    h1 = jnp.dot(x_ref[...], w1_ref[...], preferred_element_type=jnp.float32)
    h1 = jnp.maximum(h1 + b1_ref[...], 0.0)
    h1_ref[...] = h1.astype(h1_ref.dtype)

    # Layer 2.
    h2 = jnp.dot(h1_ref[...], w2_ref[...], preferred_element_type=jnp.float32)
    h2 = jnp.maximum(h2 + b2_ref[...], 0.0)
    h2_ref[...] = h2.astype(h2_ref.dtype)

    # Layer 3 (logits, lane-dense padded output, f32).
    logits = jnp.dot(h2_ref[...], w3_ref[...], preferred_element_type=jnp.float32)
    out_ref[...] = (logits + b3_ref[...]).astype(out_ref.dtype)


def _round_up(x, m):
    return (x + m - 1) // m * m


def mlp_forward(x_img, params, *, batch_tile=256, compute_dtype=jnp.bfloat16):
    """x_img: (B, 1, 28, 28) NCHW float32 -> logits (B, num_classes) float32."""
    w1, b1, w2, b2, w3, b3 = params
    B = x_img.shape[0]
    x = x_img.reshape(B, -1).astype(jnp.float32)    # torch.flatten(x, start_dim=1)
    D_in = x.shape[1]                               # 784
    H = w1.shape[1]                                 # hidden
    C = w3.shape[1]                                 # num_classes

    # Pad: K (contraction) and logits to multiples of 128 (aligned loads,
    # lane-dense stores); batch to a multiple of the batch tile.
    D_pad = _round_up(D_in, 128)
    C_pad = _round_up(C, 128)
    B_pad = _round_up(B, batch_tile)

    x_p = jnp.zeros((B_pad, D_pad), compute_dtype)
    x_p = x_p.at[:B, :D_in].set(x.astype(compute_dtype))
    w1_p = jnp.zeros((D_pad, H), compute_dtype).at[:D_in, :].set(w1.astype(compute_dtype))
    w2_p = w2.astype(compute_dtype)
    w3_p = jnp.zeros((H, C_pad), compute_dtype).at[:, :C].set(w3.astype(compute_dtype))
    b1_p = b1.astype(jnp.float32).reshape(1, H)
    b2_p = b2.astype(jnp.float32).reshape(1, H)
    b3_p = jnp.zeros((1, C_pad), jnp.float32).at[:, :C].set(
        b3.astype(jnp.float32).reshape(1, C))

    grid = (B_pad // batch_tile,)
    out_padded = pl.pallas_call(
        mlp_kernel,
        out_shape=jax.ShapeDtypeStruct((B_pad, C_pad), jnp.float32),
        grid_spec=pltpu.PrefetchScalarGridSpec(
            num_scalar_prefetch=0,
            grid=grid,
            in_specs=[
                pl.BlockSpec((batch_tile, D_pad), lambda i: (i, 0)),  # x tile
                pl.BlockSpec((D_pad, H), lambda i: (0, 0)),           # w1 (resident)
                pl.BlockSpec((1, H), lambda i: (0, 0)),               # b1
                pl.BlockSpec((H, H), lambda i: (0, 0)),               # w2
                pl.BlockSpec((1, H), lambda i: (0, 0)),               # b2
                pl.BlockSpec((H, C_pad), lambda i: (0, 0)),           # w3
                pl.BlockSpec((1, C_pad), lambda i: (0, 0)),           # b3
            ],
            out_specs=pl.BlockSpec((batch_tile, C_pad), lambda i: (i, 0)),
            scratch_shapes=[
                pltpu.VMEM((batch_tile, H), compute_dtype),  # h1 (bf16 staging)
                pltpu.VMEM((batch_tile, H), compute_dtype),  # h2 (bf16 staging)
            ],
        ),
        compiler_params=pltpu.CompilerParams(
            dimension_semantics=("parallel",)),
    )(x_p, w1_p, b1_p, w2_p, b2_p, w3_p, b3_p)

    return out_padded[:B, :C]


def init_params(key, d_in=784, hidden=256, num_classes=10):
    """Deterministic synthetic parameters (nn.Linear weights, pre-transposed to (in, out))."""
    ks = jax.random.split(key, 6)
    scale1 = 1.0 / jnp.sqrt(d_in)
    scale2 = 1.0 / jnp.sqrt(hidden)
    w1 = jax.random.uniform(ks[0], (d_in, hidden), jnp.float32, -scale1, scale1)
    b1 = jax.random.uniform(ks[1], (1, hidden), jnp.float32, -scale1, scale1)
    w2 = jax.random.uniform(ks[2], (hidden, hidden), jnp.float32, -scale2, scale2)
    b2 = jax.random.uniform(ks[3], (1, hidden), jnp.float32, -scale2, scale2)
    w3 = jax.random.uniform(ks[4], (hidden, num_classes), jnp.float32, -scale2, scale2)
    b3 = jax.random.uniform(ks[5], (1, num_classes), jnp.float32, -scale2, scale2)
    return (w1, b1, w2, b2, w3, b3)


def mlp_reference(x_img, params):
    """Pure-JAX f32 reference matching the PyTorch forward."""
    w1, b1, w2, b2, w3, b3 = params
    x = x_img.reshape(x_img.shape[0], -1)
    h1 = jnp.maximum(x @ w1 + b1, 0.0)
    h2 = jnp.maximum(h1 @ w2 + b2, 0.0)
    return h2 @ w3 + b3


if __name__ == "__main__":
    key = jax.random.PRNGKey(0)
    k_params, k_x = jax.random.split(key)

    # Small hidden width instead of the module's default 1024 to keep the
    # example light; input dim is fixed at 784 (1x28x28), num_classes=10.
    HIDDEN = 256
    NUM_CLASSES = 10
    BATCH = 300   # not a multiple of the tile: exercises batch padding and a 2-step grid

    params = init_params(k_params, d_in=784, hidden=HIDDEN, num_classes=NUM_CLASSES)
    x = jax.random.normal(k_x, (BATCH, 1, 28, 28), jnp.float32)   # NCHW

    logits = mlp_forward(x, params, batch_tile=256)
    logits = jax.block_until_ready(logits)
    assert logits.shape == (BATCH, NUM_CLASSES)

    # bf16 compute / f32 accumulation vs. a pure-f32 reference: loose tolerance.
    ref = mlp_reference(x, params)
    assert jnp.allclose(logits, ref, atol=2e-2, rtol=2e-2), "mismatch vs reference"

    print("KERNEL_OK")
</pallas_src>

<mosaic_0001>
module attributes {stable_mosaic.version = 11 : i64} {
  func.func @mlp_kernel(%arg0: i32, %arg1: memref<256x896xbf16, #tpu.memory_space<vmem>>, %arg2: memref<896x256xbf16, #tpu.memory_space<vmem>>, %arg3: memref<1x256xf32, #tpu.memory_space<vmem>>, %arg4: memref<256x256xbf16, #tpu.memory_space<vmem>>, %arg5: memref<1x256xf32, #tpu.memory_space<vmem>>, %arg6: memref<256x128xbf16, #tpu.memory_space<vmem>>, %arg7: memref<1x128xf32, #tpu.memory_space<vmem>>, %arg8: memref<256x128xf32, #tpu.memory_space<vmem>>, %arg9: memref<256x256xbf16, #tpu.memory_space<vmem>>, %arg10: memref<256x256xbf16, #tpu.memory_space<vmem>>) attributes {dimension_semantics = [#tpu.dimension_semantics<parallel>], iteration_bounds = array<i64: 2>, scalar_prefetch = 0 : i64, scratch_operands = 2 : i64, tpu.core_type = #tpu.core_type<tc>, window_params = [{transform_indices = @transform_0, window_bounds = array<i64: 256, 896>}, {pipeline_mode = #tpu.pipeline_mode<synchronous>, transform_indices = @transform_1, window_bounds = array<i64: 896, 256>}, {pipeline_mode = #tpu.pipeline_mode<synchronous>, transform_indices = @transform_2, window_bounds = array<i64: 1, 256>}, {pipeline_mode = #tpu.pipeline_mode<synchronous>, transform_indices = @transform_3, window_bounds = array<i64: 256, 256>}, {pipeline_mode = #tpu.pipeline_mode<synchronous>, transform_indices = @transform_4, window_bounds = array<i64: 1, 256>}, {pipeline_mode = #tpu.pipeline_mode<synchronous>, transform_indices = @transform_5, window_bounds = array<i64: 256, 128>}, {pipeline_mode = #tpu.pipeline_mode<synchronous>, transform_indices = @transform_6, window_bounds = array<i64: 1, 128>}, {transform_indices = @transform_7, window_bounds = array<i64: 256, 128>}]} {
    %c0 = arith.constant 0 : index
    %c0_0 = arith.constant 0 : index
    %0 = vector.load %arg1[%c0, %c0_0] : memref<256x896xbf16, #tpu.memory_space<vmem>>, vector<256x896xbf16>
    %c0_1 = arith.constant 0 : index
    %c0_2 = arith.constant 0 : index
    %1 = vector.load %arg2[%c0_1, %c0_2] : memref<896x256xbf16, #tpu.memory_space<vmem>>, vector<896x256xbf16>
    %cst = arith.constant dense<0.000000e+00> : vector<256x256xf32>
    %2 = tpu.matmul %0, %1, %cst {dimension_numbers = #tpu.dot_dimension_numbers<[1], [0], [0], [1], [0, 0, 1, 1], [], []>} : vector<256x896xbf16>, vector<896x256xbf16>, vector<256x256xf32> -> vector<256x256xf32>
    %c0_3 = arith.constant 0 : index
    %c0_4 = arith.constant 0 : index
    %3 = vector.load %arg3[%c0_3, %c0_4] : memref<1x256xf32, #tpu.memory_space<vmem>>, vector<1x256xf32>
    %4 = vector.broadcast %3 : vector<1x256xf32> to vector<256x256xf32>
    %5 = arith.addf %2, %4 : vector<256x256xf32>
    %cst_5 = arith.constant 0.000000e+00 : f32
    %6 = vector.broadcast %cst_5 : f32 to vector<256x256xf32>
    %7 = arith.maximumf %5, %6 : vector<256x256xf32>
    %8 = arith.truncf %7 : vector<256x256xf32> to vector<256x256xbf16>
    %c0_6 = arith.constant 0 : index
    %c0_7 = arith.constant 0 : index
    %9 = vector.load %arg9[%c0_6, %c0_7] : memref<256x256xbf16, #tpu.memory_space<vmem>>, vector<256x256xbf16>
    tpu.vector_store %arg9[%c0_6, %c0_7], %8 {strides = array<i32>} : memref<256x256xbf16, #tpu.memory_space<vmem>>, vector<256x256xbf16>,
    %c0_8 = arith.constant 0 : index
    %c0_9 = arith.constant 0 : index
    %10 = vector.load %arg9[%c0_8, %c0_9] : memref<256x256xbf16, #tpu.memory_space<vmem>>, vector<256x256xbf16>
    %c0_10 = arith.constant 0 : index
    %c0_11 = arith.constant 0 : index
    %11 = vector.load %arg4[%c0_10, %c0_11] : memref<256x256xbf16, #tpu.memory_space<vmem>>, vector<256x256xbf16>
    %cst_12 = arith.constant dense<0.000000e+00> : vector<256x256xf32>
    %12 = tpu.matmul %10, %11, %cst_12 {dimension_numbers = #tpu.dot_dimension_numbers<[1], [0], [0], [1], [0, 0, 1, 1], [], []>} : vector<256x256xbf16>, vector<256x256xbf16>, vector<256x256xf32> -> vector<256x256xf32>
    %c0_13 = arith.constant 0 : index
    %c0_14 = arith.constant 0 : index
    %13 = vector.load %arg5[%c0_13, %c0_14] : memref<1x256xf32, #tpu.memory_space<vmem>>, vector<1x256xf32>
    %14 = vector.broadcast %13 : vector<1x256xf32> to vector<256x256xf32>
    %15 = arith.addf %12, %14 : vector<256x256xf32>
    %cst_15 = arith.constant 0.000000e+00 : f32
    %16 = vector.broadcast %cst_15 : f32 to vector<256x256xf32>
    %17 = arith.maximumf %15, %16 : vector<256x256xf32>
    %18 = arith.truncf %17 : vector<256x256xf32> to vector<256x256xbf16>
    %c0_16 = arith.constant 0 : index
    %c0_17 = arith.constant 0 : index
    %19 = vector.load %arg10[%c0_16, %c0_17] : memref<256x256xbf16, #tpu.memory_space<vmem>>, vector<256x256xbf16>
    tpu.vector_store %arg10[%c0_16, %c0_17], %18 {strides = array<i32>} : memref<256x256xbf16, #tpu.memory_space<vmem>>, vector<256x256xbf16>,
    %c0_18 = arith.constant 0 : index
    %c0_19 = arith.constant 0 : index
    %20 = vector.load %arg10[%c0_18, %c0_19] : memref<256x256xbf16, #tpu.memory_space<vmem>>, vector<256x256xbf16>
    %c0_20 = arith.constant 0 : index
    %c0_21 = arith.constant 0 : index
    %21 = vector.load %arg6[%c0_20, %c0_21] : memref<256x128xbf16, #tpu.memory_space<vmem>>, vector<256x128xbf16>
    %cst_22 = arith.constant dense<0.000000e+00> : vector<256x128xf32>
    %22 = tpu.matmul %20, %21, %cst_22 {dimension_numbers = #tpu.dot_dimension_numbers<[1], [0], [0], [1], [0, 0, 1, 1], [], []>} : vector<256x256xbf16>, vector<256x128xbf16>, vector<256x128xf32> -> vector<256x128xf32>
    %c0_23 = arith.constant 0 : index
    %c0_24 = arith.constant 0 : index
    %23 = vector.load %arg7[%c0_23, %c0_24] : memref<1x128xf32, #tpu.memory_space<vmem>>, vector<1x128xf32>
    %24 = vector.broadcast %23 : vector<1x128xf32> to vector<256x128xf32>
    %25 = arith.addf %22, %24 : vector<256x128xf32>
    %c0_25 = arith.constant 0 : index
    %c0_26 = arith.constant 0 : index
    %26 = vector.load %arg8[%c0_25, %c0_26] : memref<256x128xf32, #tpu.memory_space<vmem>>, vector<256x128xf32>
    tpu.vector_store %arg8[%c0_25, %c0_26], %25 {strides = array<i32>} : memref<256x128xf32, #tpu.memory_space<vmem>>, vector<256x128xf32>,
    return
  }
  func.func @transform_0(%arg0: i32) -> (i32, i32) {
    %c0_i32 = arith.constant 0 : i32
    %c0_i32_0 = arith.constant 0 : i32
    return %arg0, %c0_i32 : i32, i32
  }
  func.func @transform_1(%arg0: i32) -> (i32, i32) {
    %c0_i32 = arith.constant 0 : i32
    %c0_i32_0 = arith.constant 0 : i32
    %c0_i32_1 = arith.constant 0 : i32
    return %c0_i32, %c0_i32_0 : i32, i32
  }
  func.func @transform_2(%arg0: i32) -> (i32, i32) {
    %c0_i32 = arith.constant 0 : i32
    %c0_i32_0 = arith.constant 0 : i32
    %c0_i32_1 = arith.constant 0 : i32
    return %c0_i32, %c0_i32_0 : i32, i32
  }
  func.func @transform_3(%arg0: i32) -> (i32, i32) {
    %c0_i32 = arith.constant 0 : i32
    %c0_i32_0 = arith.constant 0 : i32
    %c0_i32_1 = arith.constant 0 : i32
    return %c0_i32, %c0_i32_0 : i32, i32
  }
  func.func @transform_4(%arg0: i32) -> (i32, i32) {
    %c0_i32 = arith.constant 0 : i32
    %c0_i32_0 = arith.constant 0 : i32
    %c0_i32_1 = arith.constant 0 : i32
    return %c0_i32, %c0_i32_0 : i32, i32
  }
  func.func @transform_5(%arg0: i32) -> (i32, i32) {
    %c0_i32 = arith.constant 0 : i32
    %c0_i32_0 = arith.constant 0 : i32
    %c0_i32_1 = arith.constant 0 : i32
    return %c0_i32, %c0_i32_0 : i32, i32
  }
  func.func @transform_6(%arg0: i32) -> (i32, i32) {
    %c0_i32 = arith.constant 0 : i32
    %c0_i32_0 = arith.constant 0 : i32
    %c0_i32_1 = arith.constant 0 : i32
    return %c0_i32, %c0_i32_0 : i32, i32
  }
  func.func @transform_7(%arg0: i32) -> (i32, i32) {
    %c0_i32 = arith.constant 0 : i32
    %c0_i32_0 = arith.constant 0 : i32
    return %arg0, %c0_i32 : i32, i32
  }
}

</mosaic_0001>

<llo_original>
// kernel: tpu_custom_call.1
$region0: #{tpu_custom_call.1}
  #allocation0 [shape = 'u32[]', space=smem, size = 0x4, offset = 0x4, fixed_abs, tag = 'smem constant byte address 0x4 - core index']
  #allocation1 [shape = 'u32[72,128]{1,0:T(1,128)}', space=vmem, size = 0x9000, scoped, tag = 'internal scratch']
  #allocation2 [shape = 'bf16[256,256]{1,0:T(8,128)(2,1)}', space=vmem, size = 0x20000, scoped, tag = 'scratch operand']
  #allocation3 [shape = 'bf16[256,256]{1,0:T(8,128)(2,1)}', space=vmem, size = 0x20000, scoped, tag = 'scratch operand']
  %s0 = inlined_call_operand.hbm [shape: bf16[512,896], index: 0, kind: input, shape index: {}]
  %s1 = inlined_call_operand.hbm [shape: bf16[896,256], index: 1, kind: input, shape index: {}]
  %s2 = inlined_call_operand.hbm [shape: f32[1,256], index: 2, kind: input, shape index: {}]
  %s3 = inlined_call_operand.hbm [shape: bf16[256,256], index: 3, kind: input, shape index: {}]
  %s4 = inlined_call_operand.vmem [shape: f32[1,256], index: 4, kind: input, shape index: {}]
  %s5 = inlined_call_operand.hbm [shape: bf16[256,128], index: 5, kind: input, shape index: {}]
  %s6 = inlined_call_operand.vmem [shape: f32[1,128], index: 6, kind: input, shape index: {}]
  %s7 = inlined_call_operand.hbm [shape: f32[512,128], index: 7, kind: output, shape index: {}]
  %s8 = sld [smem:[#allocation0]]
  $region81: #{tpu_custom_call.1} parent=0
    _
  %s10 = ssub.s32 1, %s8
  %s11 = scalar_select 0, %s10, %s8
  $region1: #{tpu_custom_call.1} parent=0
    #allocation4 [shape = 'u8[917504]{0}', space=vmem, size = 0xe0000, scoped, tag = 'input window, operand 0']
    #allocation5 [shape = 's32[2]{0}', space=sflag, size = 0x8, scoped, tag = 'scoped memory for tpu_custom_call.1']
    #allocation6 [shape = 's32[2]{0}', space=sflag, size = 0x8, scoped, tag = 'scoped memory for tpu_custom_call.1']
    #allocation7 [shape = 'u8[458752]{0}', space=vmem, size = 0x70000, scoped, tag = 'input window, operand 1, single buffered']
    #allocation8 [shape = 's32[1]{0}', space=sflag, size = 0x4, scoped, tag = 'scoped memory for tpu_custom_call.1']
    #allocation9 [shape = 'u8[1024]{0}', space=vmem, size = 0x400, scoped, tag = 'input window, operand 2, single buffered']
    #allocation10 [shape = 'u8[131072]{0}', space=vmem, size = 0x20000, scoped, tag = 'input window, operand 3, single buffered']
    #allocation11 [shape = 's32[1]{0}', space=sflag, size = 0x4, scoped, tag = 'scoped memory for tpu_custom_call.1']
    #allocation12 [shape = 'u8[65536]{0}', space=vmem, size = 0x10000, scoped, tag = 'input window, operand 5, single buffered']
    #allocation13 [shape = 'u8[262144]{0}', space=vmem, size = 0x40000, scoped, tag = 'output window, operand 0']
    %12 = vsyncpa [#allocation5], 0
    %s13 = scalar_lea.sflag [#allocation5], 1
    %14 = vsyncpa %s13, 0
    %15 = vsyncpa [#allocation8], 0
    %16 = vsyncpa [#allocation11], 0
    %17 = vsyncpa [#allocation6], 0
    %s18 = scalar_lea.sflag [#allocation6], 1
    %19 = vsyncpa %s18, 0
    loop: start=0, step=1, limit=4
    $region2: #{tpu_custom_call.1} parent=1 // loop_pre_header
      _
    $region3: #{tpu_custom_call.1} parent=1 // loop_header
      %s21 = sphi 0, %s25
      %p22 = scmp.ge.s32.totalorder %s21, 4
      %s31 = sphi 0, %s33
      %s34 = sphi 0, %s31
      %s35 = sphi 0, %s34
      %s51 = sphi 0, %s35
      %s55 = sphi 0, %s55
      %s57 = sphi 0, %s55
      %s58 = sphi 0, %s57
      %s72 = sphi 0, %s58
      %s76 = sphi 0, %s76
      %s78 = sphi 0, %s76
      %s79 = sphi 0, %s78
      %s93 = sphi 0, %s79
      %s97 = sphi 0, %s97
      %s99 = sphi 0, %s97
      %s100 = sphi 0, %s99
      %s114 = sphi 0, %s100
      %s118 = sphi 0, %s118
      %s120 = sphi 0, %s118
      %s121 = sphi 0, %s120
      %s135 = sphi 0, %s121
      %s139 = sphi 0, %s139
      %s141 = sphi 0, %s139
      %s142 = sphi 0, %s141
      %s156 = sphi 0, %s142
      %s160 = sphi 0, %s160
      %s162 = sphi 0, %s160
      %s163 = sphi 0, %s162
      %s177 = sphi 0, %s163
      %s183 = sphi 0, %s185
      %s186 = sphi 0, %s183
      %s187 = sphi 0, %s186
      %s203 = sphi 0, %s187
    $region4: #{tpu_custom_call.1} parent=1 // loop_header_branch
      %24 = sbr.rel (%p22) target = $region8
    $region5: #{tpu_custom_call.1} parent=1 // loop_body
      %s26 = ssub.s32 %s21, 1
      %s27 = ssub.s32 %s21, 2
      %s28 = sadd.s32 %s21, 1
      %s29 = ssub.s32 %s21, %s28
      %p30 = scmp.eq.s32.totalorder %s29, 0
      %s32 = sadd.s32 %s31, 1
      %s33 = scalar_select %p30, %s31, %s32
      %p36 = pneg %p30
      %p37 = scmp.eq.s32.totalorder %s21, 1
      %p38 = por %p36, %p37
      %p39 = scmp.ne.s32.totalorder %s31, %s34
      %p40 = scmp.eq.s32.totalorder %s21, 0
      %p41 = por %p39, %p40
      %p42 = scmp.ne.s32.totalorder %s31, %s34
      %p43 = scmp.eq.s32.totalorder %s26, 1
      %p44 = por %p42, %p43
      %p45 = scmp.ne.s32.totalorder %s34, %s35
      %p46 = scmp.eq.s32.totalorder %s26, 0
      %p47 = por %p45, %p46
      %p48 = scmp.ne.s32.totalorder %s34, %s35
      %p49 = scmp.eq.s32.totalorder %s27, 1
      %p50 = por %p48, %p49
      %p52 = scmp.ne.s32.totalorder %s35, %s51
      %p53 = scmp.eq.s32.totalorder %s27, 0
      %p54 = por %p52, %p53
      %s56 = sadd.s32 %s55, 1
      %p59 = scmp.eq.s32.totalorder %s21, 1
      %p60 = scmp.ne.s32.totalorder %s55, %s57
      %p61 = scmp.eq.s32.totalorder %s21, 0
      %p62 = por %p60, %p61
      %p63 = scmp.ne.s32.totalorder %s55, %s57
      %p64 = scmp.eq.s32.totalorder %s26, 1
      %p65 = por %p63, %p64
      %p66 = scmp.ne.s32.totalorder %s57, %s58
      %p67 = scmp.eq.s32.totalorder %s26, 0
      %p68 = por %p66, %p67
      %p69 = scmp.ne.s32.totalorder %s57, %s58
      %p70 = scmp.eq.s32.totalorder %s27, 1
      %p71 = por %p69, %p70
      %p73 = scmp.ne.s32.totalorder %s58, %s72
      %p74 = scmp.eq.s32.totalorder %s27, 0
      %p75 = por %p73, %p74
      %s77 = sadd.s32 %s76, 1
      %p80 = scmp.eq.s32.totalorder %s21, 1
      %p81 = scmp.ne.s32.totalorder %s76, %s78
      %p82 = scmp.eq.s32.totalorder %s21, 0
      %p83 = por %p81, %p82
      %p84 = scmp.ne.s32.totalorder %s76, %s78
      %p85 = scmp.eq.s32.totalorder %s26, 1
      %p86 = por %p84, %p85
      %p87 = scmp.ne.s32.totalorder %s78, %s79
      %p88 = scmp.eq.s32.totalorder %s26, 0
      %p89 = por %p87, %p88
      %p90 = scmp.ne.s32.totalorder %s78, %s79
      %p91 = scmp.eq.s32.totalorder %s27, 1
      %p92 = por %p90, %p91
      %p94 = scmp.ne.s32.totalorder %s79, %s93
      %p95 = scmp.eq.s32.totalorder %s27, 0
      %p96 = por %p94, %p95
      %s98 = sadd.s32 %s97, 1
      %p101 = scmp.eq.s32.totalorder %s21, 1
      %p102 = scmp.ne.s32.totalorder %s97, %s99
      %p103 = scmp.eq.s32.totalorder %s21, 0
      %p104 = por %p102, %p103
      %p105 = scmp.ne.s32.totalorder %s97, %s99
      %p106 = scmp.eq.s32.totalorder %s26, 1
      %p107 = por %p105, %p106
      %p108 = scmp.ne.s32.totalorder %s99, %s100
      %p109 = scmp.eq.s32.totalorder %s26, 0
      %p110 = por %p108, %p109
      %p111 = scmp.ne.s32.totalorder %s99, %s100
      %p112 = scmp.eq.s32.totalorder %s27, 1
      %p113 = por %p111, %p112
      %p115 = scmp.ne.s32.totalorder %s100, %s114
      %p116 = scmp.eq.s32.totalorder %s27, 0
      %p117 = por %p115, %p116
      %s119 = sadd.s32 %s118, 1
      %p122 = scmp.eq.s32.totalorder %s21, 1
      %p123 = scmp.ne.s32.totalorder %s118, %s120
      %p124 = scmp.eq.s32.totalorder %s21, 0
      %p125 = por %p123, %p124
      %p126 = scmp.ne.s32.totalorder %s118, %s120
      %p127 = scmp.eq.s32.totalorder %s26, 1
      %p128 = por %p126, %p127
      %p129 = scmp.ne.s32.totalorder %s120, %s121
      %p130 = scmp.eq.s32.totalorder %s26, 0
      %p131 = por %p129, %p130
      %p132 = scmp.ne.s32.totalorder %s120, %s121
      %p133 = scmp.eq.s32.totalorder %s27, 1
      %p134 = por %p132, %p133
      %p136 = scmp.ne.s32.totalorder %s121, %s135
      %p137 = scmp.eq.s32.totalorder %s27, 0
      %p138 = por %p136, %p137
      %s140 = sadd.s32 %s139, 1
      %p143 = scmp.eq.s32.totalorder %s21, 1
      %p144 = scmp.ne.s32.totalorder %s139, %s141
      %p145 = scmp.eq.s32.totalorder %s21, 0
      %p146 = por %p144, %p145
      %p147 = scmp.ne.s32.totalorder %s139, %s141
      %p148 = scmp.eq.s32.totalorder %s26, 1
      %p149 = por %p147, %p148
      %p150 = scmp.ne.s32.totalorder %s141, %s142
      %p151 = scmp.eq.s32.totalorder %s26, 0
      %p152 = por %p150, %p151
      %p153 = scmp.ne.s32.totalorder %s141, %s142
      %p154 = scmp.eq.s32.totalorder %s27, 1
      %p155 = por %p153, %p154
      %p157 = scmp.ne.s32.totalorder %s142, %s156
      %p158 = scmp.eq.s32.totalorder %s27, 0
      %p159 = por %p157, %p158
      %s161 = sadd.s32 %s160, 1
      %p164 = scmp.eq.s32.totalorder %s21, 1
      %p165 = scmp.ne.s32.totalorder %s160, %s162
      %p166 = scmp.eq.s32.totalorder %s21, 0
      %p167 = por %p165, %p166
      %p168 = scmp.ne.s32.totalorder %s160, %s162
      %p169 = scmp.eq.s32.totalorder %s26, 1
      %p170 = por %p168, %p169
      %p171 = scmp.ne.s32.totalorder %s162, %s163
      %p172 = scmp.eq.s32.totalorder %s26, 0
      %p173 = por %p171, %p172
      %p174 = scmp.ne.s32.totalorder %s162, %s163
      %p175 = scmp.eq.s32.totalorder %s27, 1
      %p176 = por %p174, %p175
      %p178 = scmp.ne.s32.totalorder %s163, %s177
      %p179 = scmp.eq.s32.totalorder %s27, 0
      %p180 = por %p178, %p179
      %s181 = ssub.s32 %s21, %s28
      %p182 = scmp.eq.s32.totalorder %s181, 0
      %s184 = sadd.s32 %s183, 1
      %s185 = scalar_select %p182, %s183, %s184
      %p188 = pneg %p182
      %p189 = scmp.eq.s32.totalorder %s21, 1
      %p190 = por %p188, %p189
      %p191 = scmp.ne.s32.totalorder %s183, %s186
      %p192 = scmp.eq.s32.totalorder %s21, 0
      %p193 = por %p191, %p192
      %p194 = scmp.ne.s32.totalorder %s183, %s186
      %p195 = scmp.eq.s32.totalorder %s26, 1
      %p196 = por %p194, %p195
      %p197 = scmp.ne.s32.totalorder %s186, %s187
      %p198 = scmp.eq.s32.totalorder %s26, 0
      %p199 = por %p197, %p198
      %p200 = scmp.ne.s32.totalorder %s186, %s187
      %p201 = scmp.eq.s32.totalorder %s27, 1
      %p202 = por %p200, %p201
      %p204 = scmp.ne.s32.totalorder %s187, %s203
      %p205 = scmp.eq.s32.totalorder %s27, 0
      %p206 = por %p204, %p205
      %p207 = scmp.le.s32.totalorder 1, %s21
      %p208 = scmp.lt.s32.totalorder %s21, 3
      %p209 = pnand %p207, %p208
      %p210 = pneg %p209
      // Predicated region
      $region9: #{tpu_custom_call.1} parent=5 // pred_check
        _
      $region10: #{tpu_custom_call.1} parent=5 // pred_check_branch
        %212 = sbr.rel (%p209) target = $region12
      $region11: #{tpu_custom_call.1} parent=5 // pred_region
        %s213 = ssub.s32 %s21, 1
        // Predicated region
        $region13: #{tpu_custom_call.1} parent=11 // pred_check
          %p214 = pneg %p68
        $region14: #{tpu_custom_call.1} parent=11 // pred_check_branch
          %216 = sbr.rel (%p214) target = $region16
        $region15: #{tpu_custom_call.1} parent=11 // pred_region
          %218 = vsyncadd [#allocation8], 0
          %s219 = sshll.u32 %s1, 4
          %s220 = int_to_ptr.hbm [resolvable:$true] %s219
          %s221 = sshll.u32 [#allocation7], 4
          %s222 = int_to_ptr.vmem [resolvable:$true] %s221
          %227 = dma.hbm_to_vmem [thread:$0]  %s220, 14336, %s222, [#allocation8], 128, 128, 8
        $region16: #{tpu_custom_call.1} parent=11 // pred_fallthru
          _
        // Predicated region
        $region17: #{tpu_custom_call.1} parent=11 // pred_check
          %p228 = pneg %p89
        $region18: #{tpu_custom_call.1} parent=11 // pred_check_branch
          %230 = sbr.rel (%p228) target = $region20
        $region19: #{tpu_custom_call.1} parent=11 // pred_region
          %232 = vsyncadd [#allocation8], 0
          %s234 = sshll.u32 %s2, 4
          %s235 = int_to_ptr.hbm [resolvable:$true] %s234
          %s236 = sshll.u32 [#allocation9], 4
          %s237 = int_to_ptr.vmem [resolvable:$true] %s236
          %239 = dma.hbm_to_vmem [thread:$0]  %s235, 32, %s237, [#allocation8]
        $region20: #{tpu_custom_call.1} parent=11 // pred_fallthru
          _
        // Predicated region
        $region21: #{tpu_custom_call.1} parent=11 // pred_check
          %p240 = pneg %p110
        $region22: #{tpu_custom_call.1} parent=11 // pred_check_branch
          %242 = sbr.rel (%p240) target = $region24
        $region23: #{tpu_custom_call.1} parent=11 // pred_region
          %244 = vsyncadd [#allocation11], 0
          %s245 = sshll.u32 %s3, 4
          %s246 = int_to_ptr.hbm [resolvable:$true] %s245
          %s247 = sshll.u32 [#allocation10], 4
          %s248 = int_to_ptr.vmem [resolvable:$true] %s247
          %253 = dma.hbm_to_vmem [thread:$0]  %s246, 4096, %s248, [#allocation11], 128, 128, 8
        $region24: #{tpu_custom_call.1} parent=11 // pred_fallthru
          _
        // Predicated region
        $region25: #{tpu_custom_call.1} parent=11 // pred_check
          %p254 = pneg %p131
        $region26: #{tpu_custom_call.1} parent=11 // pred_check_branch
          %256 = sbr.rel (%p254) target = $region28
        $region27: #{tpu_custom_call.1} parent=11 // pred_region
          _
        $region28: #{tpu_custom_call.1} parent=11 // pred_fallthru
          _
        // Predicated region
        $region29: #{tpu_custom_call.1} parent=11 // pred_check
          %p257 = pneg %p152
        $region30: #{tpu_custom_call.1} parent=11 // pred_check_branch
          %259 = sbr.rel (%p257) target = $region32
        $region31: #{tpu_custom_call.1} parent=11 // pred_region
          %261 = vsyncadd [#allocation11], 0
          %s262 = sshll.u32 %s5, 4
          %s263 = int_to_ptr.hbm [resolvable:$true] %s262
          %s264 = sshll.u32 [#allocation12], 4
          %s265 = int_to_ptr.vmem [resolvable:$true] %s264
          %270 = dma.hbm_to_vmem [thread:$0]  %s263, 2048, %s265, [#allocation11], 64, 64, 4
        $region32: #{tpu_custom_call.1} parent=11 // pred_fallthru
          _
        // Predicated region
        $region33: #{tpu_custom_call.1} parent=11 // pred_check
          %p271 = pneg %p173
        $region34: #{tpu_custom_call.1} parent=11 // pred_check_branch
          %273 = sbr.rel (%p271) target = $region36
        $region35: #{tpu_custom_call.1} parent=11 // pred_region
          _
        $region36: #{tpu_custom_call.1} parent=11 // pred_fallthru
          _
      $region12: #{tpu_custom_call.1} parent=5 // pred_fallthru
        _
      %p274 = scmp.lt.s32.totalorder %s21, 2
      // Predicated region
      $region37: #{tpu_custom_call.1} parent=5 // pred_check
        %p275 = pneg %p274
      $region38: #{tpu_custom_call.1} parent=5 // pred_check_branch
        %277 = sbr.rel (%p275) target = $region40
      $region39: #{tpu_custom_call.1} parent=5 // pred_region
        // Predicated region
        $region41: #{tpu_custom_call.1} parent=39 // pred_check
          %p278 = pneg %p41
        $region42: #{tpu_custom_call.1} parent=39 // pred_check_branch
          %280 = sbr.rel (%p278) target = $region44
        $region43: #{tpu_custom_call.1} parent=39 // pred_region
          %s281 = sand.u32 %s31, 1
          %s282 = scalar_lea.sflag [#allocation5], %s281
          %s283 = sand.u32 %s31, 1
          %s284 = smul.addr %s283, 896
          %s285 = scalar_lea.vmem [#allocation4], %s284
          %s286 = smul.u32 32, %s21
          %288 = vsyncadd %s282, 0
          %s289 = smul.addr %s286, 7
          %s290 = smul.addr %s289, 4
          %s291 = scalar_lea.hbm %s0, %s290
          %s292 = sshll.u32 %s291, 4
          %s293 = int_to_ptr.hbm [resolvable:$true] %s292
          %s294 = sshll.u32 %s285, 4
          %s295 = int_to_ptr.vmem [resolvable:$true] %s294
          %300 = dma.hbm_to_vmem [thread:$0]  %s293, 14336, %s295, %s282, 448, 448, 28
        $region44: #{tpu_custom_call.1} parent=39 // pred_fallthru
          _
      $region40: #{tpu_custom_call.1} parent=5 // pred_fallthru
        _
      %p301 = scmp.le.s32.totalorder 1, %s21
      %p302 = scmp.lt.s32.totalorder %s21, 3
      %p303 = pnand %p301, %p302
      %p304 = pneg %p303
      // Predicated region
      $region45: #{tpu_custom_call.1} parent=5 // pred_check
        _
      $region46: #{tpu_custom_call.1} parent=5 // pred_check_branch
        %306 = sbr.rel (%p303) target = $region48
      $region47: #{tpu_custom_call.1} parent=5 // pred_region
        %s307 = ssub.s32 %s21, 1
        %s308 = sand.u32 %s34, 1
        %s309 = scalar_lea.sflag [#allocation5], %s308
        %s310 = sand.u32 %s34, 1
        %s311 = smul.addr %s310, 896
        %s312 = scalar_lea.vmem [#allocation4], %s311
        // Predicated region
        $region49: #{tpu_custom_call.1} parent=47 // pred_check
          %p313 = pneg %p47
        $region50: #{tpu_custom_call.1} parent=47 // pred_check_branch
          %315 = sbr.rel (%p313) target = $region52
        $region51: #{tpu_custom_call.1} parent=47 // pred_region
          %317 = dma.done %s309, 14336
        $region52: #{tpu_custom_call.1} parent=47 // pred_fallthru
          _
        // Predicated region
        $region53: #{tpu_custom_call.1} parent=47 // pred_check
          %p318 = pneg %p68
        $region54: #{tpu_custom_call.1} parent=47 // pred_check_branch
          %320 = sbr.rel (%p318) target = $region56
        $region55: #{tpu_custom_call.1} parent=47 // pred_region
          %322 = dma.done [#allocation8], 14336
        $region56: #{tpu_custom_call.1} parent=47 // pred_fallthru
          _
        // Predicated region
        $region57: #{tpu_custom_call.1} parent=47 // pred_check
          %p323 = pneg %p89
        $region58: #{tpu_custom_call.1} parent=47 // pred_check_branch
          %325 = sbr.rel (%p323) target = $region60
        $region59: #{tpu_custom_call.1} parent=47 // pred_region
          %327 = dma.done [#allocation8], 32
        $region60: #{tpu_custom_call.1} parent=47 // pred_fallthru
          _
        // Predicated region
        $region61: #{tpu_custom_call.1} parent=47 // pred_check
          %p328 = pneg %p110
        $region62: #{tpu_custom_call.1} parent=47 // pred_check_branch
          %330 = sbr.rel (%p328) target = $region64
        $region63: #{tpu_custom_call.1} parent=47 // pred_region
          %332 = dma.done [#allocation11], 4096
        $region64: #{tpu_custom_call.1} parent=47 // pred_fallthru
          _
        // Predicated region
        $region65: #{tpu_custom_call.1} parent=47 // pred_check
          %p333 = pneg %p152
        $region66: #{tpu_custom_call.1} parent=47 // pred_check_branch
          %335 = sbr.rel (%p333) target = $region68
        $region67: #{tpu_custom_call.1} parent=47 // pred_region
          %337 = dma.done [#allocation11], 2048
        $region68: #{tpu_custom_call.1} parent=47 // pred_fallthru
          _
        %s338 = sand.u32 %s34, 1
        %s339 = scalar_lea.sflag [#allocation5], %s338
        %s340 = sand.u32 %s34, 1
        %s341 = smul.addr %s340, 896
        %s342 = scalar_lea.vmem [#allocation4], %s341
        %p343 = pneg %p47
        %p344 = pneg %p44
        %p345 = pneg %p68
        %p346 = pneg %p65
        %p347 = pneg %p89
        %p348 = pneg %p86
        %p349 = pneg %p110
        %p350 = pneg %p107
        %p351 = pneg %p131
        %p352 = pneg %p128
        %p353 = pneg %p152
        %p354 = pneg %p149
        %p355 = pneg %p173
        %p356 = pneg %p170
        %p357 = pneg %p199
        %p358 = pneg %p196
        %s359 = sand.u32 %s186, 1
        %s360 = scalar_lea.sflag [#allocation6], %s359
        %s361 = sand.u32 %s186, 1
        %s362 = smul.addr %s361, 256
        %s363 = scalar_lea.vmem [#allocation13], %s362
        %s364 = smul.u32 32, %s26
        %s365 = smul.u32 32, %s26
        %v366 = vld [vmem:[%s312] sm:$0xff]
        %v367 = vld [vmem:[%s312 + $0x8] sm:$0xff]
        %v368 = vld [vmem:[%s312 + $0x10] sm:$0xff]
        %v369 = vld [vmem:[%s312 + $0x18] sm:$0xf]
        %v370 = vld [vmem:[%s312 + $0x1c] sm:$0xff]
        %v371 = vld [vmem:[%s312 + $0x24] sm:$0xff]
        %v372 = vld [vmem:[%s312 + $0x2c] sm:$0xff]
        %v373 = vld [vmem:[%s312 + $0x34] sm:$0xf]
        %v374 = vld [vmem:[%s312 + $0x38] sm:$0xff]
        %v375 = vld [vmem:[%s312 + $0x40] sm:$0xff]
        %v376 = vld [vmem:[%s312 + $0x48] sm:$0xff]
        %v377 = vld [vmem:[%s312 + $0x50] sm:$0xf]
        %v378 = vld [vmem:[%s312 + $0x54] sm:$0xff]
        %v379 = vld [vmem:[%s312 + $0x5c] sm:$0xff]
        %v380 = vld [vmem:[%s312 + $0x64] sm:$0xff]
        %v381 = vld [vmem:[%s312 + $0x6c] sm:$0xf]
        %v382 = vld [vmem:[%s312 + $0x70] sm:$0xff]
        %v383 = vld [vmem:[%s312 + $0x78] sm:$0xff]
        %v384 = vld [vmem:[%s312 + $0x80] sm:$0xff]
        %v385 = vld [vmem:[%s312 + $0x88] sm:$0xf]
        %v386 = vld [vmem:[%s312 + $0x8c] sm:$0xff]
        %v387 = vld [vmem:[%s312 + $0x94] sm:$0xff]
        %v388 = vld [vmem:[%s312 + $0x9c] sm:$0xff]
        %v389 = vld [vmem:[%s312 + $0xa4] sm:$0xf]
        %v390 = vld [vmem:[%s312 + $0xa8] sm:$0xff]
        %v391 = vld [vmem:[%s312 + $0xb0] sm:$0xff]
        %v392 = vld [vmem:[%s312 + $0xb8] sm:$0xff]
        %v393 = vld [vmem:[%s312 + $0xc0] sm:$0xf]
        %v394 = vld [vmem:[%s312 + $0xc4] sm:$0xff]
        %v395 = vld [vmem:[%s312 + $0xcc] sm:$0xff]
        %v396 = vld [vmem:[%s312 + $0xd4] sm:$0xff]
        %v397 = vld [vmem:[%s312 + $0xdc] sm:$0xf]
        %v398 = vld [vmem:[%s312 + $0xe0] sm:$0xff]
        %v399 = vld [vmem:[%s312 + $0xe8] sm:$0xff]
        %v400 = vld [vmem:[%s312 + $0xf0] sm:$0xff]
        %v401 = vld [vmem:[%s312 + $0xf8] sm:$0xf]
        %v402 = vld [vmem:[%s312 + $0xfc] sm:$0xff]
        %v403 = vld [vmem:[%s312 + $0x104] sm:$0xff]
        %v404 = vld [vmem:[%s312 + $0x10c] sm:$0xff]
        %v405 = vld [vmem:[%s312 + $0x114] sm:$0xf]
        %v406 = vld [vmem:[%s312 + $0x118] sm:$0xff]
        %v407 = vld [vmem:[%s312 + $0x120] sm:$0xff]
        %v408 = vld [vmem:[%s312 + $0x128] sm:$0xff]
        %v409 = vld [vmem:[%s312 + $0x130] sm:$0xf]
        %v410 = vld [vmem:[%s312 + $0x134] sm:$0xff]
        %v411 = vld [vmem:[%s312 + $0x13c] sm:$0xff]
        %v412 = vld [vmem:[%s312 + $0x144] sm:$0xff]
        %v413 = vld [vmem:[%s312 + $0x14c] sm:$0xf]
        %v414 = vld [vmem:[%s312 + $0x150] sm:$0xff]
        %v415 = vld [vmem:[%s312 + $0x158] sm:$0xff]
        %v416 = vld [vmem:[%s312 + $0x160] sm:$0xff]
        %v417 = vld [vmem:[%s312 + $0x168] sm:$0xf]
        %v418 = vld [vmem:[%s312 + $0x16c] sm:$0xff]
        %v419 = vld [vmem:[%s312 + $0x174] sm:$0xff]
        %v420 = vld [vmem:[%s312 + $0x17c] sm:$0xff]
        %v421 = vld [vmem:[%s312 + $0x184] sm:$0xf]
        %v422 = vld [vmem:[%s312 + $0x188] sm:$0xff]
        %v423 = vld [vmem:[%s312 + $0x190] sm:$0xff]
        %v424 = vld [vmem:[%s312 + $0x198] sm:$0xff]
        %v425 = vld [vmem:[%s312 + $0x1a0] sm:$0xf]
        %v426 = vld [vmem:[%s312 + $0x1a4] sm:$0xff]
        %v427 = vld [vmem:[%s312 + $0x1ac] sm:$0xff]
        %v428 = vld [vmem:[%s312 + $0x1b4] sm:$0xff]
        %v429 = vld [vmem:[%s312 + $0x1bc] sm:$0xf]
        %v430 = vld [vmem:[%s312 + $0x1c0] sm:$0xff]
        %v431 = vld [vmem:[%s312 + $0x1c8] sm:$0xff]
        %v432 = vld [vmem:[%s312 + $0x1d0] sm:$0xff]
        %v433 = vld [vmem:[%s312 + $0x1d8] sm:$0xf]
        %v434 = vld [vmem:[%s312 + $0x1dc] sm:$0xff]
        %v435 = vld [vmem:[%s312 + $0x1e4] sm:$0xff]
        %v436 = vld [vmem:[%s312 + $0x1ec] sm:$0xff]
        %v437 = vld [vmem:[%s312 + $0x1f4] sm:$0xf]
        %v438 = vld [vmem:[%s312 + $0x1f8] sm:$0xff]
        %v439 = vld [vmem:[%s312 + $0x200] sm:$0xff]
        %v440 = vld [vmem:[%s312 + $0x208] sm:$0xff]
        %v441 = vld [vmem:[%s312 + $0x210] sm:$0xf]
        %v442 = vld [vmem:[%s312 + $0x214] sm:$0xff]
        %v443 = vld [vmem:[%s312 + $0x21c] sm:$0xff]
        %v444 = vld [vmem:[%s312 + $0x224] sm:$0xff]
        %v445 = vld [vmem:[%s312 + $0x22c] sm:$0xf]
        %v446 = vld [vmem:[%s312 + $0x230] sm:$0xff]
        %v447 = vld [vmem:[%s312 + $0x238] sm:$0xff]
        %v448 = vld [vmem:[%s312 + $0x240] sm:$0xff]
        %v449 = vld [vmem:[%s312 + $0x248] sm:$0xf]
        %v450 = vld [vmem:[%s312 + $0x24c] sm:$0xff]
        %v451 = vld [vmem:[%s312 + $0x254] sm:$0xff]
        %v452 = vld [vmem:[%s312 + $0x25c] sm:$0xff]
        %v453 = vld [vmem:[%s312 + $0x264] sm:$0xf]
        %v454 = vld [vmem:[%s312 + $0x268] sm:$0xff]
        %v455 = vld [vmem:[%s312 + $0x270] sm:$0xff]
        %v456 = vld [vmem:[%s312 + $0x278] sm:$0xff]
        %v457 = vld [vmem:[%s312 + $0x280] sm:$0xf]
        %v458 = vld [vmem:[%s312 + $0x284] sm:$0xff]
        %v459 = vld [vmem:[%s312 + $0x28c] sm:$0xff]
        %v460 = vld [vmem:[%s312 + $0x294] sm:$0xff]
        %v461 = vld [vmem:[%s312 + $0x29c] sm:$0xf]
        %v462 = vld [vmem:[%s312 + $0x2a0] sm:$0xff]
        %v463 = vld [vmem:[%s312 + $0x2a8] sm:$0xff]
        %v464 = vld [vmem:[%s312 + $0x2b0] sm:$0xff]
        %v465 = vld [vmem:[%s312 + $0x2b8] sm:$0xf]
        %v466 = vld [vmem:[%s312 + $0x2bc] sm:$0xff]
        %v467 = vld [vmem:[%s312 + $0x2c4] sm:$0xff]
        %v468 = vld [vmem:[%s312 + $0x2cc] sm:$0xff]
        %v469 = vld [vmem:[%s312 + $0x2d4] sm:$0xf]
        %v470 = vld [vmem:[%s312 + $0x2d8] sm:$0xff]
        %v471 = vld [vmem:[%s312 + $0x2e0] sm:$0xff]
        %v472 = vld [vmem:[%s312 + $0x2e8] sm:$0xff]
        %v473 = vld [vmem:[%s312 + $0x2f0] sm:$0xf]
        %v474 = vld [vmem:[%s312 + $0x2f4] sm:$0xff]
        %v475 = vld [vmem:[%s312 + $0x2fc] sm:$0xff]
        %v476 = vld [vmem:[%s312 + $0x304] sm:$0xff]
        %v477 = vld [vmem:[%s312 + $0x30c] sm:$0xf]
        %v478 = vld [vmem:[%s312 + $0x310] sm:$0xff]
        %v479 = vld [vmem:[%s312 + $0x318] sm:$0xff]
        %v480 = vld [vmem:[%s312 + $0x320] sm:$0xff]
        %v481 = vld [vmem:[%s312 + $0x328] sm:$0xf]
        %v482 = vld [vmem:[%s312 + $0x32c] sm:$0xff]
        %v483 = vld [vmem:[%s312 + $0x334] sm:$0xff]
        %v484 = vld [vmem:[%s312 + $0x33c] sm:$0xff]
        %v485 = vld [vmem:[%s312 + $0x344] sm:$0xf]
        %v486 = vld [vmem:[%s312 + $0x348] sm:$0xff]
        %v487 = vld [vmem:[%s312 + $0x350] sm:$0xff]
        %v488 = vld [vmem:[%s312 + $0x358] sm:$0xff]
        %v489 = vld [vmem:[%s312 + $0x360] sm:$0xf]
        %v490 = vld [vmem:[%s312 + $0x364] sm:$0xff]
        %v491 = vld [vmem:[%s312 + $0x36c] sm:$0xff]
        %v492 = vld [vmem:[%s312 + $0x374] sm:$0xff]
        %v493 = vld [vmem:[%s312 + $0x37c] sm:$0xf]
        %v494 = vld [vmem:[#allocation7] sm:$0xff]
        %v495 = vld [vmem:[#allocation7 + $0x8] sm:$0xff]
        %v496 = vld [vmem:[#allocation7 + $0x10] sm:$0xff]
        %v497 = vld [vmem:[#allocation7 + $0x18] sm:$0xff]
        %v498 = vld [vmem:[#allocation7 + $0x20] sm:$0xff]
        %v499 = vld [vmem:[#allocation7 + $0x28] sm:$0xff]
        %v500 = vld [vmem:[#allocation7 + $0x30] sm:$0xff]
        %v501 = vld [vmem:[#allocation7 + $0x38] sm:$0xff]
        %v502 = vld [vmem:[#allocation7 + $0x40] sm:$0xff]
        %v503 = vld [vmem:[#allocation7 + $0x48] sm:$0xff]
        %v504 = vld [vmem:[#allocation7 + $0x50] sm:$0xff]
        %v505 = vld [vmem:[#allocation7 + $0x58] sm:$0xff]
        %v506 = vld [vmem:[#allocation7 + $0x60] sm:$0xff]
        %v507 = vld [vmem:[#allocation7 + $0x68] sm:$0xff]
        %v508 = vld [vmem:[#allocation7 + $0x70] sm:$0xff]
        %v509 = vld [vmem:[#allocation7 + $0x78] sm:$0xff]
        %v510 = vld [vmem:[#allocation7 + $0x80] sm:$0xff]
        %v511 = vld [vmem:[#allocation7 + $0x88] sm:$0xff]
        %v512 = vld [vmem:[#allocation7 + $0x90] sm:$0xff]
        %v513 = vld [vmem:[#allocation7 + $0x98] sm:$0xff]
        %v514 = vld [vmem:[#allocation7 + $0xa0] sm:$0xff]
        %v515 = vld [vmem:[#allocation7 + $0xa8] sm:$0xff]
        %v516 = vld [vmem:[#allocation7 + $0xb0] sm:$0xff]
        %v517 = vld [vmem:[#allocation7 + $0xb8] sm:$0xff]
        %v518 = vld [vmem:[#allocation7 + $0xc0] sm:$0xff]
        %v519 = vld [vmem:[#allocation7 + $0xc8] sm:$0xff]
        %v520 = vld [vmem:[#allocation7 + $0xd0] sm:$0xff]
        %v521 = vld [vmem:[#allocation7 + $0xd8] sm:$0xff]
        %v522 = vld [vmem:[#allocation7 + $0xe0] sm:$0xff]
        %v523 = vld [vmem:[#allocation7 + $0xe8] sm:$0xff]
        %v524 = vld [vmem:[#allocation7 + $0xf0] sm:$0xff]
        %v525 = vld [vmem:[#allocation7 + $0xf8] sm:$0xff]
        %v526 = vld [vmem:[#allocation7 + $0x100] sm:$0xff]
        %v527 = vld [vmem:[#allocation7 + $0x108] sm:$0xff]
        %v528 = vld [vmem:[#allocation7 + $0x110] sm:$0xff]
        %v529 = vld [vmem:[#allocation7 + $0x118] sm:$0xff]
        %v530 = vld [vmem:[#allocation7 + $0x120] sm:$0xff]
        %v531 = vld [vmem:[#allocation7 + $0x128] sm:$0xff]
        %v532 = vld [vmem:[#allocation7 + $0x130] sm:$0xff]
        %v533 = vld [vmem:[#allocation7 + $0x138] sm:$0xff]
        %v534 = vld [vmem:[#allocation7 + $0x140] sm:$0xff]
        %v535 = vld [vmem:[#allocation7 + $0x148] sm:$0xff]
        %v536 = vld [vmem:[#allocation7 + $0x150] sm:$0xff]
        %v537 = vld [vmem:[#allocation7 + $0x158] sm:$0xff]
        %v538 = vld [vmem:[#allocation7 + $0x160] sm:$0xff]
        %v539 = vld [vmem:[#allocation7 + $0x168] sm:$0xff]
        %v540 = vld [vmem:[#allocation7 + $0x170] sm:$0xff]
        %v541 = vld [vmem:[#allocation7 + $0x178] sm:$0xff]
        %v542 = vld [vmem:[#allocation7 + $0x180] sm:$0xff]
        %v543 = vld [vmem:[#allocation7 + $0x188] sm:$0xff]
        %v544 = vld [vmem:[#allocation7 + $0x190] sm:$0xff]
        %v545 = vld [vmem:[#allocation7 + $0x198] sm:$0xff]
        %v546 = vld [vmem:[#allocation7 + $0x1a0] sm:$0xff]
        %v547 = vld [vmem:[#allocation7 + $0x1a8] sm:$0xff]
        %v548 = vld [vmem:[#allocation7 + $0x1b0] sm:$0xff]
        %v549 = vld [vmem:[#allocation7 + $0x1b8] sm:$0xff]
        %v550 = vld [vmem:[#allocation7 + $0x1c0] sm:$0xff]
        %v551 = vld [vmem:[#allocation7 + $0x1c8] sm:$0xff]
        %v552 = vld [vmem:[#allocation7 + $0x1d0] sm:$0xff]
        %v553 = vld [vmem:[#allocation7 + $0x1d8] sm:$0xff]
        %v554 = vld [vmem:[#allocation7 + $0x1e0] sm:$0xff]
        %v555 = vld [vmem:[#allocation7 + $0x1e8] sm:$0xff]
        %v556 = vld [vmem:[#allocation7 + $0x1f0] sm:$0xff]
        %v557 = vld [vmem:[#allocation7 + $0x1f8] sm:$0xff]
        %v558 = vld [vmem:[#allocation7 + $0x200] sm:$0xff]
        %v559 = vld [vmem:[#allocation7 + $0x208] sm:$0xff]
        %v560 = vld [vmem:[#allocation7 + $0x210] sm:$0xff]
        %v561 = vld [vmem:[#allocation7 + $0x218] sm:$0xff]
        %v562 = vld [vmem:[#allocation7 + $0x220] sm:$0xff]
        %v563 = vld [vmem:[#allocation7 + $0x228] sm:$0xff]
        %v564 = vld [vmem:[#allocation7 + $0x230] sm:$0xff]
        %v565 = vld [vmem:[#allocation7 + $0x238] sm:$0xff]
        %v566 = vld [vmem:[#allocation7 + $0x240] sm:$0xff]
        %v567 = vld [vmem:[#allocation7 + $0x248] sm:$0xff]
        %v568 = vld [vmem:[#allocation7 + $0x250] sm:$0xff]
        %v569 = vld [vmem:[#allocation7 + $0x258] sm:$0xff]
        %v570 = vld [vmem:[#allocation7 + $0x260] sm:$0xff]
        %v571 = vld [vmem:[#allocation7 + $0x268] sm:$0xff]
        %v572 = vld [vmem:[#allocation7 + $0x270] sm:$0xff]
        %v573 = vld [vmem:[#allocation7 + $0x278] sm:$0xff]
        %v574 = vld [vmem:[#allocation7 + $0x280] sm:$0xff]
        %v575 = vld [vmem:[#allocation7 + $0x288] sm:$0xff]
        %v576 = vld [vmem:[#allocation7 + $0x290] sm:$0xff]
        %v577 = vld [vmem:[#allocation7 + $0x298] sm:$0xff]
        %v578 = vld [vmem:[#allocation7 + $0x2a0] sm:$0xff]
        %v579 = vld [vmem:[#allocation7 + $0x2a8] sm:$0xff]
        %v580 = vld [vmem:[#allocation7 + $0x2b0] sm:$0xff]
        %v581 = vld [vmem:[#allocation7 + $0x2b8] sm:$0xff]
        %v582 = vld [vmem:[#allocation7 + $0x2c0] sm:$0xff]
        %v583 = vld [vmem:[#allocation7 + $0x2c8] sm:$0xff]
        %v584 = vld [vmem:[#allocation7 + $0x2d0] sm:$0xff]
        %v585 = vld [vmem:[#allocation7 + $0x2d8] sm:$0xff]
        %v586 = vld [vmem:[#allocation7 + $0x2e0] sm:$0xff]
        %v587 = vld [vmem:[#allocation7 + $0x2e8] sm:$0xff]
        %v588 = vld [vmem:[#allocation7 + $0x2f0] sm:$0xff]
        %v589 = vld [vmem:[#allocation7 + $0x2f8] sm:$0xff]
        %v590 = vld [vmem:[#allocation7 + $0x300] sm:$0xff]
        %v591 = vld [vmem:[#allocation7 + $0x308] sm:$0xff]
        %v592 = vld [vmem:[#allocation7 + $0x310] sm:$0xff]
        %v593 = vld [vmem:[#allocation7 + $0x318] sm:$0xff]
        %v594 = vld [vmem:[#allocation7 + $0x320] sm:$0xff]
        %v595 = vld [vmem:[#allocation7 + $0x328] sm:$0xff]
        %v596 = vld [vmem:[#allocation7 + $0x330] sm:$0xff]
        %v597 = vld [vmem:[#allocation7 + $0x338] sm:$0xff]
        %v598 = vld [vmem:[#allocation7 + $0x340] sm:$0xff]
        %v599 = vld [vmem:[#allocation7 + $0x348] sm:$0xff]
        %v600 = vld [vmem:[#allocation7 + $0x350] sm:$0xff]
        %v601 = vld [vmem:[#allocation7 + $0x358] sm:$0xff]
        %v602 = vld [vmem:[#allocation7 + $0x360] sm:$0xff]
        %v603 = vld [vmem:[#allocation7 + $0x368] sm:$0xff]
        %v604 = vld [vmem:[#allocation7 + $0x370] sm:$0xff]
        %v605 = vld [vmem:[#allocation7 + $0x378] sm:$0xff]
        %v606 = vld [vmem:[#allocation9] sm:$0x3]
        %v608 = vperm.slane %v606, 0
        %v609 = vperm.slane %v606, 1
        %v740 = vunpack.c.l.b16 %v366
        %v741 = vunpack.c.h.b16 %v366
        %v742 = vunpack.c.l.b16 %v367
        %v743 = vunpack.c.h.b16 %v367
        %v744 = vunpack.c.l.b16 %v368
        %v745 = vunpack.c.h.b16 %v368
        %v746 = vunpack.c.l.b16 %v369
        %v747 = vunpack.c.l.b16 %v370
        %v748 = vunpack.c.h.b16 %v370
        %v749 = vunpack.c.l.b16 %v371
        %v750 = vunpack.c.h.b16 %v371
        %v751 = vunpack.c.l.b16 %v372
        %v752 = vunpack.c.h.b16 %v372
        %v753 = vunpack.c.l.b16 %v373
        %v754 = vunpack.c.l.b16 %v374
        %v755 = vunpack.c.h.b16 %v374
        %v756 = vunpack.c.l.b16 %v375
        %v757 = vunpack.c.h.b16 %v375
        %v758 = vunpack.c.l.b16 %v376
        %v759 = vunpack.c.h.b16 %v376
        %v760 = vunpack.c.l.b16 %v377
        %v761 = vunpack.c.l.b16 %v378
        %v762 = vunpack.c.h.b16 %v378
        %v763 = vunpack.c.l.b16 %v379
        %v764 = vunpack.c.h.b16 %v379
        %v765 = vunpack.c.l.b16 %v380
        %v766 = vunpack.c.h.b16 %v380
        %v767 = vunpack.c.l.b16 %v381
        %v768 = vunpack.c.l.b16 %v382
        %v769 = vunpack.c.h.b16 %v382
        %v770 = vunpack.c.l.b16 %v383
        %v771 = vunpack.c.h.b16 %v383
        %v772 = vunpack.c.l.b16 %v384
        %v773 = vunpack.c.h.b16 %v384
        %v774 = vunpack.c.l.b16 %v385
        %v775 = vunpack.c.l.b16 %v386
        %v776 = vunpack.c.h.b16 %v386
        %v777 = vunpack.c.l.b16 %v387
        %v778 = vunpack.c.h.b16 %v387
        %v779 = vunpack.c.l.b16 %v388
        %v780 = vunpack.c.h.b16 %v388
        %v781 = vunpack.c.l.b16 %v389
        %v782 = vunpack.c.l.b16 %v390
        %v783 = vunpack.c.h.b16 %v390
        %v784 = vunpack.c.l.b16 %v391
        %v785 = vunpack.c.h.b16 %v391
        %v786 = vunpack.c.l.b16 %v392
        %v787 = vunpack.c.h.b16 %v392
        %v788 = vunpack.c.l.b16 %v393
        %v789 = vunpack.c.l.b16 %v394
        %v790 = vunpack.c.h.b16 %v394
        %v791 = vunpack.c.l.b16 %v395
        %v792 = vunpack.c.h.b16 %v395
        %v793 = vunpack.c.l.b16 %v396
        %v794 = vunpack.c.h.b16 %v396
        %v795 = vunpack.c.l.b16 %v397
        %v796 = vunpack.c.l.b16 %v398
        %v797 = vunpack.c.h.b16 %v398
        %v798 = vunpack.c.l.b16 %v399
        %v799 = vunpack.c.h.b16 %v399
        %v800 = vunpack.c.l.b16 %v400
        %v801 = vunpack.c.h.b16 %v400
        %v802 = vunpack.c.l.b16 %v401
        %v803 = vunpack.c.l.b16 %v402
        %v804 = vunpack.c.h.b16 %v402
        %v805 = vunpack.c.l.b16 %v403
        %v806 = vunpack.c.h.b16 %v403
        %v807 = vunpack.c.l.b16 %v404
        %v808 = vunpack.c.h.b16 %v404
        %v809 = vunpack.c.l.b16 %v405
        %v810 = vunpack.c.l.b16 %v406
        %v811 = vunpack.c.h.b16 %v406
        %v812 = vunpack.c.l.b16 %v407
        %v813 = vunpack.c.h.b16 %v407
        %v814 = vunpack.c.l.b16 %v408
        %v815 = vunpack.c.h.b16 %v408
        %v816 = vunpack.c.l.b16 %v409
        %v817 = vunpack.c.l.b16 %v410
        %v818 = vunpack.c.h.b16 %v410
        %v819 = vunpack.c.l.b16 %v411
        %v820 = vunpack.c.h.b16 %v411
        %v821 = vunpack.c.l.b16 %v412
        %v822 = vunpack.c.h.b16 %v412
        %v823 = vunpack.c.l.b16 %v413
        %v824 = vunpack.c.l.b16 %v414
        %v825 = vunpack.c.h.b16 %v414
        %v826 = vunpack.c.l.b16 %v415
        %v827 = vunpack.c.h.b16 %v415
        %v828 = vunpack.c.l.b16 %v416
        %v829 = vunpack.c.h.b16 %v416
        %v830 = vunpack.c.l.b16 %v417
        %v831 = vunpack.c.l.b16 %v418
        %v832 = vunpack.c.h.b16 %v418
        %v833 = vunpack.c.l.b16 %v419
        %v834 = vunpack.c.h.b16 %v419
        %v835 = vunpack.c.l.b16 %v420
        %v836 = vunpack.c.h.b16 %v420
        %v837 = vunpack.c.l.b16 %v421
        %v838 = vunpack.c.l.b16 %v422
        %v839 = vunpack.c.h.b16 %v422
        %v840 = vunpack.c.l.b16 %v423
        %v841 = vunpack.c.h.b16 %v423
        %v842 = vunpack.c.l.b16 %v424
        %v843 = vunpack.c.h.b16 %v424
        %v844 = vunpack.c.l.b16 %v425
        %v845 = vunpack.c.l.b16 %v426
        %v846 = vunpack.c.h.b16 %v426
        %v847 = vunpack.c.l.b16 %v427
        %v848 = vunpack.c.h.b16 %v427
        %v849 = vunpack.c.l.b16 %v428
        %v850 = vunpack.c.h.b16 %v428
        %v851 = vunpack.c.l.b16 %v429
        %v852 = vunpack.c.l.b16 %v430
        %v853 = vunpack.c.h.b16 %v430
        %v854 = vunpack.c.l.b16 %v431
        %v855 = vunpack.c.h.b16 %v431
        %v856 = vunpack.c.l.b16 %v432
        %v857 = vunpack.c.h.b16 %v432
        %v858 = vunpack.c.l.b16 %v433
        %v859 = vunpack.c.l.b16 %v434
        %v860 = vunpack.c.h.b16 %v434
        %v861 = vunpack.c.l.b16 %v435
        %v862 = vunpack.c.h.b16 %v435
        %v863 = vunpack.c.l.b16 %v436
        %v864 = vunpack.c.h.b16 %v436
        %v865 = vunpack.c.l.b16 %v437
        %v866 = vunpack.c.l.b16 %v438
        %v867 = vunpack.c.h.b16 %v438
        %v868 = vunpack.c.l.b16 %v439
        %v869 = vunpack.c.h.b16 %v439
        %v870 = vunpack.c.l.b16 %v440
        %v871 = vunpack.c.h.b16 %v440
        %v872 = vunpack.c.l.b16 %v441
        %v873 = vunpack.c.l.b16 %v442
        %v874 = vunpack.c.h.b16 %v442
        %v875 = vunpack.c.l.b16 %v443
        %v876 = vunpack.c.h.b16 %v443
        %v877 = vunpack.c.l.b16 %v444
        %v878 = vunpack.c.h.b16 %v444
        %v879 = vunpack.c.l.b16 %v445
        %v880 = vunpack.c.l.b16 %v446
        %v881 = vunpack.c.h.b16 %v446
        %v882 = vunpack.c.l.b16 %v447
        %v883 = vunpack.c.h.b16 %v447
        %v884 = vunpack.c.l.b16 %v448
        %v885 = vunpack.c.h.b16 %v448
        %v886 = vunpack.c.l.b16 %v449
        %v887 = vunpack.c.l.b16 %v450
        %v888 = vunpack.c.h.b16 %v450
        %v889 = vunpack.c.l.b16 %v451
        %v890 = vunpack.c.h.b16 %v451
        %v891 = vunpack.c.l.b16 %v452
        %v892 = vunpack.c.h.b16 %v452
        %v893 = vunpack.c.l.b16 %v453
        %v894 = vunpack.c.l.b16 %v454
        %v895 = vunpack.c.h.b16 %v454
        %v896 = vunpack.c.l.b16 %v455
        %v897 = vunpack.c.h.b16 %v455
        %v898 = vunpack.c.l.b16 %v456
        %v899 = vunpack.c.h.b16 %v456
        %v900 = vunpack.c.l.b16 %v457
        %v901 = vunpack.c.l.b16 %v458
        %v902 = vunpack.c.h.b16 %v458
        %v903 = vunpack.c.l.b16 %v459
        %v904 = vunpack.c.h.b16 %v459
        %v905 = vunpack.c.l.b16 %v460
        %v906 = vunpack.c.h.b16 %v460
        %v907 = vunpack.c.l.b16 %v461
        %v908 = vunpack.c.l.b16 %v462
        %v909 = vunpack.c.h.b16 %v462
        %v910 = vunpack.c.l.b16 %v463
        %v911 = vunpack.c.h.b16 %v463
        %v912 = vunpack.c.l.b16 %v464
        %v913 = vunpack.c.h.b16 %v464
        %v914 = vunpack.c.l.b16 %v465
        %v915 = vunpack.c.l.b16 %v466
        %v916 = vunpack.c.h.b16 %v466
        %v917 = vunpack.c.l.b16 %v467
        %v918 = vunpack.c.h.b16 %v467
        %v919 = vunpack.c.l.b16 %v468
        %v920 = vunpack.c.h.b16 %v468
        %v921 = vunpack.c.l.b16 %v469
        %v922 = vunpack.c.l.b16 %v470
        %v923 = vunpack.c.h.b16 %v470
        %v924 = vunpack.c.l.b16 %v471
        %v925 = vunpack.c.h.b16 %v471
        %v926 = vunpack.c.l.b16 %v472
        %v927 = vunpack.c.h.b16 %v472
        %v928 = vunpack.c.l.b16 %v473
        %v929 = vunpack.c.l.b16 %v474
        %v930 = vunpack.c.h.b16 %v474
        %v931 = vunpack.c.l.b16 %v475
        %v932 = vunpack.c.h.b16 %v475
        %v933 = vunpack.c.l.b16 %v476
        %v934 = vunpack.c.h.b16 %v476
        %v935 = vunpack.c.l.b16 %v477
        %v936 = vunpack.c.l.b16 %v478
        %v937 = vunpack.c.h.b16 %v478
        %v938 = vunpack.c.l.b16 %v479
        %v939 = vunpack.c.h.b16 %v479
        %v940 = vunpack.c.l.b16 %v480
        %v941 = vunpack.c.h.b16 %v480
        %v942 = vunpack.c.l.b16 %v481
        %v943 = vunpack.c.l.b16 %v482
        %v944 = vunpack.c.h.b16 %v482
        %v945 = vunpack.c.l.b16 %v483
        %v946 = vunpack.c.h.b16 %v483
        %v947 = vunpack.c.l.b16 %v484
        %v948 = vunpack.c.h.b16 %v484
        %v949 = vunpack.c.l.b16 %v485
        %v950 = vunpack.c.l.b16 %v486
        %v951 = vunpack.c.h.b16 %v486
        %v952 = vunpack.c.l.b16 %v487
        %v953 = vunpack.c.h.b16 %v487
        %v954 = vunpack.c.l.b16 %v488
        %v955 = vunpack.c.h.b16 %v488
        %v956 = vunpack.c.l.b16 %v489
        %v957 = vunpack.c.l.b16 %v490
        %v958 = vunpack.c.h.b16 %v490
        %v959 = vunpack.c.l.b16 %v491
        %v960 = vunpack.c.h.b16 %v491
        %v961 = vunpack.c.l.b16 %v492
        %v962 = vunpack.c.h.b16 %v492
        %v963 = vunpack.c.l.b16 %v493
        %v964 = vpack.c.b16 %v747, %v740
        %v965 = vpack.c.b16 %v748, %v741
        %v966 = vpack.c.b16 %v749, %v742
        %v967 = vpack.c.b16 %v750, %v743
        %v968 = vpack.c.b16 %v751, %v744
        %v969 = vpack.c.b16 %v752, %v745
        %v970 = vpack.c.b16 %v753, %v746
        %v971 = vpack.c.b16 %v761, %v754
        %v972 = vpack.c.b16 %v762, %v755
        %v973 = vpack.c.b16 %v763, %v756
        %v974 = vpack.c.b16 %v764, %v757
        %v975 = vpack.c.b16 %v765, %v758
        %v976 = vpack.c.b16 %v766, %v759
        %v977 = vpack.c.b16 %v767, %v760
        %v978 = vpack.c.b16 %v775, %v768
        %v979 = vpack.c.b16 %v776, %v769
        %v980 = vpack.c.b16 %v777, %v770
        %v981 = vpack.c.b16 %v778, %v771
        %v982 = vpack.c.b16 %v779, %v772
        %v983 = vpack.c.b16 %v780, %v773
        %v984 = vpack.c.b16 %v781, %v774
        %v985 = vpack.c.b16 %v789, %v782
        %v986 = vpack.c.b16 %v790, %v783
        %v987 = vpack.c.b16 %v791, %v784
        %v988 = vpack.c.b16 %v792, %v785
        %v989 = vpack.c.b16 %v793, %v786
        %v990 = vpack.c.b16 %v794, %v787
        %v991 = vpack.c.b16 %v795, %v788
        %v992 = vpack.c.b16 %v803, %v796
        %v993 = vpack.c.b16 %v804, %v797
        %v994 = vpack.c.b16 %v805, %v798
        %v995 = vpack.c.b16 %v806, %v799
        %v996 = vpack.c.b16 %v807, %v800
        %v997 = vpack.c.b16 %v808, %v801
        %v998 = vpack.c.b16 %v809, %v802
        %v999 = vpack.c.b16 %v817, %v810
        %v1000 = vpack.c.b16 %v818, %v811
        %v1001 = vpack.c.b16 %v819, %v812
        %v1002 = vpack.c.b16 %v820, %v813
        %v1003 = vpack.c.b16 %v821, %v814
        %v1004 = vpack.c.b16 %v822, %v815
        %v1005 = vpack.c.b16 %v823, %v816
        %v1006 = vpack.c.b16 %v831, %v824
        %v1007 = vpack.c.b16 %v832, %v825
        %v1008 = vpack.c.b16 %v833, %v826
        %v1009 = vpack.c.b16 %v834, %v827
        %v1010 = vpack.c.b16 %v835, %v828
        %v1011 = vpack.c.b16 %v836, %v829
        %v1012 = vpack.c.b16 %v837, %v830
        %v1013 = vpack.c.b16 %v845, %v838
        %v1014 = vpack.c.b16 %v846, %v839
        %v1015 = vpack.c.b16 %v847, %v840
        %v1016 = vpack.c.b16 %v848, %v841
        %v1017 = vpack.c.b16 %v849, %v842
        %v1018 = vpack.c.b16 %v850, %v843
        %v1019 = vpack.c.b16 %v851, %v844
        %v1020 = vpack.c.b16 %v859, %v852
        %v1021 = vpack.c.b16 %v860, %v853
        %v1022 = vpack.c.b16 %v861, %v854
        %v1023 = vpack.c.b16 %v862, %v855
        %v1024 = vpack.c.b16 %v863, %v856
        %v1025 = vpack.c.b16 %v864, %v857
        %v1026 = vpack.c.b16 %v865, %v858
        %v1027 = vpack.c.b16 %v873, %v866
        %v1028 = vpack.c.b16 %v874, %v867
        %v1029 = vpack.c.b16 %v875, %v868
        %v1030 = vpack.c.b16 %v876, %v869
        %v1031 = vpack.c.b16 %v877, %v870
        %v1032 = vpack.c.b16 %v878, %v871
        %v1033 = vpack.c.b16 %v879, %v872
        %v1034 = vpack.c.b16 %v887, %v880
        %v1035 = vpack.c.b16 %v888, %v881
        %v1036 = vpack.c.b16 %v889, %v882
        %v1037 = vpack.c.b16 %v890, %v883
        %v1038 = vpack.c.b16 %v891, %v884
        %v1039 = vpack.c.b16 %v892, %v885
        %v1040 = vpack.c.b16 %v893, %v886
        %v1041 = vpack.c.b16 %v901, %v894
        %v1042 = vpack.c.b16 %v902, %v895
        %v1043 = vpack.c.b16 %v903, %v896
        %v1044 = vpack.c.b16 %v904, %v897
        %v1045 = vpack.c.b16 %v905, %v898
        %v1046 = vpack.c.b16 %v906, %v899
        %v1047 = vpack.c.b16 %v907, %v900
        %v1048 = vpack.c.b16 %v915, %v908
        %v1049 = vpack.c.b16 %v916, %v909
        %v1050 = vpack.c.b16 %v917, %v910
        %v1051 = vpack.c.b16 %v918, %v911
        %v1052 = vpack.c.b16 %v919, %v912
        %v1053 = vpack.c.b16 %v920, %v913
        %v1054 = vpack.c.b16 %v921, %v914
        %v1055 = vpack.c.b16 %v929, %v922
        %v1056 = vpack.c.b16 %v930, %v923
        %v1057 = vpack.c.b16 %v931, %v924
        %v1058 = vpack.c.b16 %v932, %v925
        %v1059 = vpack.c.b16 %v933, %v926
        %v1060 = vpack.c.b16 %v934, %v927
        %v1061 = vpack.c.b16 %v935, %v928
        %v1062 = vpack.c.b16 %v943, %v936
        %v1063 = vpack.c.b16 %v944, %v937
        %v1064 = vpack.c.b16 %v945, %v938
        %v1065 = vpack.c.b16 %v946, %v939
        %v1066 = vpack.c.b16 %v947, %v940
        %v1067 = vpack.c.b16 %v948, %v941
        %v1068 = vpack.c.b16 %v949, %v942
        %v1069 = vpack.c.b16 %v957, %v950
        %v1070 = vpack.c.b16 %v958, %v951
        %v1071 = vpack.c.b16 %v959, %v952
        %v1072 = vpack.c.b16 %v960, %v953
        %v1073 = vpack.c.b16 %v961, %v954
        %v1074 = vpack.c.b16 %v962, %v955
        %v1075 = vpack.c.b16 %v963, %v956
        %v1300 = vunpack.c.l.b16 %v494
        %v1301 = vunpack.c.h.b16 %v494
        %v1302 = vunpack.c.l.b16 %v495
        %v1303 = vunpack.c.h.b16 %v495
        %v1304 = vunpack.c.l.b16 %v496
        %v1305 = vunpack.c.h.b16 %v496
        %v1306 = vunpack.c.l.b16 %v497
        %v1307 = vunpack.c.h.b16 %v497
        %v1308 = vunpack.c.l.b16 %v498
        %v1309 = vunpack.c.h.b16 %v498
        %v1310 = vunpack.c.l.b16 %v499
        %v1311 = vunpack.c.h.b16 %v499
        %v1312 = vunpack.c.l.b16 %v500
        %v1313 = vunpack.c.h.b16 %v500
        %v1314 = vunpack.c.l.b16 %v501
        %v1315 = vunpack.c.h.b16 %v501
        %v1316 = vunpack.c.l.b16 %v502
        %v1317 = vunpack.c.h.b16 %v502
        %v1318 = vunpack.c.l.b16 %v503
        %v1319 = vunpack.c.h.b16 %v503
        %v1320 = vunpack.c.l.b16 %v504
        %v1321 = vunpack.c.h.b16 %v504
        %v1322 = vunpack.c.l.b16 %v505
        %v1323 = vunpack.c.h.b16 %v505
        %v1324 = vunpack.c.l.b16 %v506
        %v1325 = vunpack.c.h.b16 %v506
        %v1326 = vunpack.c.l.b16 %v507
        %v1327 = vunpack.c.h.b16 %v507
        %v1328 = vunpack.c.l.b16 %v508
        %v1329 = vunpack.c.h.b16 %v508
        %v1330 = vunpack.c.l.b16 %v509
        %v1331 = vunpack.c.h.b16 %v509
        %v1332 = vunpack.c.l.b16 %v510
        %v1333 = vunpack.c.h.b16 %v510
        %v1334 = vunpack.c.l.b16 %v511
        %v1335 = vunpack.c.h.b16 %v511
        %v1336 = vunpack.c.l.b16 %v512
        %v1337 = vunpack.c.h.b16 %v512
        %v1338 = vunpack.c.l.b16 %v513
        %v1339 = vunpack.c.h.b16 %v513
        %v1340 = vunpack.c.l.b16 %v514
        %v1341 = vunpack.c.h.b16 %v514
        %v1342 = vunpack.c.l.b16 %v515
        %v1343 = vunpack.c.h.b16 %v515
        %v1344 = vunpack.c.l.b16 %v516
        %v1345 = vunpack.c.h.b16 %v516
        %v1346 = vunpack.c.l.b16 %v517
        %v1347 = vunpack.c.h.b16 %v517
        %v1348 = vunpack.c.l.b16 %v518
        %v1349 = vunpack.c.h.b16 %v518
        %v1350 = vunpack.c.l.b16 %v519
        %v1351 = vunpack.c.h.b16 %v519
        %v1352 = vunpack.c.l.b16 %v520
        %v1353 = vunpack.c.h.b16 %v520
        %v1354 = vunpack.c.l.b16 %v521
        %v1355 = vunpack.c.h.b16 %v521
        %v1356 = vunpack.c.l.b16 %v522
        %v1357 = vunpack.c.h.b16 %v522
        %v1358 = vunpack.c.l.b16 %v523
        %v1359 = vunpack.c.h.b16 %v523
        %v1360 = vunpack.c.l.b16 %v524
        %v1361 = vunpack.c.h.b16 %v524
        %v1362 = vunpack.c.l.b16 %v525
        %v1363 = vunpack.c.h.b16 %v525
        %v1364 = vunpack.c.l.b16 %v526
        %v1365 = vunpack.c.h.b16 %v526
        %v1366 = vunpack.c.l.b16 %v527
        %v1367 = vunpack.c.h.b16 %v527
        %v1368 = vunpack.c.l.b16 %v528
        %v1369 = vunpack.c.h.b16 %v528
        %v1370 = vunpack.c.l.b16 %v529
        %v1371 = vunpack.c.h.b16 %v529
        %v1372 = vunpack.c.l.b16 %v530
        %v1373 = vunpack.c.h.b16 %v530
        %v1374 = vunpack.c.l.b16 %v531
        %v1375 = vunpack.c.h.b16 %v531
        %v1376 = vunpack.c.l.b16 %v532
        %v1377 = vunpack.c.h.b16 %v532
        %v1378 = vunpack.c.l.b16 %v533
        %v1379 = vunpack.c.h.b16 %v533
        %v1380 = vunpack.c.l.b16 %v534
        %v1381 = vunpack.c.h.b16 %v534
        %v1382 = vunpack.c.l.b16 %v535
        %v1383 = vunpack.c.h.b16 %v535
        %v1384 = vunpack.c.l.b16 %v536
        %v1385 = vunpack.c.h.b16 %v536
        %v1386 = vunpack.c.l.b16 %v537
        %v1387 = vunpack.c.h.b16 %v537
        %v1388 = vunpack.c.l.b16 %v538
        %v1389 = vunpack.c.h.b16 %v538
        %v1390 = vunpack.c.l.b16 %v539
        %v1391 = vunpack.c.h.b16 %v539
        %v1392 = vunpack.c.l.b16 %v540
        %v1393 = vunpack.c.h.b16 %v540
        %v1394 = vunpack.c.l.b16 %v541
        %v1395 = vunpack.c.h.b16 %v541
        %v1396 = vunpack.c.l.b16 %v542
        %v1397 = vunpack.c.h.b16 %v542
        %v1398 = vunpack.c.l.b16 %v543
        %v1399 = vunpack.c.h.b16 %v543
        %v1400 = vunpack.c.l.b16 %v544
        %v1401 = vunpack.c.h.b16 %v544
        %v1402 = vunpack.c.l.b16 %v545
        %v1403 = vunpack.c.h.b16 %v545
        %v1404 = vunpack.c.l.b16 %v546
        %v1405 = vunpack.c.h.b16 %v546
        %v1406 = vunpack.c.l.b16 %v547
        %v1407 = vunpack.c.h.b16 %v547
        %v1408 = vunpack.c.l.b16 %v548
        %v1409 = vunpack.c.h.b16 %v548
        %v1410 = vunpack.c.l.b16 %v549
        %v1411 = vunpack.c.h.b16 %v549
        %v1412 = vunpack.c.l.b16 %v550
        %v1413 = vunpack.c.h.b16 %v550
        %v1414 = vunpack.c.l.b16 %v551
        %v1415 = vunpack.c.h.b16 %v551
        %v1416 = vunpack.c.l.b16 %v552
        %v1417 = vunpack.c.h.b16 %v552
        %v1418 = vunpack.c.l.b16 %v553
        %v1419 = vunpack.c.h.b16 %v553
        %v1420 = vunpack.c.l.b16 %v554
        %v1421 = vunpack.c.h.b16 %v554
        %v1422 = vunpack.c.l.b16 %v555
        %v1423 = vunpack.c.h.b16 %v555
        %v1424 = vunpack.c.l.b16 %v556
        %v1425 = vunpack.c.h.b16 %v556
        %v1426 = vunpack.c.l.b16 %v557
        %v1427 = vunpack.c.h.b16 %v557
        %v1428 = vunpack.c.l.b16 %v558
        %v1429 = vunpack.c.h.b16 %v558
        %v1430 = vunpack.c.l.b16 %v559
        %v1431 = vunpack.c.h.b16 %v559
        %v1432 = vunpack.c.l.b16 %v560
        %v1433 = vunpack.c.h.b16 %v560
        %v1434 = vunpack.c.l.b16 %v561
        %v1435 = vunpack.c.h.b16 %v561
        %v1436 = vunpack.c.l.b16 %v562
        %v1437 = vunpack.c.h.b16 %v562
        %v1438 = vunpack.c.l.b16 %v563
        %v1439 = vunpack.c.h.b16 %v563
        %v1440 = vunpack.c.l.b16 %v564
        %v1441 = vunpack.c.h.b16 %v564
        %v1442 = vunpack.c.l.b16 %v565
        %v1443 = vunpack.c.h.b16 %v565
        %v1444 = vunpack.c.l.b16 %v566
        %v1445 = vunpack.c.h.b16 %v566
        %v1446 = vunpack.c.l.b16 %v567
        %v1447 = vunpack.c.h.b16 %v567
        %v1448 = vunpack.c.l.b16 %v568
        %v1449 = vunpack.c.h.b16 %v568
        %v1450 = vunpack.c.l.b16 %v569
        %v1451 = vunpack.c.h.b16 %v569
        %v1452 = vunpack.c.l.b16 %v570
        %v1453 = vunpack.c.h.b16 %v570
        %v1454 = vunpack.c.l.b16 %v571
        %v1455 = vunpack.c.h.b16 %v571
        %v1456 = vunpack.c.l.b16 %v572
        %v1457 = vunpack.c.h.b16 %v572
        %v1458 = vunpack.c.l.b16 %v573
        %v1459 = vunpack.c.h.b16 %v573
        %v1460 = vunpack.c.l.b16 %v574
        %v1461 = vunpack.c.h.b16 %v574
        %v1462 = vunpack.c.l.b16 %v575
        %v1463 = vunpack.c.h.b16 %v575
        %v1464 = vunpack.c.l.b16 %v576
        %v1465 = vunpack.c.h.b16 %v576
        %v1466 = vunpack.c.l.b16 %v577
        %v1467 = vunpack.c.h.b16 %v577
        %v1468 = vunpack.c.l.b16 %v578
        %v1469 = vunpack.c.h.b16 %v578
        %v1470 = vunpack.c.l.b16 %v579
        %v1471 = vunpack.c.h.b16 %v579
        %v1472 = vunpack.c.l.b16 %v580
        %v1473 = vunpack.c.h.b16 %v580
        %v1474 = vunpack.c.l.b16 %v581
        %v1475 = vunpack.c.h.b16 %v581
        %v1476 = vunpack.c.l.b16 %v582
        %v1477 = vunpack.c.h.b16 %v582
        %v1478 = vunpack.c.l.b16 %v583
        %v1479 = vunpack.c.h.b16 %v583
        %v1480 = vunpack.c.l.b16 %v584
        %v1481 = vunpack.c.h.b16 %v584
        %v1482 = vunpack.c.l.b16 %v585
        %v1483 = vunpack.c.h.b16 %v585
        %v1484 = vunpack.c.l.b16 %v586
        %v1485 = vunpack.c.h.b16 %v586
        %v1486 = vunpack.c.l.b16 %v587
        %v1487 = vunpack.c.h.b16 %v587
        %v1488 = vunpack.c.l.b16 %v588
        %v1489 = vunpack.c.h.b16 %v588
        %v1490 = vunpack.c.l.b16 %v589
        %v1491 = vunpack.c.h.b16 %v589
        %v1492 = vunpack.c.l.b16 %v590
        %v1493 = vunpack.c.h.b16 %v590
        %v1494 = vunpack.c.l.b16 %v591
        %v1495 = vunpack.c.h.b16 %v591
        %v1496 = vunpack.c.l.b16 %v592
        %v1497 = vunpack.c.h.b16 %v592
        %v1498 = vunpack.c.l.b16 %v593
        %v1499 = vunpack.c.h.b16 %v593
        %v1500 = vunpack.c.l.b16 %v594
        %v1501 = vunpack.c.h.b16 %v594
        %v1502 = vunpack.c.l.b16 %v595
        %v1503 = vunpack.c.h.b16 %v595
        %v1504 = vunpack.c.l.b16 %v596
        %v1505 = vunpack.c.h.b16 %v596
        %v1506 = vunpack.c.l.b16 %v597
        %v1507 = vunpack.c.h.b16 %v597
        %v1508 = vunpack.c.l.b16 %v598
        %v1509 = vunpack.c.h.b16 %v598
        %v1510 = vunpack.c.l.b16 %v599
        %v1511 = vunpack.c.h.b16 %v599
        %v1512 = vunpack.c.l.b16 %v600
        %v1513 = vunpack.c.h.b16 %v600
        %v1514 = vunpack.c.l.b16 %v601
        %v1515 = vunpack.c.h.b16 %v601
        %v1516 = vunpack.c.l.b16 %v602
        %v1517 = vunpack.c.h.b16 %v602
        %v1518 = vunpack.c.l.b16 %v603
        %v1519 = vunpack.c.h.b16 %v603
        %v1520 = vunpack.c.l.b16 %v604
        %v1521 = vunpack.c.h.b16 %v604
        %v1522 = vunpack.c.l.b16 %v605
        %v1523 = vunpack.c.h.b16 %v605
        %v1524 = vpack.c.b16 %v1302, %v1300
        %v1525 = vpack.c.b16 %v1303, %v1301
        %v1526 = vpack.c.b16 %v1306, %v1304
        %v1527 = vpack.c.b16 %v1307, %v1305
        %v1528 = vpack.c.b16 %v1310, %v1308
        %v1529 = vpack.c.b16 %v1311, %v1309
        %v1530 = vpack.c.b16 %v1314, %v1312
        %v1531 = vpack.c.b16 %v1315, %v1313
        %v1532 = vpack.c.b16 %v1318, %v1316
        %v1533 = vpack.c.b16 %v1319, %v1317
        %v1534 = vpack.c.b16 %v1322, %v1320
        %v1535 = vpack.c.b16 %v1323, %v1321
        %v1536 = vpack.c.b16 %v1326, %v1324
        %v1537 = vpack.c.b16 %v1327, %v1325
        %v1538 = vpack.c.b16 %v1330, %v1328
        %v1539 = vpack.c.b16 %v1331, %v1329
        %v1540 = vpack.c.b16 %v1334, %v1332
        %v1541 = vpack.c.b16 %v1335, %v1333
        %v1542 = vpack.c.b16 %v1338, %v1336
        %v1543 = vpack.c.b16 %v1339, %v1337
        %v1544 = vpack.c.b16 %v1342, %v1340
        %v1545 = vpack.c.b16 %v1343, %v1341
        %v1546 = vpack.c.b16 %v1346, %v1344
        %v1547 = vpack.c.b16 %v1347, %v1345
        %v1548 = vpack.c.b16 %v1350, %v1348
        %v1549 = vpack.c.b16 %v1351, %v1349
        %v1550 = vpack.c.b16 %v1354, %v1352
        %v1551 = vpack.c.b16 %v1355, %v1353
        %v1552 = vpack.c.b16 %v1358, %v1356
        %v1553 = vpack.c.b16 %v1359, %v1357
        %v1554 = vpack.c.b16 %v1362, %v1360
        %v1555 = vpack.c.b16 %v1363, %v1361
        %v1556 = vpack.c.b16 %v1366, %v1364
        %v1557 = vpack.c.b16 %v1367, %v1365
        %v1558 = vpack.c.b16 %v1370, %v1368
        %v1559 = vpack.c.b16 %v1371, %v1369
        %v1560 = vpack.c.b16 %v1374, %v1372
        %v1561 = vpack.c.b16 %v1375, %v1373
        %v1562 = vpack.c.b16 %v1378, %v1376
        %v1563 = vpack.c.b16 %v1379, %v1377
        %v1564 = vpack.c.b16 %v1382, %v1380
        %v1565 = vpack.c.b16 %v1383, %v1381
        %v1566 = vpack.c.b16 %v1386, %v1384
        %v1567 = vpack.c.b16 %v1387, %v1385
        %v1568 = vpack.c.b16 %v1390, %v1388
        %v1569 = vpack.c.b16 %v1391, %v1389
        %v1570 = vpack.c.b16 %v1394, %v1392
        %v1571 = vpack.c.b16 %v1395, %v1393
        %v1572 = vpack.c.b16 %v1398, %v1396
        %v1573 = vpack.c.b16 %v1399, %v1397
        %v1574 = vpack.c.b16 %v1402, %v1400
        %v1575 = vpack.c.b16 %v1403, %v1401
        %v1576 = vpack.c.b16 %v1406, %v1404
        %v1577 = vpack.c.b16 %v1407, %v1405
        %v1578 = vpack.c.b16 %v1410, %v1408
        %v1579 = vpack.c.b16 %v1411, %v1409
        %v1580 = vpack.c.b16 %v1414, %v1412
        %v1581 = vpack.c.b16 %v1415, %v1413
        %v1582 = vpack.c.b16 %v1418, %v1416
        %v1583 = vpack.c.b16 %v1419, %v1417
        %v1584 = vpack.c.b16 %v1422, %v1420
        %v1585 = vpack.c.b16 %v1423, %v1421
        %v1586 = vpack.c.b16 %v1426, %v1424
        %v1587 = vpack.c.b16 %v1427, %v1425
        %v1588 = vpack.c.b16 %v1430, %v1428
        %v1589 = vpack.c.b16 %v1431, %v1429
        %v1590 = vpack.c.b16 %v1434, %v1432
        %v1591 = vpack.c.b16 %v1435, %v1433
        %v1592 = vpack.c.b16 %v1438, %v1436
        %v1593 = vpack.c.b16 %v1439, %v1437
        %v1594 = vpack.c.b16 %v1442, %v1440
        %v1595 = vpack.c.b16 %v1443, %v1441
        %v1596 = vpack.c.b16 %v1446, %v1444
        %v1597 = vpack.c.b16 %v1447, %v1445
        %v1598 = vpack.c.b16 %v1450, %v1448
        %v1599 = vpack.c.b16 %v1451, %v1449
        %v1600 = vpack.c.b16 %v1454, %v1452
        %v1601 = vpack.c.b16 %v1455, %v1453
        %v1602 = vpack.c.b16 %v1458, %v1456
        %v1603 = vpack.c.b16 %v1459, %v1457
        %v1604 = vpack.c.b16 %v1462, %v1460
        %v1605 = vpack.c.b16 %v1463, %v1461
        %v1606 = vpack.c.b16 %v1466, %v1464
        %v1607 = vpack.c.b16 %v1467, %v1465
        %v1608 = vpack.c.b16 %v1470, %v1468
        %v1609 = vpack.c.b16 %v1471, %v1469
        %v1610 = vpack.c.b16 %v1474, %v1472
        %v1611 = vpack.c.b16 %v1475, %v1473
        %v1612 = vpack.c.b16 %v1478, %v1476
        %v1613 = vpack.c.b16 %v1479, %v1477
        %v1614 = vpack.c.b16 %v1482, %v1480
        %v1615 = vpack.c.b16 %v1483, %v1481
        %v1616 = vpack.c.b16 %v1486, %v1484
        %v1617 = vpack.c.b16 %v1487, %v1485
        %v1618 = vpack.c.b16 %v1490, %v1488
        %v1619 = vpack.c.b16 %v1491, %v1489
        %v1620 = vpack.c.b16 %v1494, %v1492
        %v1621 = vpack.c.b16 %v1495, %v1493
        %v1622 = vpack.c.b16 %v1498, %v1496
        %v1623 = vpack.c.b16 %v1499, %v1497
        %v1624 = vpack.c.b16 %v1502, %v1500
        %v1625 = vpack.c.b16 %v1503, %v1501
        %v1626 = vpack.c.b16 %v1506, %v1504
        %v1627 = vpack.c.b16 %v1507, %v1505
        %v1628 = vpack.c.b16 %v1510, %v1508
        %v1629 = vpack.c.b16 %v1511, %v1509
        %v1630 = vpack.c.b16 %v1514, %v1512
        %v1631 = vpack.c.b16 %v1515, %v1513
        %v1632 = vpack.c.b16 %v1518, %v1516
        %v1633 = vpack.c.b16 %v1519, %v1517
        %v1634 = vpack.c.b16 %v1522, %v1520
        %v1635 = vpack.c.b16 %v1523, %v1521
        %1748 = vmatpush.bf16.msra.mxu0 %v1538
        %1749 = vmatpush.bf16.msra.mxu0 %v1536
        %1750 = vmatpush.bf16.msra.mxu0 %v1534
        %1751 = vmatpush.bf16.msra.mxu0 %v1532
        %1752 = vmatpush.bf16.msra.mxu0 %v1530
        %1753 = vmatpush.bf16.msra.mxu0 %v1528
        %1754 = vmatpush.bf16.msra.mxu0 %v1526
        %1755 = vmatpush.bf16.msra.mxu0 %v1524
        %1756 = vmatmul.bf16.gmra.mxu0 %v964
        %v1757 = vpop.f32.mrf.mxu0
        %v1758 = vadd.f32 %v608, %v1757
        %v1759 = vpop.f32.mrf.mxu0
        %v1760 = vadd.f32 %v608, %v1759
        %1761 = vmatmul.bf16.gmra.mxu0 %v971
        %v1762 = vpop.f32.mrf.mxu0
        %v1763 = vadd.f32 %v608, %v1762
        %v1764 = vpop.f32.mrf.mxu0
        %v1765 = vadd.f32 %v608, %v1764
        %1766 = vmatmul.bf16.gmra.mxu0 %v978
        %v1767 = vpop.f32.mrf.mxu0
        %v1768 = vadd.f32 %v608, %v1767
        %v1769 = vpop.f32.mrf.mxu0
        %v1770 = vadd.f32 %v608, %v1769
        %1771 = vmatmul.bf16.gmra.mxu0 %v985
        %v1772 = vpop.f32.mrf.mxu0
        %v1773 = vadd.f32 %v608, %v1772
        %v1774 = vpop.f32.mrf.mxu0
        %v1775 = vadd.f32 %v608, %v1774
        %1776 = vmatmul.bf16.gmra.mxu0 %v992
        %v1777 = vpop.f32.mrf.mxu0
        %v1778 = vadd.f32 %v608, %v1777
        %v1779 = vpop.f32.mrf.mxu0
        %v1780 = vadd.f32 %v608, %v1779
        %1781 = vmatmul.bf16.gmra.mxu0 %v999
        %v1782 = vpop.f32.mrf.mxu0
        %v1783 = vadd.f32 %v608, %v1782
        %v1784 = vpop.f32.mrf.mxu0
        %v1785 = vadd.f32 %v608, %v1784
        %1786 = vmatmul.bf16.gmra.mxu0 %v1006
        %v1787 = vpop.f32.mrf.mxu0
        %v1788 = vadd.f32 %v608, %v1787
        %v1789 = vpop.f32.mrf.mxu0
        %v1790 = vadd.f32 %v608, %v1789
        %1791 = vmatmul.bf16.gmra.mxu0 %v1013
        %v1792 = vpop.f32.mrf.mxu0
        %v1793 = vadd.f32 %v608, %v1792
        %v1794 = vpop.f32.mrf.mxu0
        %v1795 = vadd.f32 %v608, %v1794
        %1796 = vmatmul.bf16.gmra.mxu0 %v1020
        %v1797 = vpop.f32.mrf.mxu0
        %v1798 = vadd.f32 %v608, %v1797
        %v1799 = vpop.f32.mrf.mxu0
        %v1800 = vadd.f32 %v608, %v1799
        %1801 = vmatmul.bf16.gmra.mxu0 %v1027
        %v1802 = vpop.f32.mrf.mxu0
        %v1803 = vadd.f32 %v608, %v1802
        %v1804 = vpop.f32.mrf.mxu0
        %v1805 = vadd.f32 %v608, %v1804
        %1806 = vmatmul.bf16.gmra.mxu0 %v1034
        %v1807 = vpop.f32.mrf.mxu0
        %v1808 = vadd.f32 %v608, %v1807
        %v1809 = vpop.f32.mrf.mxu0
        %v1810 = vadd.f32 %v608, %v1809
        %1811 = vmatmul.bf16.gmra.mxu0 %v1041
        %v1812 = vpop.f32.mrf.mxu0
        %v1813 = vadd.f32 %v608, %v1812
        %v1814 = vpop.f32.mrf.mxu0
        %v1815 = vadd.f32 %v608, %v1814
        %1816 = vmatmul.bf16.gmra.mxu0 %v1048
        %v1817 = vpop.f32.mrf.mxu0
        %v1818 = vadd.f32 %v608, %v1817
        %v1819 = vpop.f32.mrf.mxu0
        %v1820 = vadd.f32 %v608, %v1819
        %1821 = vmatmul.bf16.gmra.mxu0 %v1055
        %v1822 = vpop.f32.mrf.mxu0
        %v1823 = vadd.f32 %v608, %v1822
        %v1824 = vpop.f32.mrf.mxu0
        %v1825 = vadd.f32 %v608, %v1824
        %1826 = vmatmul.bf16.gmra.mxu0 %v1062
        %v1827 = vpop.f32.mrf.mxu0
        %v1828 = vadd.f32 %v608, %v1827
        %v1829 = vpop.f32.mrf.mxu0
        %v1830 = vadd.f32 %v608, %v1829
        %1831 = vmatmul.bf16.gmra.mxu0 %v1069
        %v1832 = vpop.f32.mrf.mxu0
        %v1833 = vadd.f32 %v608, %v1832
        %v1834 = vpop.f32.mrf.mxu0
        %v1835 = vadd.f32 %v608, %v1834
        %1836 = vdwg.mxu0
        %1837 = vmatpush.bf16.msra.mxu0 %v1554
        %1838 = vmatpush.bf16.msra.mxu0 %v1552
        %1839 = vmatpush.bf16.msra.mxu0 %v1550
        %1840 = vmatpush.bf16.msra.mxu0 %v1548
        %1841 = vmatpush.bf16.msra.mxu0 %v1546
        %1842 = vmatpush.bf16.msra.mxu0 %v1544
        %1843 = vmatpush.bf16.msra.mxu0 %v1542
        %1844 = vmatpush.bf16.msra.mxu0 %v1540
        %1845 = vmatmul.bf16.gmra.mxu0 %v965
        %v1846 = vpop.f32.mrf.mxu0
        %v1847 = vadd.f32 %v1758, %v1846
        %v1848 = vpop.f32.mrf.mxu0
        %v1849 = vadd.f32 %v1760, %v1848
        %1850 = vmatmul.bf16.gmra.mxu0 %v972
        %v1851 = vpop.f32.mrf.mxu0
        %v1852 = vadd.f32 %v1763, %v1851
        %v1853 = vpop.f32.mrf.mxu0
        %v1854 = vadd.f32 %v1765, %v1853
        %1855 = vmatmul.bf16.gmra.mxu0 %v979
        %v1856 = vpop.f32.mrf.mxu0
        %v1857 = vadd.f32 %v1768, %v1856
        %v1858 = vpop.f32.mrf.mxu0
        %v1859 = vadd.f32 %v1770, %v1858
        %1860 = vmatmul.bf16.gmra.mxu0 %v986
        %v1861 = vpop.f32.mrf.mxu0
        %v1862 = vadd.f32 %v1773, %v1861
        %v1863 = vpop.f32.mrf.mxu0
        %v1864 = vadd.f32 %v1775, %v1863
        %1865 = vmatmul.bf16.gmra.mxu0 %v993
        %v1866 = vpop.f32.mrf.mxu0
        %v1867 = vadd.f32 %v1778, %v1866
        %v1868 = vpop.f32.mrf.mxu0
        %v1869 = vadd.f32 %v1780, %v1868
        %1870 = vmatmul.bf16.gmra.mxu0 %v1000
        %v1871 = vpop.f32.mrf.mxu0
        %v1872 = vadd.f32 %v1783, %v1871
        %v1873 = vpop.f32.mrf.mxu0
        %v1874 = vadd.f32 %v1785, %v1873
        %1875 = vmatmul.bf16.gmra.mxu0 %v1007
        %v1876 = vpop.f32.mrf.mxu0
        %v1877 = vadd.f32 %v1788, %v1876
        %v1878 = vpop.f32.mrf.mxu0
        %v1879 = vadd.f32 %v1790, %v1878
        %1880 = vmatmul.bf16.gmra.mxu0 %v1014
        %v1881 = vpop.f32.mrf.mxu0
        %v1882 = vadd.f32 %v1793, %v1881
        %v1883 = vpop.f32.mrf.mxu0
        %v1884 = vadd.f32 %v1795, %v1883
        %1885 = vmatmul.bf16.gmra.mxu0 %v1021
        %v1886 = vpop.f32.mrf.mxu0
        %v1887 = vadd.f32 %v1798, %v1886
        %v1888 = vpop.f32.mrf.mxu0
        %v1889 = vadd.f32 %v1800, %v1888
        %1890 = vmatmul.bf16.gmra.mxu0 %v1028
        %v1891 = vpop.f32.mrf.mxu0
        %v1892 = vadd.f32 %v1803, %v1891
        %v1893 = vpop.f32.mrf.mxu0
        %v1894 = vadd.f32 %v1805, %v1893
        %1895 = vmatmul.bf16.gmra.mxu0 %v1035
        %v1896 = vpop.f32.mrf.mxu0
        %v1897 = vadd.f32 %v1808, %v1896
        %v1898 = vpop.f32.mrf.mxu0
        %v1899 = vadd.f32 %v1810, %v1898
        %1900 = vmatmul.bf16.gmra.mxu0 %v1042
        %v1901 = vpop.f32.mrf.mxu0
        %v1902 = vadd.f32 %v1813, %v1901
        %v1903 = vpop.f32.mrf.mxu0
        %v1904 = vadd.f32 %v1815, %v1903
        %1905 = vmatmul.bf16.gmra.mxu0 %v1049
        %v1906 = vpop.f32.mrf.mxu0
        %v1907 = vadd.f32 %v1818, %v1906
        %v1908 = vpop.f32.mrf.mxu0
        %v1909 = vadd.f32 %v1820, %v1908
        %1910 = vmatmul.bf16.gmra.mxu0 %v1056
        %v1911 = vpop.f32.mrf.mxu0
        %v1912 = vadd.f32 %v1823, %v1911
        %v1913 = vpop.f32.mrf.mxu0
        %v1914 = vadd.f32 %v1825, %v1913
        %1915 = vmatmul.bf16.gmra.mxu0 %v1063
        %v1916 = vpop.f32.mrf.mxu0
        %v1917 = vadd.f32 %v1828, %v1916
        %v1918 = vpop.f32.mrf.mxu0
        %v1919 = vadd.f32 %v1830, %v1918
        %1920 = vmatmul.bf16.gmra.mxu0 %v1070
        %v1921 = vpop.f32.mrf.mxu0
        %v1922 = vadd.f32 %v1833, %v1921
        %v1923 = vpop.f32.mrf.mxu0
        %v1924 = vadd.f32 %v1835, %v1923
        %1925 = vdwg.mxu0
        %1926 = vmatpush.bf16.msra.mxu0 %v1570
        %1927 = vmatpush.bf16.msra.mxu0 %v1568
        %1928 = vmatpush.bf16.msra.mxu0 %v1566
        %1929 = vmatpush.bf16.msra.mxu0 %v1564
        %1930 = vmatpush.bf16.msra.mxu0 %v1562
        %1931 = vmatpush.bf16.msra.mxu0 %v1560
        %1932 = vmatpush.bf16.msra.mxu0 %v1558
        %1933 = vmatpush.bf16.msra.mxu0 %v1556
        %1934 = vmatmul.bf16.gmra.mxu0 %v966
        %v1935 = vpop.f32.mrf.mxu0
        %v1936 = vadd.f32 %v1847, %v1935
        %v1937 = vpop.f32.mrf.mxu0
        %v1938 = vadd.f32 %v1849, %v1937
        %1939 = vmatmul.bf16.gmra.mxu0 %v973
        %v1940 = vpop.f32.mrf.mxu0
        %v1941 = vadd.f32 %v1852, %v1940
        %v1942 = vpop.f32.mrf.mxu0
        %v1943 = vadd.f32 %v1854, %v1942
        %1944 = vmatmul.bf16.gmra.mxu0 %v980
        %v1945 = vpop.f32.mrf.mxu0
        %v1946 = vadd.f32 %v1857, %v1945
        %v1947 = vpop.f32.mrf.mxu0
        %v1948 = vadd.f32 %v1859, %v1947
        %1949 = vmatmul.bf16.gmra.mxu0 %v987
        %v1950 = vpop.f32.mrf.mxu0
        %v1951 = vadd.f32 %v1862, %v1950
        %v1952 = vpop.f32.mrf.mxu0
        %v1953 = vadd.f32 %v1864, %v1952
        %1954 = vmatmul.bf16.gmra.mxu0 %v994
        %v1955 = vpop.f32.mrf.mxu0
        %v1956 = vadd.f32 %v1867, %v1955
        %v1957 = vpop.f32.mrf.mxu0
        %v1958 = vadd.f32 %v1869, %v1957
        %1959 = vmatmul.bf16.gmra.mxu0 %v1001
        %v1960 = vpop.f32.mrf.mxu0
        %v1961 = vadd.f32 %v1872, %v1960
        %v1962 = vpop.f32.mrf.mxu0
        %v1963 = vadd.f32 %v1874, %v1962
        %1964 = vmatmul.bf16.gmra.mxu0 %v1008
        %v1965 = vpop.f32.mrf.mxu0
        %v1966 = vadd.f32 %v1877, %v1965
        %v1967 = vpop.f32.mrf.mxu0
        %v1968 = vadd.f32 %v1879, %v1967
        %1969 = vmatmul.bf16.gmra.mxu0 %v1015
        %v1970 = vpop.f32.mrf.mxu0
        %v1971 = vadd.f32 %v1882, %v1970
        %v1972 = vpop.f32.mrf.mxu0
        %v1973 = vadd.f32 %v1884, %v1972
        %1974 = vmatmul.bf16.gmra.mxu0 %v1022
        %v1975 = vpop.f32.mrf.mxu0
        %v1976 = vadd.f32 %v1887, %v1975
        %v1977 = vpop.f32.mrf.mxu0
        %v1978 = vadd.f32 %v1889, %v1977
        %1979 = vmatmul.bf16.gmra.mxu0 %v1029
        %v1980 = vpop.f32.mrf.mxu0
        %v1981 = vadd.f32 %v1892, %v1980
        %v1982 = vpop.f32.mrf.mxu0
        %v1983 = vadd.f32 %v1894, %v1982
        %1984 = vmatmul.bf16.gmra.mxu0 %v1036
        %v1985 = vpop.f32.mrf.mxu0
        %v1986 = vadd.f32 %v1897, %v1985
        %v1987 = vpop.f32.mrf.mxu0
        %v1988 = vadd.f32 %v1899, %v1987
        %1989 = vmatmul.bf16.gmra.mxu0 %v1043
        %v1990 = vpop.f32.mrf.mxu0
        %v1991 = vadd.f32 %v1902, %v1990
        %v1992 = vpop.f32.mrf.mxu0
        %v1993 = vadd.f32 %v1904, %v1992
        %1994 = vmatmul.bf16.gmra.mxu0 %v1050
        %v1995 = vpop.f32.mrf.mxu0
        %v1996 = vadd.f32 %v1907, %v1995
        %v1997 = vpop.f32.mrf.mxu0
        %v1998 = vadd.f32 %v1909, %v1997
        %1999 = vmatmul.bf16.gmra.mxu0 %v1057
        %v2000 = vpop.f32.mrf.mxu0
        %v2001 = vadd.f32 %v1912, %v2000
        %v2002 = vpop.f32.mrf.mxu0
        %v2003 = vadd.f32 %v1914, %v2002
        %2004 = vmatmul.bf16.gmra.mxu0 %v1064
        %v2005 = vpop.f32.mrf.mxu0
        %v2006 = vadd.f32 %v1917, %v2005
        %v2007 = vpop.f32.mrf.mxu0
        %v2008 = vadd.f32 %v1919, %v2007
        %2009 = vmatmul.bf16.gmra.mxu0 %v1071
        %v2010 = vpop.f32.mrf.mxu0
        %v2011 = vadd.f32 %v1922, %v2010
        %v2012 = vpop.f32.mrf.mxu0
        %v2013 = vadd.f32 %v1924, %v2012
        %2014 = vdwg.mxu0
        %2015 = vmatpush.bf16.msra.mxu0 %v1586
        %2016 = vmatpush.bf16.msra.mxu0 %v1584
        %2017 = vmatpush.bf16.msra.mxu0 %v1582
        %2018 = vmatpush.bf16.msra.mxu0 %v1580
        %2019 = vmatpush.bf16.msra.mxu0 %v1578
        %2020 = vmatpush.bf16.msra.mxu0 %v1576
        %2021 = vmatpush.bf16.msra.mxu0 %v1574
        %2022 = vmatpush.bf16.msra.mxu0 %v1572
        %2023 = vmatmul.bf16.gmra.mxu0 %v967
        %v2024 = vpop.f32.mrf.mxu0
        %v2025 = vadd.f32 %v1936, %v2024
        %v2026 = vpop.f32.mrf.mxu0
        %v2027 = vadd.f32 %v1938, %v2026
        %2028 = vmatmul.bf16.gmra.mxu0 %v974
        %v2029 = vpop.f32.mrf.mxu0
        %v2030 = vadd.f32 %v1941, %v2029
        %v2031 = vpop.f32.mrf.mxu0
        %v2032 = vadd.f32 %v1943, %v2031
        %2033 = vmatmul.bf16.gmra.mxu0 %v981
        %v2034 = vpop.f32.mrf.mxu0
        %v2035 = vadd.f32 %v1946, %v2034
        %v2036 = vpop.f32.mrf.mxu0
        %v2037 = vadd.f32 %v1948, %v2036
        %2038 = vmatmul.bf16.gmra.mxu0 %v988
        %v2039 = vpop.f32.mrf.mxu0
        %v2040 = vadd.f32 %v1951, %v2039
        %v2041 = vpop.f32.mrf.mxu0
        %v2042 = vadd.f32 %v1953, %v2041
        %2043 = vmatmul.bf16.gmra.mxu0 %v995
        %v2044 = vpop.f32.mrf.mxu0
        %v2045 = vadd.f32 %v1956, %v2044
        %v2046 = vpop.f32.mrf.mxu0
        %v2047 = vadd.f32 %v1958, %v2046
        %2048 = vmatmul.bf16.gmra.mxu0 %v1002
        %v2049 = vpop.f32.mrf.mxu0
        %v2050 = vadd.f32 %v1961, %v2049
        %v2051 = vpop.f32.mrf.mxu0
        %v2052 = vadd.f32 %v1963, %v2051
        %2053 = vmatmul.bf16.gmra.mxu0 %v1009
        %v2054 = vpop.f32.mrf.mxu0
        %v2055 = vadd.f32 %v1966, %v2054
        %v2056 = vpop.f32.mrf.mxu0
        %v2057 = vadd.f32 %v1968, %v2056
        %2058 = vmatmul.bf16.gmra.mxu0 %v1016
        %v2059 = vpop.f32.mrf.mxu0
        %v2060 = vadd.f32 %v1971, %v2059
        %v2061 = vpop.f32.mrf.mxu0
        %v2062 = vadd.f32 %v1973, %v2061
        %2063 = vmatmul.bf16.gmra.mxu0 %v1023
        %v2064 = vpop.f32.mrf.mxu0
        %v2065 = vadd.f32 %v1976, %v2064
        %v2066 = vpop.f32.mrf.mxu0
        %v2067 = vadd.f32 %v1978, %v2066
        %2068 = vmatmul.bf16.gmra.mxu0 %v1030
        %v2069 = vpop.f32.mrf.mxu0
        %v2070 = vadd.f32 %v1981, %v2069
        %v2071 = vpop.f32.mrf.mxu0
        %v2072 = vadd.f32 %v1983, %v2071
        %2073 = vmatmul.bf16.gmra.mxu0 %v1037
        %v2074 = vpop.f32.mrf.mxu0
        %v2075 = vadd.f32 %v1986, %v2074
        %v2076 = vpop.f32.mrf.mxu0
        %v2077 = vadd.f32 %v1988, %v2076
        %2078 = vmatmul.bf16.gmra.mxu0 %v1044
        %v2079 = vpop.f32.mrf.mxu0
        %v2080 = vadd.f32 %v1991, %v2079
        %v2081 = vpop.f32.mrf.mxu0
        %v2082 = vadd.f32 %v1993, %v2081
        %2083 = vmatmul.bf16.gmra.mxu0 %v1051
        %v2084 = vpop.f32.mrf.mxu0
        %v2085 = vadd.f32 %v1996, %v2084
        %v2086 = vpop.f32.mrf.mxu0
        %v2087 = vadd.f32 %v1998, %v2086
        %2088 = vmatmul.bf16.gmra.mxu0 %v1058
        %v2089 = vpop.f32.mrf.mxu0
        %v2090 = vadd.f32 %v2001, %v2089
        %v2091 = vpop.f32.mrf.mxu0
        %v2092 = vadd.f32 %v2003, %v2091
        %2093 = vmatmul.bf16.gmra.mxu0 %v1065
        %v2094 = vpop.f32.mrf.mxu0
        %v2095 = vadd.f32 %v2006, %v2094
        %v2096 = vpop.f32.mrf.mxu0
        %v2097 = vadd.f32 %v2008, %v2096
        %2098 = vmatmul.bf16.gmra.mxu0 %v1072
        %v2099 = vpop.f32.mrf.mxu0
        %v2100 = vadd.f32 %v2011, %v2099
        %v2101 = vpop.f32.mrf.mxu0
        %v2102 = vadd.f32 %v2013, %v2101
        %2103 = vdwg.mxu0
        %2104 = vmatpush.bf16.msra.mxu0 %v1602
        %2105 = vmatpush.bf16.msra.mxu0 %v1600
        %2106 = vmatpush.bf16.msra.mxu0 %v1598
        %2107 = vmatpush.bf16.msra.mxu0 %v1596
        %2108 = vmatpush.bf16.msra.mxu0 %v1594
        %2109 = vmatpush.bf16.msra.mxu0 %v1592
        %2110 = vmatpush.bf16.msra.mxu0 %v1590
        %2111 = vmatpush.bf16.msra.mxu0 %v1588
        %2112 = vmatmul.bf16.gmra.mxu0 %v968
        %v2113 = vpop.f32.mrf.mxu0
        %v2114 = vadd.f32 %v2025, %v2113
        %v2115 = vpop.f32.mrf.mxu0
        %v2116 = vadd.f32 %v2027, %v2115
        %2117 = vmatmul.bf16.gmra.mxu0 %v975
        %v2118 = vpop.f32.mrf.mxu0
        %v2119 = vadd.f32 %v2030, %v2118
        %v2120 = vpop.f32.mrf.mxu0
        %v2121 = vadd.f32 %v2032, %v2120
        %2122 = vmatmul.bf16.gmra.mxu0 %v982
        %v2123 = vpop.f32.mrf.mxu0
        %v2124 = vadd.f32 %v2035, %v2123
        %v2125 = vpop.f32.mrf.mxu0
        %v2126 = vadd.f32 %v2037, %v2125
        %2127 = vmatmul.bf16.gmra.mxu0 %v989
        %v2128 = vpop.f32.mrf.mxu0
        %v2129 = vadd.f32 %v2040, %v2128
        %v2130 = vpop.f32.mrf.mxu0
        %v2131 = vadd.f32 %v2042, %v2130
        %2132 = vmatmul.bf16.gmra.mxu0 %v996
        %v2133 = vpop.f32.mrf.mxu0
        %v2134 = vadd.f32 %v2045, %v2133
        %v2135 = vpop.f32.mrf.mxu0
        %v2136 = vadd.f32 %v2047, %v2135
        %2137 = vmatmul.bf16.gmra.mxu0 %v1003
        %v2138 = vpop.f32.mrf.mxu0
        %v2139 = vadd.f32 %v2050, %v2138
        %v2140 = vpop.f32.mrf.mxu0
        %v2141 = vadd.f32 %v2052, %v2140
        %2142 = vmatmul.bf16.gmra.mxu0 %v1010
        %v2143 = vpop.f32.mrf.mxu0
        %v2144 = vadd.f32 %v2055, %v2143
        %v2145 = vpop.f32.mrf.mxu0
        %v2146 = vadd.f32 %v2057, %v2145
        %2147 = vmatmul.bf16.gmra.mxu0 %v1017
        %v2148 = vpop.f32.mrf.mxu0
        %v2149 = vadd.f32 %v2060, %v2148
        %v2150 = vpop.f32.mrf.mxu0
        %v2151 = vadd.f32 %v2062, %v2150
        %2152 = vmatmul.bf16.gmra.mxu0 %v1024
        %v2153 = vpop.f32.mrf.mxu0
        %v2154 = vadd.f32 %v2065, %v2153
        %v2155 = vpop.f32.mrf.mxu0
        %v2156 = vadd.f32 %v2067, %v2155
        %2157 = vmatmul.bf16.gmra.mxu0 %v1031
        %v2158 = vpop.f32.mrf.mxu0
        %v2159 = vadd.f32 %v2070, %v2158
        %v2160 = vpop.f32.mrf.mxu0
        %v2161 = vadd.f32 %v2072, %v2160
        %2162 = vmatmul.bf16.gmra.mxu0 %v1038
        %v2163 = vpop.f32.mrf.mxu0
        %v2164 = vadd.f32 %v2075, %v2163
        %v2165 = vpop.f32.mrf.mxu0
        %v2166 = vadd.f32 %v2077, %v2165
        %2167 = vmatmul.bf16.gmra.mxu0 %v1045
        %v2168 = vpop.f32.mrf.mxu0
        %v2169 = vadd.f32 %v2080, %v2168
        %v2170 = vpop.f32.mrf.mxu0
        %v2171 = vadd.f32 %v2082, %v2170
        %2172 = vmatmul.bf16.gmra.mxu0 %v1052
        %v2173 = vpop.f32.mrf.mxu0
        %v2174 = vadd.f32 %v2085, %v2173
        %v2175 = vpop.f32.mrf.mxu0
        %v2176 = vadd.f32 %v2087, %v2175
        %2177 = vmatmul.bf16.gmra.mxu0 %v1059
        %v2178 = vpop.f32.mrf.mxu0
        %v2179 = vadd.f32 %v2090, %v2178
        %v2180 = vpop.f32.mrf.mxu0
        %v2181 = vadd.f32 %v2092, %v2180
        %2182 = vmatmul.bf16.gmra.mxu0 %v1066
        %v2183 = vpop.f32.mrf.mxu0
        %v2184 = vadd.f32 %v2095, %v2183
        %v2185 = vpop.f32.mrf.mxu0
        %v2186 = vadd.f32 %v2097, %v2185
        %2187 = vmatmul.bf16.gmra.mxu0 %v1073
        %v2188 = vpop.f32.mrf.mxu0
        %v2189 = vadd.f32 %v2100, %v2188
        %v2190 = vpop.f32.mrf.mxu0
        %v2191 = vadd.f32 %v2102, %v2190
        %2192 = vdwg.mxu0
        %2193 = vmatpush.bf16.msra.mxu0 %v1618
        %2194 = vmatpush.bf16.msra.mxu0 %v1616
        %2195 = vmatpush.bf16.msra.mxu0 %v1614
        %2196 = vmatpush.bf16.msra.mxu0 %v1612
        %2197 = vmatpush.bf16.msra.mxu0 %v1610
        %2198 = vmatpush.bf16.msra.mxu0 %v1608
        %2199 = vmatpush.bf16.msra.mxu0 %v1606
        %2200 = vmatpush.bf16.msra.mxu0 %v1604
        %2201 = vmatmul.bf16.gmra.mxu0 %v969
        %v2202 = vpop.f32.mrf.mxu0
        %v2203 = vadd.f32 %v2114, %v2202
        %v2204 = vpop.f32.mrf.mxu0
        %v2205 = vadd.f32 %v2116, %v2204
        %2206 = vmatmul.bf16.gmra.mxu0 %v976
        %v2207 = vpop.f32.mrf.mxu0
        %v2208 = vadd.f32 %v2119, %v2207
        %v2209 = vpop.f32.mrf.mxu0
        %v2210 = vadd.f32 %v2121, %v2209
        %2211 = vmatmul.bf16.gmra.mxu0 %v983
        %v2212 = vpop.f32.mrf.mxu0
        %v2213 = vadd.f32 %v2124, %v2212
        %v2214 = vpop.f32.mrf.mxu0
        %v2215 = vadd.f32 %v2126, %v2214
        %2216 = vmatmul.bf16.gmra.mxu0 %v990
        %v2217 = vpop.f32.mrf.mxu0
        %v2218 = vadd.f32 %v2129, %v2217
        %v2219 = vpop.f32.mrf.mxu0
        %v2220 = vadd.f32 %v2131, %v2219
        %2221 = vmatmul.bf16.gmra.mxu0 %v997
        %v2222 = vpop.f32.mrf.mxu0
        %v2223 = vadd.f32 %v2134, %v2222
        %v2224 = vpop.f32.mrf.mxu0
        %v2225 = vadd.f32 %v2136, %v2224
        %2226 = vmatmul.bf16.gmra.mxu0 %v1004
        %v2227 = vpop.f32.mrf.mxu0
        %v2228 = vadd.f32 %v2139, %v2227
        %v2229 = vpop.f32.mrf.mxu0
        %v2230 = vadd.f32 %v2141, %v2229
        %2231 = vmatmul.bf16.gmra.mxu0 %v1011
        %v2232 = vpop.f32.mrf.mxu0
        %v2233 = vadd.f32 %v2144, %v2232
        %v2234 = vpop.f32.mrf.mxu0
        %v2235 = vadd.f32 %v2146, %v2234
        %2236 = vmatmul.bf16.gmra.mxu0 %v1018
        %v2237 = vpop.f32.mrf.mxu0
        %v2238 = vadd.f32 %v2149, %v2237
        %v2239 = vpop.f32.mrf.mxu0
        %v2240 = vadd.f32 %v2151, %v2239
        %2241 = vmatmul.bf16.gmra.mxu0 %v1025
        %v2242 = vpop.f32.mrf.mxu0
        %v2243 = vadd.f32 %v2154, %v2242
        %v2244 = vpop.f32.mrf.mxu0
        %v2245 = vadd.f32 %v2156, %v2244
        %2246 = vmatmul.bf16.gmra.mxu0 %v1032
        %v2247 = vpop.f32.mrf.mxu0
        %v2248 = vadd.f32 %v2159, %v2247
        %v2249 = vpop.f32.mrf.mxu0
        %v2250 = vadd.f32 %v2161, %v2249
        %2251 = vmatmul.bf16.gmra.mxu0 %v1039
        %v2252 = vpop.f32.mrf.mxu0
        %v2253 = vadd.f32 %v2164, %v2252
        %v2254 = vpop.f32.mrf.mxu0
        %v2255 = vadd.f32 %v2166, %v2254
        %2256 = vmatmul.bf16.gmra.mxu0 %v1046
        %v2257 = vpop.f32.mrf.mxu0
        %v2258 = vadd.f32 %v2169, %v2257
        %v2259 = vpop.f32.mrf.mxu0
        %v2260 = vadd.f32 %v2171, %v2259
        %2261 = vmatmul.bf16.gmra.mxu0 %v1053
        %v2262 = vpop.f32.mrf.mxu0
        %v2263 = vadd.f32 %v2174, %v2262
        %v2264 = vpop.f32.mrf.mxu0
        %v2265 = vadd.f32 %v2176, %v2264
        %2266 = vmatmul.bf16.gmra.mxu0 %v1060
        %v2267 = vpop.f32.mrf.mxu0
        %v2268 = vadd.f32 %v2179, %v2267
        %v2269 = vpop.f32.mrf.mxu0
        %v2270 = vadd.f32 %v2181, %v2269
        %2271 = vmatmul.bf16.gmra.mxu0 %v1067
        %v2272 = vpop.f32.mrf.mxu0
        %v2273 = vadd.f32 %v2184, %v2272
        %v2274 = vpop.f32.mrf.mxu0
        %v2275 = vadd.f32 %v2186, %v2274
        %2276 = vmatmul.bf16.gmra.mxu0 %v1074
        %v2277 = vpop.f32.mrf.mxu0
        %v2278 = vadd.f32 %v2189, %v2277
        %v2279 = vpop.f32.mrf.mxu0
        %v2280 = vadd.f32 %v2191, %v2279
        %2281 = vdwg.mxu0
        %2282 = vmatpush.bf16.msra.mxu0 %v1634
        %2283 = vmatpush.bf16.msra.mxu0 %v1632
        %2284 = vmatpush.bf16.msra.mxu0 %v1630
        %2285 = vmatpush.bf16.msra.mxu0 %v1628
        %2286 = vmatpush.bf16.msra.mxu0 %v1626
        %2287 = vmatpush.bf16.msra.mxu0 %v1624
        %2288 = vmatpush.bf16.msra.mxu0 %v1622
        %2289 = vmatpush.bf16.msra.mxu0 %v1620
        %2290 = vmatmul.bf16.gmra.mxu0 %v970
        %v2291 = vpop.f32.mrf.mxu0
        %v2292 = vadd.f32 %v2203, %v2291
        %v2293 = vpop.f32.mrf.mxu0
        %v2294 = vadd.f32 %v2205, %v2293
        %2295 = vmatmul.bf16.gmra.mxu0 %v977
        %v2296 = vpop.f32.mrf.mxu0
        %v2297 = vadd.f32 %v2208, %v2296
        %v2298 = vpop.f32.mrf.mxu0
        %v2299 = vadd.f32 %v2210, %v2298
        %2300 = vmatmul.bf16.gmra.mxu0 %v984
        %v2301 = vpop.f32.mrf.mxu0
        %v2302 = vadd.f32 %v2213, %v2301
        %v2303 = vpop.f32.mrf.mxu0
        %v2304 = vadd.f32 %v2215, %v2303
        %2305 = vmatmul.bf16.gmra.mxu0 %v991
        %v2306 = vpop.f32.mrf.mxu0
        %v2307 = vadd.f32 %v2218, %v2306
        %v2308 = vpop.f32.mrf.mxu0
        %v2309 = vadd.f32 %v2220, %v2308
        %2310 = vmatmul.bf16.gmra.mxu0 %v998
        %v2311 = vpop.f32.mrf.mxu0
        %v2312 = vadd.f32 %v2223, %v2311
        %v2313 = vpop.f32.mrf.mxu0
        %v2314 = vadd.f32 %v2225, %v2313
        %2315 = vmatmul.bf16.gmra.mxu0 %v1005
        %v2316 = vpop.f32.mrf.mxu0
        %v2317 = vadd.f32 %v2228, %v2316
        %v2318 = vpop.f32.mrf.mxu0
        %v2319 = vadd.f32 %v2230, %v2318
        %2320 = vmatmul.bf16.gmra.mxu0 %v1012
        %v2321 = vpop.f32.mrf.mxu0
        %v2322 = vadd.f32 %v2233, %v2321
        %v2323 = vpop.f32.mrf.mxu0
        %v2324 = vadd.f32 %v2235, %v2323
        %2325 = vmatmul.bf16.gmra.mxu0 %v1019
        %v2326 = vpop.f32.mrf.mxu0
        %v2327 = vadd.f32 %v2238, %v2326
        %v2328 = vpop.f32.mrf.mxu0
        %v2329 = vadd.f32 %v2240, %v2328
        %2330 = vmatmul.bf16.gmra.mxu0 %v1026
        %v2331 = vpop.f32.mrf.mxu0
        %v2332 = vadd.f32 %v2243, %v2331
        %v2333 = vpop.f32.mrf.mxu0
        %v2334 = vadd.f32 %v2245, %v2333
        %2335 = vmatmul.bf16.gmra.mxu0 %v1033
        %v2336 = vpop.f32.mrf.mxu0
        %v2337 = vadd.f32 %v2248, %v2336
        %v2338 = vpop.f32.mrf.mxu0
        %v2339 = vadd.f32 %v2250, %v2338
        %2340 = vmatmul.bf16.gmra.mxu0 %v1040
        %v2341 = vpop.f32.mrf.mxu0
        %v2342 = vadd.f32 %v2253, %v2341
        %v2343 = vpop.f32.mrf.mxu0
        %v2344 = vadd.f32 %v2255, %v2343
        %2345 = vmatmul.bf16.gmra.mxu0 %v1047
        %v2346 = vpop.f32.mrf.mxu0
        %v2347 = vadd.f32 %v2258, %v2346
        %v2348 = vpop.f32.mrf.mxu0
        %v2349 = vadd.f32 %v2260, %v2348
        %2350 = vmatmul.bf16.gmra.mxu0 %v1054
        %v2351 = vpop.f32.mrf.mxu0
        %v2352 = vadd.f32 %v2263, %v2351
        %v2353 = vpop.f32.mrf.mxu0
        %v2354 = vadd.f32 %v2265, %v2353
        %2355 = vmatmul.bf16.gmra.mxu0 %v1061
        %v2356 = vpop.f32.mrf.mxu0
        %v2357 = vadd.f32 %v2268, %v2356
        %v2358 = vpop.f32.mrf.mxu0
        %v2359 = vadd.f32 %v2270, %v2358
        %2360 = vmatmul.bf16.gmra.mxu0 %v1068
        %v2361 = vpop.f32.mrf.mxu0
        %v2362 = vadd.f32 %v2273, %v2361
        %v2363 = vpop.f32.mrf.mxu0
        %v2364 = vadd.f32 %v2275, %v2363
        %2365 = vmatmul.bf16.gmra.mxu0 %v1075
        %v2366 = vpop.f32.mrf.mxu0
        %v2367 = vadd.f32 %v2278, %v2366
        %v2368 = vpop.f32.mrf.mxu0
        %v2369 = vadd.f32 %v2280, %v2368
        %2370 = vdwg.mxu0
        %2371 = vmatpush.bf16.msra.mxu0 %v1539
        %2372 = vmatpush.bf16.msra.mxu0 %v1537
        %2373 = vmatpush.bf16.msra.mxu0 %v1535
        %2374 = vmatpush.bf16.msra.mxu0 %v1533
        %2375 = vmatpush.bf16.msra.mxu0 %v1531
        %2376 = vmatpush.bf16.msra.mxu0 %v1529
        %2377 = vmatpush.bf16.msra.mxu0 %v1527
        %2378 = vmatpush.bf16.msra.mxu0 %v1525
        %2379 = vmatmul.bf16.gmra.mxu0 %v964
        %v2380 = vpop.f32.mrf.mxu0
        %v2381 = vadd.f32 %v609, %v2380
        %v2382 = vpop.f32.mrf.mxu0
        %v2383 = vadd.f32 %v609, %v2382
        %2384 = vmatmul.bf16.gmra.mxu0 %v971
        %v2385 = vpop.f32.mrf.mxu0
        %v2386 = vadd.f32 %v609, %v2385
        %v2387 = vpop.f32.mrf.mxu0
        %v2388 = vadd.f32 %v609, %v2387
        %2389 = vmatmul.bf16.gmra.mxu0 %v978
        %v2390 = vpop.f32.mrf.mxu0
        %v2391 = vadd.f32 %v609, %v2390
        %v2392 = vpop.f32.mrf.mxu0
        %v2393 = vadd.f32 %v609, %v2392
        %2394 = vmatmul.bf16.gmra.mxu0 %v985
        %v2395 = vpop.f32.mrf.mxu0
        %v2396 = vadd.f32 %v609, %v2395
        %v2397 = vpop.f32.mrf.mxu0
        %v2398 = vadd.f32 %v609, %v2397
        %2399 = vmatmul.bf16.gmra.mxu0 %v992
        %v2400 = vpop.f32.mrf.mxu0
        %v2401 = vadd.f32 %v609, %v2400
        %v2402 = vpop.f32.mrf.mxu0
        %v2403 = vadd.f32 %v609, %v2402
        %2404 = vmatmul.bf16.gmra.mxu0 %v999
        %v2405 = vpop.f32.mrf.mxu0
        %v2406 = vadd.f32 %v609, %v2405
        %v2407 = vpop.f32.mrf.mxu0
        %v2408 = vadd.f32 %v609, %v2407
        %2409 = vmatmul.bf16.gmra.mxu0 %v1006
        %v2410 = vpop.f32.mrf.mxu0
        %v2411 = vadd.f32 %v609, %v2410
        %v2412 = vpop.f32.mrf.mxu0
        %v2413 = vadd.f32 %v609, %v2412
        %2414 = vmatmul.bf16.gmra.mxu0 %v1013
        %v2415 = vpop.f32.mrf.mxu0
        %v2416 = vadd.f32 %v609, %v2415
        %v2417 = vpop.f32.mrf.mxu0
        %v2418 = vadd.f32 %v609, %v2417
        %2419 = vmatmul.bf16.gmra.mxu0 %v1020
        %v2420 = vpop.f32.mrf.mxu0
        %v2421 = vadd.f32 %v609, %v2420
        %v2422 = vpop.f32.mrf.mxu0
        %v2423 = vadd.f32 %v609, %v2422
        %2424 = vmatmul.bf16.gmra.mxu0 %v1027
        %v2425 = vpop.f32.mrf.mxu0
        %v2426 = vadd.f32 %v609, %v2425
        %v2427 = vpop.f32.mrf.mxu0
        %v2428 = vadd.f32 %v609, %v2427
        %2429 = vmatmul.bf16.gmra.mxu0 %v1034
        %v2430 = vpop.f32.mrf.mxu0
        %v2431 = vadd.f32 %v609, %v2430
        %v2432 = vpop.f32.mrf.mxu0
        %v2433 = vadd.f32 %v609, %v2432
        %2434 = vmatmul.bf16.gmra.mxu0 %v1041
        %v2435 = vpop.f32.mrf.mxu0
        %v2436 = vadd.f32 %v609, %v2435
        %v2437 = vpop.f32.mrf.mxu0
        %v2438 = vadd.f32 %v609, %v2437
        %2439 = vmatmul.bf16.gmra.mxu0 %v1048
        %v2440 = vpop.f32.mrf.mxu0
        %v2441 = vadd.f32 %v609, %v2440
        %v2442 = vpop.f32.mrf.mxu0
        %v2443 = vadd.f32 %v609, %v2442
        %2444 = vmatmul.bf16.gmra.mxu0 %v1055
        %v2445 = vpop.f32.mrf.mxu0
        %v2446 = vadd.f32 %v609, %v2445
        %v2447 = vpop.f32.mrf.mxu0
        %v2448 = vadd.f32 %v609, %v2447
        %2449 = vmatmul.bf16.gmra.mxu0 %v1062
        %v2450 = vpop.f32.mrf.mxu0
        %v2451 = vadd.f32 %v609, %v2450
        %v2452 = vpop.f32.mrf.mxu0
        %v2453 = vadd.f32 %v609, %v2452
        %2454 = vmatmul.bf16.gmra.mxu0 %v1069
        %v2455 = vpop.f32.mrf.mxu0
        %v2456 = vadd.f32 %v609, %v2455
        %v2457 = vpop.f32.mrf.mxu0
        %v2458 = vadd.f32 %v609, %v2457
        %2459 = vdwg.mxu0
        %2460 = vmatpush.bf16.msra.mxu0 %v1555
        %2461 = vmatpush.bf16.msra.mxu0 %v1553
        %2462 = vmatpush.bf16.msra.mxu0 %v1551
        %2463 = vmatpush.bf16.msra.mxu0 %v1549
        %2464 = vmatpush.bf16.msra.mxu0 %v1547
        %2465 = vmatpush.bf16.msra.mxu0 %v1545
        %2466 = vmatpush.bf16.msra.mxu0 %v1543
        %2467 = vmatpush.bf16.msra.mxu0 %v1541
        %2468 = vmatmul.bf16.gmra.mxu0 %v965
        %v2469 = vpop.f32.mrf.mxu0
        %v2470 = vadd.f32 %v2381, %v2469
        %v2471 = vpop.f32.mrf.mxu0
        %v2472 = vadd.f32 %v2383, %v2471
        %2473 = vmatmul.bf16.gmra.mxu0 %v972
        %v2474 = vpop.f32.mrf.mxu0
        %v2475 = vadd.f32 %v2386, %v2474
        %v2476 = vpop.f32.mrf.mxu0
        %v2477 = vadd.f32 %v2388, %v2476
        %2478 = vmatmul.bf16.gmra.mxu0 %v979
        %v2479 = vpop.f32.mrf.mxu0
        %v2480 = vadd.f32 %v2391, %v2479
        %v2481 = vpop.f32.mrf.mxu0
        %v2482 = vadd.f32 %v2393, %v2481
        %2483 = vmatmul.bf16.gmra.mxu0 %v986
        %v2484 = vpop.f32.mrf.mxu0
        %v2485 = vadd.f32 %v2396, %v2484
        %v2486 = vpop.f32.mrf.mxu0
        %v2487 = vadd.f32 %v2398, %v2486
        %2488 = vmatmul.bf16.gmra.mxu0 %v993
        %v2489 = vpop.f32.mrf.mxu0
        %v2490 = vadd.f32 %v2401, %v2489
        %v2491 = vpop.f32.mrf.mxu0
        %v2492 = vadd.f32 %v2403, %v2491
        %2493 = vmatmul.bf16.gmra.mxu0 %v1000
        %v2494 = vpop.f32.mrf.mxu0
        %v2495 = vadd.f32 %v2406, %v2494
        %v2496 = vpop.f32.mrf.mxu0
        %v2497 = vadd.f32 %v2408, %v2496
        %2498 = vmatmul.bf16.gmra.mxu0 %v1007
        %v2499 = vpop.f32.mrf.mxu0
        %v2500 = vadd.f32 %v2411, %v2499
        %v2501 = vpop.f32.mrf.mxu0
        %v2502 = vadd.f32 %v2413, %v2501
        %2503 = vmatmul.bf16.gmra.mxu0 %v1014
        %v2504 = vpop.f32.mrf.mxu0
        %v2505 = vadd.f32 %v2416, %v2504
        %v2506 = vpop.f32.mrf.mxu0
        %v2507 = vadd.f32 %v2418, %v2506
        %2508 = vmatmul.bf16.gmra.mxu0 %v1021
        %v2509 = vpop.f32.mrf.mxu0
        %v2510 = vadd.f32 %v2421, %v2509
        %v2511 = vpop.f32.mrf.mxu0
        %v2512 = vadd.f32 %v2423, %v2511
        %2513 = vmatmul.bf16.gmra.mxu0 %v1028
        %v2514 = vpop.f32.mrf.mxu0
        %v2515 = vadd.f32 %v2426, %v2514
        %v2516 = vpop.f32.mrf.mxu0
        %v2517 = vadd.f32 %v2428, %v2516
        %2518 = vmatmul.bf16.gmra.mxu0 %v1035
        %v2519 = vpop.f32.mrf.mxu0
        %v2520 = vadd.f32 %v2431, %v2519
        %v2521 = vpop.f32.mrf.mxu0
        %v2522 = vadd.f32 %v2433, %v2521
        %2523 = vmatmul.bf16.gmra.mxu0 %v1042
        %v2524 = vpop.f32.mrf.mxu0
        %v2525 = vadd.f32 %v2436, %v2524
        %v2526 = vpop.f32.mrf.mxu0
        %v2527 = vadd.f32 %v2438, %v2526
        %2528 = vmatmul.bf16.gmra.mxu0 %v1049
        %v2529 = vpop.f32.mrf.mxu0
        %v2530 = vadd.f32 %v2441, %v2529
        %v2531 = vpop.f32.mrf.mxu0
        %v2532 = vadd.f32 %v2443, %v2531
        %2533 = vmatmul.bf16.gmra.mxu0 %v1056
        %v2534 = vpop.f32.mrf.mxu0
        %v2535 = vadd.f32 %v2446, %v2534
        %v2536 = vpop.f32.mrf.mxu0
        %v2537 = vadd.f32 %v2448, %v2536
        %2538 = vmatmul.bf16.gmra.mxu0 %v1063
        %v2539 = vpop.f32.mrf.mxu0
        %v2540 = vadd.f32 %v2451, %v2539
        %v2541 = vpop.f32.mrf.mxu0
        %v2542 = vadd.f32 %v2453, %v2541
        %2543 = vmatmul.bf16.gmra.mxu0 %v1070
        %v2544 = vpop.f32.mrf.mxu0
        %v2545 = vadd.f32 %v2456, %v2544
        %v2546 = vpop.f32.mrf.mxu0
        %v2547 = vadd.f32 %v2458, %v2546
        %2548 = vdwg.mxu0
        %2549 = vmatpush.bf16.msra.mxu0 %v1571
        %2550 = vmatpush.bf16.msra.mxu0 %v1569
        %2551 = vmatpush.bf16.msra.mxu0 %v1567
        %2552 = vmatpush.bf16.msra.mxu0 %v1565
        %2553 = vmatpush.bf16.msra.mxu0 %v1563
        %2554 = vmatpush.bf16.msra.mxu0 %v1561
        %2555 = vmatpush.bf16.msra.mxu0 %v1559
        %2556 = vmatpush.bf16.msra.mxu0 %v1557
        %2557 = vmatmul.bf16.gmra.mxu0 %v966
        %v2558 = vpop.f32.mrf.mxu0
        %v2559 = vadd.f32 %v2470, %v2558
        %v2560 = vpop.f32.mrf.mxu0
        %v2561 = vadd.f32 %v2472, %v2560
        %2562 = vmatmul.bf16.gmra.mxu0 %v973
        %v2563 = vpop.f32.mrf.mxu0
        %v2564 = vadd.f32 %v2475, %v2563
        %v2565 = vpop.f32.mrf.mxu0
        %v2566 = vadd.f32 %v2477, %v2565
        %2567 = vmatmul.bf16.gmra.mxu0 %v980
        %v2568 = vpop.f32.mrf.mxu0
        %v2569 = vadd.f32 %v2480, %v2568
        %v2570 = vpop.f32.mrf.mxu0
        %v2571 = vadd.f32 %v2482, %v2570
        %2572 = vmatmul.bf16.gmra.mxu0 %v987
        %v2573 = vpop.f32.mrf.mxu0
        %v2574 = vadd.f32 %v2485, %v2573
        %v2575 = vpop.f32.mrf.mxu0
        %v2576 = vadd.f32 %v2487, %v2575
        %2577 = vmatmul.bf16.gmra.mxu0 %v994
        %v2578 = vpop.f32.mrf.mxu0
        %v2579 = vadd.f32 %v2490, %v2578
        %v2580 = vpop.f32.mrf.mxu0
        %v2581 = vadd.f32 %v2492, %v2580
        %2582 = vmatmul.bf16.gmra.mxu0 %v1001
        %v2583 = vpop.f32.mrf.mxu0
        %v2584 = vadd.f32 %v2495, %v2583
        %v2585 = vpop.f32.mrf.mxu0
        %v2586 = vadd.f32 %v2497, %v2585
        %2587 = vmatmul.bf16.gmra.mxu0 %v1008
        %v2588 = vpop.f32.mrf.mxu0
        %v2589 = vadd.f32 %v2500, %v2588
        %v2590 = vpop.f32.mrf.mxu0
        %v2591 = vadd.f32 %v2502, %v2590
        %2592 = vmatmul.bf16.gmra.mxu0 %v1015
        %v2593 = vpop.f32.mrf.mxu0
        %v2594 = vadd.f32 %v2505, %v2593
        %v2595 = vpop.f32.mrf.mxu0
        %v2596 = vadd.f32 %v2507, %v2595
        %2597 = vmatmul.bf16.gmra.mxu0 %v1022
        %v2598 = vpop.f32.mrf.mxu0
        %v2599 = vadd.f32 %v2510, %v2598
        %v2600 = vpop.f32.mrf.mxu0
        %v2601 = vadd.f32 %v2512, %v2600
        %2602 = vmatmul.bf16.gmra.mxu0 %v1029
        %v2603 = vpop.f32.mrf.mxu0
        %v2604 = vadd.f32 %v2515, %v2603
        %v2605 = vpop.f32.mrf.mxu0
        %v2606 = vadd.f32 %v2517, %v2605
        %2607 = vmatmul.bf16.gmra.mxu0 %v1036
        %v2608 = vpop.f32.mrf.mxu0
        %v2609 = vadd.f32 %v2520, %v2608
        %v2610 = vpop.f32.mrf.mxu0
        %v2611 = vadd.f32 %v2522, %v2610
        %2612 = vmatmul.bf16.gmra.mxu0 %v1043
        %v2613 = vpop.f32.mrf.mxu0
        %v2614 = vadd.f32 %v2525, %v2613
        %v2615 = vpop.f32.mrf.mxu0
        %v2616 = vadd.f32 %v2527, %v2615
        %2617 = vmatmul.bf16.gmra.mxu0 %v1050
        %v2618 = vpop.f32.mrf.mxu0
        %v2619 = vadd.f32 %v2530, %v2618
        %v2620 = vpop.f32.mrf.mxu0
        %v2621 = vadd.f32 %v2532, %v2620
        %2622 = vmatmul.bf16.gmra.mxu0 %v1057
        %v2623 = vpop.f32.mrf.mxu0
        %v2624 = vadd.f32 %v2535, %v2623
        %v2625 = vpop.f32.mrf.mxu0
        %v2626 = vadd.f32 %v2537, %v2625
        %2627 = vmatmul.bf16.gmra.mxu0 %v1064
        %v2628 = vpop.f32.mrf.mxu0
        %v2629 = vadd.f32 %v2540, %v2628
        %v2630 = vpop.f32.mrf.mxu0
        %v2631 = vadd.f32 %v2542, %v2630
        %2632 = vmatmul.bf16.gmra.mxu0 %v1071
        %v2633 = vpop.f32.mrf.mxu0
        %v2634 = vadd.f32 %v2545, %v2633
        %v2635 = vpop.f32.mrf.mxu0
        %v2636 = vadd.f32 %v2547, %v2635
        %2637 = vdwg.mxu0
        %2638 = vmatpush.bf16.msra.mxu0 %v1587
        %2639 = vmatpush.bf16.msra.mxu0 %v1585
        %2640 = vmatpush.bf16.msra.mxu0 %v1583
        %2641 = vmatpush.bf16.msra.mxu0 %v1581
        %2642 = vmatpush.bf16.msra.mxu0 %v1579
        %2643 = vmatpush.bf16.msra.mxu0 %v1577
        %2644 = vmatpush.bf16.msra.mxu0 %v1575
        %2645 = vmatpush.bf16.msra.mxu0 %v1573
        %2646 = vmatmul.bf16.gmra.mxu0 %v967
        %v2647 = vpop.f32.mrf.mxu0
        %v2648 = vadd.f32 %v2559, %v2647
        %v2649 = vpop.f32.mrf.mxu0
        %v2650 = vadd.f32 %v2561, %v2649
        %2651 = vmatmul.bf16.gmra.mxu0 %v974
        %v2652 = vpop.f32.mrf.mxu0
        %v2653 = vadd.f32 %v2564, %v2652
        %v2654 = vpop.f32.mrf.mxu0
        %v2655 = vadd.f32 %v2566, %v2654
        %2656 = vmatmul.bf16.gmra.mxu0 %v981
        %v2657 = vpop.f32.mrf.mxu0
        %v2658 = vadd.f32 %v2569, %v2657
        %v2659 = vpop.f32.mrf.mxu0
        %v2660 = vadd.f32 %v2571, %v2659
        %2661 = vmatmul.bf16.gmra.mxu0 %v988
        %v2662 = vpop.f32.mrf.mxu0
        %v2663 = vadd.f32 %v2574, %v2662
        %v2664 = vpop.f32.mrf.mxu0
        %v2665 = vadd.f32 %v2576, %v2664
        %2666 = vmatmul.bf16.gmra.mxu0 %v995
        %v2667 = vpop.f32.mrf.mxu0
        %v2668 = vadd.f32 %v2579, %v2667
        %v2669 = vpop.f32.mrf.mxu0
        %v2670 = vadd.f32 %v2581, %v2669
        %2671 = vmatmul.bf16.gmra.mxu0 %v1002
        %v2672 = vpop.f32.mrf.mxu0
        %v2673 = vadd.f32 %v2584, %v2672
        %v2674 = vpop.f32.mrf.mxu0
        %v2675 = vadd.f32 %v2586, %v2674
        %2676 = vmatmul.bf16.gmra.mxu0 %v1009
        %v2677 = vpop.f32.mrf.mxu0
        %v2678 = vadd.f32 %v2589, %v2677
        %v2679 = vpop.f32.mrf.mxu0
        %v2680 = vadd.f32 %v2591, %v2679
        %2681 = vmatmul.bf16.gmra.mxu0 %v1016
        %v2682 = vpop.f32.mrf.mxu0
        %v2683 = vadd.f32 %v2594, %v2682
        %v2684 = vpop.f32.mrf.mxu0
        %v2685 = vadd.f32 %v2596, %v2684
        %2686 = vmatmul.bf16.gmra.mxu0 %v1023
        %v2687 = vpop.f32.mrf.mxu0
        %v2688 = vadd.f32 %v2599, %v2687
        %v2689 = vpop.f32.mrf.mxu0
        %v2690 = vadd.f32 %v2601, %v2689
        %2691 = vmatmul.bf16.gmra.mxu0 %v1030
        %v2692 = vpop.f32.mrf.mxu0
        %v2693 = vadd.f32 %v2604, %v2692
        %v2694 = vpop.f32.mrf.mxu0
        %v2695 = vadd.f32 %v2606, %v2694
        %2696 = vmatmul.bf16.gmra.mxu0 %v1037
        %v2697 = vpop.f32.mrf.mxu0
        %v2698 = vadd.f32 %v2609, %v2697
        %v2699 = vpop.f32.mrf.mxu0
        %v2700 = vadd.f32 %v2611, %v2699
        %2701 = vmatmul.bf16.gmra.mxu0 %v1044
        %v2702 = vpop.f32.mrf.mxu0
        %v2703 = vadd.f32 %v2614, %v2702
        %v2704 = vpop.f32.mrf.mxu0
        %v2705 = vadd.f32 %v2616, %v2704
        %2706 = vmatmul.bf16.gmra.mxu0 %v1051
        %v2707 = vpop.f32.mrf.mxu0
        %v2708 = vadd.f32 %v2619, %v2707
        %v2709 = vpop.f32.mrf.mxu0
        %v2710 = vadd.f32 %v2621, %v2709
        %2711 = vmatmul.bf16.gmra.mxu0 %v1058
        %v2712 = vpop.f32.mrf.mxu0
        %v2713 = vadd.f32 %v2624, %v2712
        %v2714 = vpop.f32.mrf.mxu0
        %v2715 = vadd.f32 %v2626, %v2714
        %2716 = vmatmul.bf16.gmra.mxu0 %v1065
        %v2717 = vpop.f32.mrf.mxu0
        %v2718 = vadd.f32 %v2629, %v2717
        %v2719 = vpop.f32.mrf.mxu0
        %v2720 = vadd.f32 %v2631, %v2719
        %2721 = vmatmul.bf16.gmra.mxu0 %v1072
        %v2722 = vpop.f32.mrf.mxu0
        %v2723 = vadd.f32 %v2634, %v2722
        %v2724 = vpop.f32.mrf.mxu0
        %v2725 = vadd.f32 %v2636, %v2724
        %2726 = vdwg.mxu0
        %2727 = vmatpush.bf16.msra.mxu0 %v1603
        %2728 = vmatpush.bf16.msra.mxu0 %v1601
        %2729 = vmatpush.bf16.msra.mxu0 %v1599
        %2730 = vmatpush.bf16.msra.mxu0 %v1597
        %2731 = vmatpush.bf16.msra.mxu0 %v1595
        %2732 = vmatpush.bf16.msra.mxu0 %v1593
        %2733 = vmatpush.bf16.msra.mxu0 %v1591
        %2734 = vmatpush.bf16.msra.mxu0 %v1589
        %2735 = vmatmul.bf16.gmra.mxu0 %v968
        %v2736 = vpop.f32.mrf.mxu0
        %v2737 = vadd.f32 %v2648, %v2736
        %v2738 = vpop.f32.mrf.mxu0
        %v2739 = vadd.f32 %v2650, %v2738
        %2740 = vmatmul.bf16.gmra.mxu0 %v975
        %v2741 = vpop.f32.mrf.mxu0
        %v2742 = vadd.f32 %v2653, %v2741
        %v2743 = vpop.f32.mrf.mxu0
        %v2744 = vadd.f32 %v2655, %v2743
        %2745 = vmatmul.bf16.gmra.mxu0 %v982
        %v2746 = vpop.f32.mrf.mxu0
        %v2747 = vadd.f32 %v2658, %v2746
        %v2748 = vpop.f32.mrf.mxu0
        %v2749 = vadd.f32 %v2660, %v2748
        %2750 = vmatmul.bf16.gmra.mxu0 %v989
        %v2751 = vpop.f32.mrf.mxu0
        %v2752 = vadd.f32 %v2663, %v2751
        %v2753 = vpop.f32.mrf.mxu0
        %v2754 = vadd.f32 %v2665, %v2753
        %2755 = vmatmul.bf16.gmra.mxu0 %v996
        %v2756 = vpop.f32.mrf.mxu0
        %v2757 = vadd.f32 %v2668, %v2756
        %v2758 = vpop.f32.mrf.mxu0
        %v2759 = vadd.f32 %v2670, %v2758
        %2760 = vmatmul.bf16.gmra.mxu0 %v1003
        %v2761 = vpop.f32.mrf.mxu0
        %v2762 = vadd.f32 %v2673, %v2761
        %v2763 = vpop.f32.mrf.mxu0
        %v2764 = vadd.f32 %v2675, %v2763
        %2765 = vmatmul.bf16.gmra.mxu0 %v1010
        %v2766 = vpop.f32.mrf.mxu0
        %v2767 = vadd.f32 %v2678, %v2766
        %v2768 = vpop.f32.mrf.mxu0
        %v2769 = vadd.f32 %v2680, %v2768
        %2770 = vmatmul.bf16.gmra.mxu0 %v1017
        %v2771 = vpop.f32.mrf.mxu0
        %v2772 = vadd.f32 %v2683, %v2771
        %v2773 = vpop.f32.mrf.mxu0
        %v2774 = vadd.f32 %v2685, %v2773
        %2775 = vmatmul.bf16.gmra.mxu0 %v1024
        %v2776 = vpop.f32.mrf.mxu0
        %v2777 = vadd.f32 %v2688, %v2776
        %v2778 = vpop.f32.mrf.mxu0
        %v2779 = vadd.f32 %v2690, %v2778
        %2780 = vmatmul.bf16.gmra.mxu0 %v1031
        %v2781 = vpop.f32.mrf.mxu0
        %v2782 = vadd.f32 %v2693, %v2781
        %v2783 = vpop.f32.mrf.mxu0
        %v2784 = vadd.f32 %v2695, %v2783
        %2785 = vmatmul.bf16.gmra.mxu0 %v1038
        %v2786 = vpop.f32.mrf.mxu0
        %v2787 = vadd.f32 %v2698, %v2786
        %v2788 = vpop.f32.mrf.mxu0
        %v2789 = vadd.f32 %v2700, %v2788
        %2790 = vmatmul.bf16.gmra.mxu0 %v1045
        %v2791 = vpop.f32.mrf.mxu0
        %v2792 = vadd.f32 %v2703, %v2791
        %v2793 = vpop.f32.mrf.mxu0
        %v2794 = vadd.f32 %v2705, %v2793
        %2795 = vmatmul.bf16.gmra.mxu0 %v1052
        %v2796 = vpop.f32.mrf.mxu0
        %v2797 = vadd.f32 %v2708, %v2796
        %v2798 = vpop.f32.mrf.mxu0
        %v2799 = vadd.f32 %v2710, %v2798
        %2800 = vmatmul.bf16.gmra.mxu0 %v1059
        %v2801 = vpop.f32.mrf.mxu0
        %v2802 = vadd.f32 %v2713, %v2801
        %v2803 = vpop.f32.mrf.mxu0
        %v2804 = vadd.f32 %v2715, %v2803
        %2805 = vmatmul.bf16.gmra.mxu0 %v1066
        %v2806 = vpop.f32.mrf.mxu0
        %v2807 = vadd.f32 %v2718, %v2806
        %v2808 = vpop.f32.mrf.mxu0
        %v2809 = vadd.f32 %v2720, %v2808
        %2810 = vmatmul.bf16.gmra.mxu0 %v1073
        %v2811 = vpop.f32.mrf.mxu0
        %v2812 = vadd.f32 %v2723, %v2811
        %v2813 = vpop.f32.mrf.mxu0
        %v2814 = vadd.f32 %v2725, %v2813
        %2815 = vdwg.mxu0
        %2816 = vmatpush.bf16.msra.mxu0 %v1619
        %2817 = vmatpush.bf16.msra.mxu0 %v1617
        %2818 = vmatpush.bf16.msra.mxu0 %v1615
        %2819 = vmatpush.bf16.msra.mxu0 %v1613
        %2820 = vmatpush.bf16.msra.mxu0 %v1611
        %2821 = vmatpush.bf16.msra.mxu0 %v1609
        %2822 = vmatpush.bf16.msra.mxu0 %v1607
        %2823 = vmatpush.bf16.msra.mxu0 %v1605
        %2824 = vmatmul.bf16.gmra.mxu0 %v969
        %v2825 = vpop.f32.mrf.mxu0
        %v2826 = vadd.f32 %v2737, %v2825
        %v2827 = vpop.f32.mrf.mxu0
        %v2828 = vadd.f32 %v2739, %v2827
        %2829 = vmatmul.bf16.gmra.mxu0 %v976
        %v2830 = vpop.f32.mrf.mxu0
        %v2831 = vadd.f32 %v2742, %v2830
        %v2832 = vpop.f32.mrf.mxu0
        %v2833 = vadd.f32 %v2744, %v2832
        %2834 = vmatmul.bf16.gmra.mxu0 %v983
        %v2835 = vpop.f32.mrf.mxu0
        %v2836 = vadd.f32 %v2747, %v2835
        %v2837 = vpop.f32.mrf.mxu0
        %v2838 = vadd.f32 %v2749, %v2837
        %2839 = vmatmul.bf16.gmra.mxu0 %v990
        %v2840 = vpop.f32.mrf.mxu0
        %v2841 = vadd.f32 %v2752, %v2840
        %v2842 = vpop.f32.mrf.mxu0
        %v2843 = vadd.f32 %v2754, %v2842
        %2844 = vmatmul.bf16.gmra.mxu0 %v997
        %v2845 = vpop.f32.mrf.mxu0
        %v2846 = vadd.f32 %v2757, %v2845
        %v2847 = vpop.f32.mrf.mxu0
        %v2848 = vadd.f32 %v2759, %v2847
        %2849 = vmatmul.bf16.gmra.mxu0 %v1004
        %v2850 = vpop.f32.mrf.mxu0
        %v2851 = vadd.f32 %v2762, %v2850
        %v2852 = vpop.f32.mrf.mxu0
        %v2853 = vadd.f32 %v2764, %v2852
        %2854 = vmatmul.bf16.gmra.mxu0 %v1011
        %v2855 = vpop.f32.mrf.mxu0
        %v2856 = vadd.f32 %v2767, %v2855
        %v2857 = vpop.f32.mrf.mxu0
        %v2858 = vadd.f32 %v2769, %v2857
        %2859 = vmatmul.bf16.gmra.mxu0 %v1018
        %v2860 = vpop.f32.mrf.mxu0
        %v2861 = vadd.f32 %v2772, %v2860
        %v2862 = vpop.f32.mrf.mxu0
        %v2863 = vadd.f32 %v2774, %v2862
        %2864 = vmatmul.bf16.gmra.mxu0 %v1025
        %v2865 = vpop.f32.mrf.mxu0
        %v2866 = vadd.f32 %v2777, %v2865
        %v2867 = vpop.f32.mrf.mxu0
        %v2868 = vadd.f32 %v2779, %v2867
        %2869 = vmatmul.bf16.gmra.mxu0 %v1032
        %v2870 = vpop.f32.mrf.mxu0
        %v2871 = vadd.f32 %v2782, %v2870
        %v2872 = vpop.f32.mrf.mxu0
        %v2873 = vadd.f32 %v2784, %v2872
        %2874 = vmatmul.bf16.gmra.mxu0 %v1039
        %v2875 = vpop.f32.mrf.mxu0
        %v2876 = vadd.f32 %v2787, %v2875
        %v2877 = vpop.f32.mrf.mxu0
        %v2878 = vadd.f32 %v2789, %v2877
        %2879 = vmatmul.bf16.gmra.mxu0 %v1046
        %v2880 = vpop.f32.mrf.mxu0
        %v2881 = vadd.f32 %v2792, %v2880
        %v2882 = vpop.f32.mrf.mxu0
        %v2883 = vadd.f32 %v2794, %v2882
        %2884 = vmatmul.bf16.gmra.mxu0 %v1053
        %v2885 = vpop.f32.mrf.mxu0
        %v2886 = vadd.f32 %v2797, %v2885
        %v2887 = vpop.f32.mrf.mxu0
        %v2888 = vadd.f32 %v2799, %v2887
        %2889 = vmatmul.bf16.gmra.mxu0 %v1060
        %v2890 = vpop.f32.mrf.mxu0
        %v2891 = vadd.f32 %v2802, %v2890
        %v2892 = vpop.f32.mrf.mxu0
        %v2893 = vadd.f32 %v2804, %v2892
        %2894 = vmatmul.bf16.gmra.mxu0 %v1067
        %v2895 = vpop.f32.mrf.mxu0
        %v2896 = vadd.f32 %v2807, %v2895
        %v2897 = vpop.f32.mrf.mxu0
        %v2898 = vadd.f32 %v2809, %v2897
        %2899 = vmatmul.bf16.gmra.mxu0 %v1074
        %v2900 = vpop.f32.mrf.mxu0
        %v2901 = vadd.f32 %v2812, %v2900
        %v2902 = vpop.f32.mrf.mxu0
        %v2903 = vadd.f32 %v2814, %v2902
        %2904 = vdwg.mxu0
        %2905 = vmatpush.bf16.msra.mxu0 %v1635
        %2906 = vmatpush.bf16.msra.mxu0 %v1633
        %2907 = vmatpush.bf16.msra.mxu0 %v1631
        %2908 = vmatpush.bf16.msra.mxu0 %v1629
        %2909 = vmatpush.bf16.msra.mxu0 %v1627
        %2910 = vmatpush.bf16.msra.mxu0 %v1625
        %2911 = vmatpush.bf16.msra.mxu0 %v1623
        %2912 = vmatpush.bf16.msra.mxu0 %v1621
        %2913 = vmatmul.bf16.gmra.mxu0 %v970
        %v2914 = vpop.f32.mrf.mxu0
        %v2915 = vadd.f32 %v2826, %v2914
        %v2916 = vpop.f32.mrf.mxu0
        %v2917 = vadd.f32 %v2828, %v2916
        %2918 = vmatmul.bf16.gmra.mxu0 %v977
        %v2919 = vpop.f32.mrf.mxu0
        %v2920 = vadd.f32 %v2831, %v2919
        %v2921 = vpop.f32.mrf.mxu0
        %v2922 = vadd.f32 %v2833, %v2921
        %2923 = vmatmul.bf16.gmra.mxu0 %v984
        %v2924 = vpop.f32.mrf.mxu0
        %v2925 = vadd.f32 %v2836, %v2924
        %v2926 = vpop.f32.mrf.mxu0
        %v2927 = vadd.f32 %v2838, %v2926
        %2928 = vmatmul.bf16.gmra.mxu0 %v991
        %v2929 = vpop.f32.mrf.mxu0
        %v2930 = vadd.f32 %v2841, %v2929
        %v2931 = vpop.f32.mrf.mxu0
        %v2932 = vadd.f32 %v2843, %v2931
        %2933 = vmatmul.bf16.gmra.mxu0 %v998
        %v2934 = vpop.f32.mrf.mxu0
        %v2935 = vadd.f32 %v2846, %v2934
        %v2936 = vpop.f32.mrf.mxu0
        %v2937 = vadd.f32 %v2848, %v2936
        %2938 = vmatmul.bf16.gmra.mxu0 %v1005
        %v2939 = vpop.f32.mrf.mxu0
        %v2940 = vadd.f32 %v2851, %v2939
        %v2941 = vpop.f32.mrf.mxu0
        %v2942 = vadd.f32 %v2853, %v2941
        %2943 = vmatmul.bf16.gmra.mxu0 %v1012
        %v2944 = vpop.f32.mrf.mxu0
        %v2945 = vadd.f32 %v2856, %v2944
        %v2946 = vpop.f32.mrf.mxu0
        %v2947 = vadd.f32 %v2858, %v2946
        %2948 = vmatmul.bf16.gmra.mxu0 %v1019
        %v2949 = vpop.f32.mrf.mxu0
        %v2950 = vadd.f32 %v2861, %v2949
        %v2951 = vpop.f32.mrf.mxu0
        %v2952 = vadd.f32 %v2863, %v2951
        %2953 = vmatmul.bf16.gmra.mxu0 %v1026
        %v2954 = vpop.f32.mrf.mxu0
        %v2955 = vadd.f32 %v2866, %v2954
        %v2956 = vpop.f32.mrf.mxu0
        %v2957 = vadd.f32 %v2868, %v2956
        %2958 = vmatmul.bf16.gmra.mxu0 %v1033
        %v2959 = vpop.f32.mrf.mxu0
        %v2960 = vadd.f32 %v2871, %v2959
        %v2961 = vpop.f32.mrf.mxu0
        %v2962 = vadd.f32 %v2873, %v2961
        %2963 = vmatmul.bf16.gmra.mxu0 %v1040
        %v2964 = vpop.f32.mrf.mxu0
        %v2965 = vadd.f32 %v2876, %v2964
        %v2966 = vpop.f32.mrf.mxu0
        %v2967 = vadd.f32 %v2878, %v2966
        %2968 = vmatmul.bf16.gmra.mxu0 %v1047
        %v2969 = vpop.f32.mrf.mxu0
        %v2970 = vadd.f32 %v2881, %v2969
        %v2971 = vpop.f32.mrf.mxu0
        %v2972 = vadd.f32 %v2883, %v2971
        %2973 = vmatmul.bf16.gmra.mxu0 %v1054
        %v2974 = vpop.f32.mrf.mxu0
        %v2975 = vadd.f32 %v2886, %v2974
        %v2976 = vpop.f32.mrf.mxu0
        %v2977 = vadd.f32 %v2888, %v2976
        %2978 = vmatmul.bf16.gmra.mxu0 %v1061
        %v2979 = vpop.f32.mrf.mxu0
        %v2980 = vadd.f32 %v2891, %v2979
        %v2981 = vpop.f32.mrf.mxu0
        %v2982 = vadd.f32 %v2893, %v2981
        %2983 = vmatmul.bf16.gmra.mxu0 %v1068
        %v2984 = vpop.f32.mrf.mxu0
        %v2985 = vadd.f32 %v2896, %v2984
        %v2986 = vpop.f32.mrf.mxu0
        %v2987 = vadd.f32 %v2898, %v2986
        %2988 = vmatmul.bf16.gmra.mxu0 %v1075
        %v2989 = vpop.f32.mrf.mxu0
        %v2990 = vadd.f32 %v2901, %v2989
        %v2991 = vpop.f32.mrf.mxu0
        %v2992 = vadd.f32 %v2903, %v2991
        %2993 = vdwg.mxu0
        %v2994 = vmax.f32 %v2292, 0.0
        %v2995 = vmax.f32 %v2915, 0.0
        %v2996 = vmax.f32 %v2294, 0.0
        %v2997 = vmax.f32 %v2917, 0.0
        %v2998 = vmax.f32 %v2297, 0.0
        %v2999 = vmax.f32 %v2920, 0.0
        %v3000 = vmax.f32 %v2299, 0.0
        %v3001 = vmax.f32 %v2922, 0.0
        %v3002 = vmax.f32 %v2302, 0.0
        %v3003 = vmax.f32 %v2925, 0.0
        %v3004 = vmax.f32 %v2304, 0.0
        %v3005 = vmax.f32 %v2927, 0.0
        %v3006 = vmax.f32 %v2307, 0.0
        %v3007 = vmax.f32 %v2930, 0.0
        %v3008 = vmax.f32 %v2309, 0.0
        %v3009 = vmax.f32 %v2932, 0.0
        %v3010 = vmax.f32 %v2312, 0.0
        %v3011 = vmax.f32 %v2935, 0.0
        %v3012 = vmax.f32 %v2314, 0.0
        %v3013 = vmax.f32 %v2937, 0.0
        %v3014 = vmax.f32 %v2317, 0.0
        %v3015 = vmax.f32 %v2940, 0.0
        %v3016 = vmax.f32 %v2319, 0.0
        %v3017 = vmax.f32 %v2942, 0.0
        %v3018 = vmax.f32 %v2322, 0.0
        %v3019 = vmax.f32 %v2945, 0.0
        %v3020 = vmax.f32 %v2324, 0.0
        %v3021 = vmax.f32 %v2947, 0.0
        %v3022 = vmax.f32 %v2327, 0.0
        %v3023 = vmax.f32 %v2950, 0.0
        %v3024 = vmax.f32 %v2329, 0.0
        %v3025 = vmax.f32 %v2952, 0.0
        %v3026 = vmax.f32 %v2332, 0.0
        %v3027 = vmax.f32 %v2955, 0.0
        %v3028 = vmax.f32 %v2334, 0.0
        %v3029 = vmax.f32 %v2957, 0.0
        %v3030 = vmax.f32 %v2337, 0.0
        %v3031 = vmax.f32 %v2960, 0.0
        %v3032 = vmax.f32 %v2339, 0.0
        %v3033 = vmax.f32 %v2962, 0.0
        %v3034 = vmax.f32 %v2342, 0.0
        %v3035 = vmax.f32 %v2965, 0.0
        %v3036 = vmax.f32 %v2344, 0.0
        %v3037 = vmax.f32 %v2967, 0.0
        %v3038 = vmax.f32 %v2347, 0.0
        %v3039 = vmax.f32 %v2970, 0.0
        %v3040 = vmax.f32 %v2349, 0.0
        %v3041 = vmax.f32 %v2972, 0.0
        %v3042 = vmax.f32 %v2352, 0.0
        %v3043 = vmax.f32 %v2975, 0.0
        %v3044 = vmax.f32 %v2354, 0.0
        %v3045 = vmax.f32 %v2977, 0.0
        %v3046 = vmax.f32 %v2357, 0.0
        %v3047 = vmax.f32 %v2980, 0.0
        %v3048 = vmax.f32 %v2359, 0.0
        %v3049 = vmax.f32 %v2982, 0.0
        %v3050 = vmax.f32 %v2362, 0.0
        %v3051 = vmax.f32 %v2985, 0.0
        %v3052 = vmax.f32 %v2364, 0.0
        %v3053 = vmax.f32 %v2987, 0.0
        %v3054 = vmax.f32 %v2367, 0.0
        %v3055 = vmax.f32 %v2990, 0.0
        %v3056 = vmax.f32 %v2369, 0.0
        %v3057 = vmax.f32 %v2992, 0.0
        %v3058 = vpack.c.bf16 %v2995, %v2994
        %v3059 = vpack.c.bf16 %v2997, %v2996
        %v3060 = vpack.c.bf16 %v2999, %v2998
        %v3061 = vpack.c.bf16 %v3001, %v3000
        %v3062 = vpack.c.bf16 %v3003, %v3002
        %v3063 = vpack.c.bf16 %v3005, %v3004
        %v3064 = vpack.c.bf16 %v3007, %v3006
        %v3065 = vpack.c.bf16 %v3009, %v3008
        %v3066 = vpack.c.bf16 %v3011, %v3010
        %v3067 = vpack.c.bf16 %v3013, %v3012
        %v3068 = vpack.c.bf16 %v3015, %v3014
        %v3069 = vpack.c.bf16 %v3017, %v3016
        %v3070 = vpack.c.bf16 %v3019, %v3018
        %v3071 = vpack.c.bf16 %v3021, %v3020
        %v3072 = vpack.c.bf16 %v3023, %v3022
        %v3073 = vpack.c.bf16 %v3025, %v3024
        %v3074 = vpack.c.bf16 %v3027, %v3026
        %v3075 = vpack.c.bf16 %v3029, %v3028
        %v3076 = vpack.c.bf16 %v3031, %v3030
        %v3077 = vpack.c.bf16 %v3033, %v3032
        %v3078 = vpack.c.bf16 %v3035, %v3034
        %v3079 = vpack.c.bf16 %v3037, %v3036
        %v3080 = vpack.c.bf16 %v3039, %v3038
        %v3081 = vpack.c.bf16 %v3041, %v3040
        %v3082 = vpack.c.bf16 %v3043, %v3042
        %v3083 = vpack.c.bf16 %v3045, %v3044
        %v3084 = vpack.c.bf16 %v3047, %v3046
        %v3085 = vpack.c.bf16 %v3049, %v3048
        %v3086 = vpack.c.bf16 %v3051, %v3050
        %v3087 = vpack.c.bf16 %v3053, %v3052
        %v3088 = vpack.c.bf16 %v3055, %v3054
        %v3089 = vpack.c.bf16 %v3057, %v3056
        %3090 = vst [vmem:[#allocation2] sm:$0xff] %v3058
        %3091 = vst [vmem:[#allocation2 + $0x8] sm:$0xff] %v3059
        %3092 = vst [vmem:[#allocation2 + $0x10] sm:$0xff] %v3060
        %3093 = vst [vmem:[#allocation2 + $0x18] sm:$0xff] %v3061
        %3094 = vst [vmem:[#allocation2 + $0x20] sm:$0xff] %v3062
        %3095 = vst [vmem:[#allocation2 + $0x28] sm:$0xff] %v3063
        %3096 = vst [vmem:[#allocation2 + $0x30] sm:$0xff] %v3064
        %3097 = vst [vmem:[#allocation2 + $0x38] sm:$0xff] %v3065
        %3098 = vst [vmem:[#allocation2 + $0x40] sm:$0xff] %v3066
        %3099 = vst [vmem:[#allocation2 + $0x48] sm:$0xff] %v3067
        %3100 = vst [vmem:[#allocation2 + $0x50] sm:$0xff] %v3068
        %3101 = vst [vmem:[#allocation2 + $0x58] sm:$0xff] %v3069
        %3102 = vst [vmem:[#allocation2 + $0x60] sm:$0xff] %v3070
        %3103 = vst [vmem:[#allocation2 + $0x68] sm:$0xff] %v3071
        %3104 = vst [vmem:[#allocation2 + $0x70] sm:$0xff] %v3072
        %3105 = vst [vmem:[#allocation2 + $0x78] sm:$0xff] %v3073
        %3106 = vst [vmem:[#allocation2 + $0x80] sm:$0xff] %v3074
        %3107 = vst [vmem:[#allocation2 + $0x88] sm:$0xff] %v3075
        %3108 = vst [vmem:[#allocation2 + $0x90] sm:$0xff] %v3076
        %3109 = vst [vmem:[#allocation2 + $0x98] sm:$0xff] %v3077
        %3110 = vst [vmem:[#allocation2 + $0xa0] sm:$0xff] %v3078
        %3111 = vst [vmem:[#allocation2 + $0xa8] sm:$0xff] %v3079
        %3112 = vst [vmem:[#allocation2 + $0xb0] sm:$0xff] %v3080
        %3113 = vst [vmem:[#allocation2 + $0xb8] sm:$0xff] %v3081
        %3114 = vst [vmem:[#allocation2 + $0xc0] sm:$0xff] %v3082
        %3115 = vst [vmem:[#allocation2 + $0xc8] sm:$0xff] %v3083
        %3116 = vst [vmem:[#allocation2 + $0xd0] sm:$0xff] %v3084
        %3117 = vst [vmem:[#allocation2 + $0xd8] sm:$0xff] %v3085
        %3118 = vst [vmem:[#allocation2 + $0xe0] sm:$0xff] %v3086
        %3119 = vst [vmem:[#allocation2 + $0xe8] sm:$0xff] %v3087
        %3120 = vst [vmem:[#allocation2 + $0xf0] sm:$0xff] %v3088
        %3121 = vst [vmem:[#allocation2 + $0xf8] sm:$0xff] %v3089
        %v3122 = vld [vmem:[#allocation2] sm:$0xff]
        %v3123 = vld [vmem:[#allocation2 + $0x8] sm:$0xff]
        %v3124 = vld [vmem:[#allocation2 + $0x10] sm:$0xff]
        %v3125 = vld [vmem:[#allocation2 + $0x18] sm:$0xff]
        %v3126 = vld [vmem:[#allocation2 + $0x20] sm:$0xff]
        %v3127 = vld [vmem:[#allocation2 + $0x28] sm:$0xff]
        %v3128 = vld [vmem:[#allocation2 + $0x30] sm:$0xff]
        %v3129 = vld [vmem:[#allocation2 + $0x38] sm:$0xff]
        %v3130 = vld [vmem:[#allocation2 + $0x40] sm:$0xff]
        %v3131 = vld [vmem:[#allocation2 + $0x48] sm:$0xff]
        %v3132 = vld [vmem:[#allocation2 + $0x50] sm:$0xff]
        %v3133 = vld [vmem:[#allocation2 + $0x58] sm:$0xff]
        %v3134 = vld [vmem:[#allocation2 + $0x60] sm:$0xff]
        %v3135 = vld [vmem:[#allocation2 + $0x68] sm:$0xff]
        %v3136 = vld [vmem:[#allocation2 + $0x70] sm:$0xff]
        %v3137 = vld [vmem:[#allocation2 + $0x78] sm:$0xff]
        %v3138 = vld [vmem:[#allocation2 + $0x80] sm:$0xff]
        %v3139 = vld [vmem:[#allocation2 + $0x88] sm:$0xff]
        %v3140 = vld [vmem:[#allocation2 + $0x90] sm:$0xff]
        %v3141 = vld [vmem:[#allocation2 + $0x98] sm:$0xff]
        %v3142 = vld [vmem:[#allocation2 + $0xa0] sm:$0xff]
        %v3143 = vld [vmem:[#allocation2 + $0xa8] sm:$0xff]
        %v3144 = vld [vmem:[#allocation2 + $0xb0] sm:$0xff]
        %v3145 = vld [vmem:[#allocation2 + $0xb8] sm:$0xff]
        %v3146 = vld [vmem:[#allocation2 + $0xc0] sm:$0xff]
        %v3147 = vld [vmem:[#allocation2 + $0xc8] sm:$0xff]
        %v3148 = vld [vmem:[#allocation2 + $0xd0] sm:$0xff]
        %v3149 = vld [vmem:[#allocation2 + $0xd8] sm:$0xff]
        %v3150 = vld [vmem:[#allocation2 + $0xe0] sm:$0xff]
        %v3151 = vld [vmem:[#allocation2 + $0xe8] sm:$0xff]
        %v3152 = vld [vmem:[#allocation2 + $0xf0] sm:$0xff]
        %v3153 = vld [vmem:[#allocation2 + $0xf8] sm:$0xff]
        %v3154 = vld [vmem:[#allocation10] sm:$0xff]
        %v3155 = vld [vmem:[#allocation10 + $0x8] sm:$0xff]
        %v3156 = vld [vmem:[#allocation10 + $0x10] sm:$0xff]
        %v3157 = vld [vmem:[#allocation10 + $0x18] sm:$0xff]
        %v3158 = vld [vmem:[#allocation10 + $0x20] sm:$0xff]
        %v3159 = vld [vmem:[#allocation10 + $0x28] sm:$0xff]
        %v3160 = vld [vmem:[#allocation10 + $0x30] sm:$0xff]
        %v3161 = vld [vmem:[#allocation10 + $0x38] sm:$0xff]
        %v3162 = vld [vmem:[#allocation10 + $0x40] sm:$0xff]
        %v3163 = vld [vmem:[#allocation10 + $0x48] sm:$0xff]
        %v3164 = vld [vmem:[#allocation10 + $0x50] sm:$0xff]
        %v3165 = vld [vmem:[#allocation10 + $0x58] sm:$0xff]
        %v3166 = vld [vmem:[#allocation10 + $0x60] sm:$0xff]
        %v3167 = vld [vmem:[#allocation10 + $0x68] sm:$0xff]
        %v3168 = vld [vmem:[#allocation10 + $0x70] sm:$0xff]
        %v3169 = vld [vmem:[#allocation10 + $0x78] sm:$0xff]
        %v3170 = vld [vmem:[#allocation10 + $0x80] sm:$0xff]
        %v3171 = vld [vmem:[#allocation10 + $0x88] sm:$0xff]
        %v3172 = vld [vmem:[#allocation10 + $0x90] sm:$0xff]
        %v3173 = vld [vmem:[#allocation10 + $0x98] sm:$0xff]
        %v3174 = vld [vmem:[#allocation10 + $0xa0] sm:$0xff]
        %v3175 = vld [vmem:[#allocation10 + $0xa8] sm:$0xff]
        %v3176 = vld [vmem:[#allocation10 + $0xb0] sm:$0xff]
        %v3177 = vld [vmem:[#allocation10 + $0xb8] sm:$0xff]
        %v3178 = vld [vmem:[#allocation10 + $0xc0] sm:$0xff]
        %v3179 = vld [vmem:[#allocation10 + $0xc8] sm:$0xff]
        %v3180 = vld [vmem:[#allocation10 + $0xd0] sm:$0xff]
        %v3181 = vld [vmem:[#allocation10 + $0xd8] sm:$0xff]
        %v3182 = vld [vmem:[#allocation10 + $0xe0] sm:$0xff]
        %v3183 = vld [vmem:[#allocation10 + $0xe8] sm:$0xff]
        %v3184 = vld [vmem:[#allocation10 + $0xf0] sm:$0xff]
        %v3185 = vld [vmem:[#allocation10 + $0xf8] sm:$0xff]
        %v3186 = vld [vmem:[%s4] sm:$0x3]
        %v3188 = vperm.slane %v3186, 0
        %v3189 = vperm.slane %v3186, 1
        %v3224 = vunpack.c.l.b16 %v3122
        %v3225 = vunpack.c.h.b16 %v3122
        %v3226 = vunpack.c.l.b16 %v3123
        %v3227 = vunpack.c.h.b16 %v3123
        %v3228 = vunpack.c.l.b16 %v3124
        %v3229 = vunpack.c.h.b16 %v3124
        %v3230 = vunpack.c.l.b16 %v3125
        %v3231 = vunpack.c.h.b16 %v3125
        %v3232 = vunpack.c.l.b16 %v3126
        %v3233 = vunpack.c.h.b16 %v3126
        %v3234 = vunpack.c.l.b16 %v3127
        %v3235 = vunpack.c.h.b16 %v3127
        %v3236 = vunpack.c.l.b16 %v3128
        %v3237 = vunpack.c.h.b16 %v3128
        %v3238 = vunpack.c.l.b16 %v3129
        %v3239 = vunpack.c.h.b16 %v3129
        %v3240 = vunpack.c.l.b16 %v3130
        %v3241 = vunpack.c.h.b16 %v3130
        %v3242 = vunpack.c.l.b16 %v3131
        %v3243 = vunpack.c.h.b16 %v3131
        %v3244 = vunpack.c.l.b16 %v3132
        %v3245 = vunpack.c.h.b16 %v3132
        %v3246 = vunpack.c.l.b16 %v3133
        %v3247 = vunpack.c.h.b16 %v3133
        %v3248 = vunpack.c.l.b16 %v3134
        %v3249 = vunpack.c.h.b16 %v3134
        %v3250 = vunpack.c.l.b16 %v3135
        %v3251 = vunpack.c.h.b16 %v3135
        %v3252 = vunpack.c.l.b16 %v3136
        %v3253 = vunpack.c.h.b16 %v3136
        %v3254 = vunpack.c.l.b16 %v3137
        %v3255 = vunpack.c.h.b16 %v3137
        %v3256 = vunpack.c.l.b16 %v3138
        %v3257 = vunpack.c.h.b16 %v3138
        %v3258 = vunpack.c.l.b16 %v3139
        %v3259 = vunpack.c.h.b16 %v3139
        %v3260 = vunpack.c.l.b16 %v3140
        %v3261 = vunpack.c.h.b16 %v3140
        %v3262 = vunpack.c.l.b16 %v3141
        %v3263 = vunpack.c.h.b16 %v3141
        %v3264 = vunpack.c.l.b16 %v3142
        %v3265 = vunpack.c.h.b16 %v3142
        %v3266 = vunpack.c.l.b16 %v3143
        %v3267 = vunpack.c.h.b16 %v3143
        %v3268 = vunpack.c.l.b16 %v3144
        %v3269 = vunpack.c.h.b16 %v3144
        %v3270 = vunpack.c.l.b16 %v3145
        %v3271 = vunpack.c.h.b16 %v3145
        %v3272 = vunpack.c.l.b16 %v3146
        %v3273 = vunpack.c.h.b16 %v3146
        %v3274 = vunpack.c.l.b16 %v3147
        %v3275 = vunpack.c.h.b16 %v3147
        %v3276 = vunpack.c.l.b16 %v3148
        %v3277 = vunpack.c.h.b16 %v3148
        %v3278 = vunpack.c.l.b16 %v3149
        %v3279 = vunpack.c.h.b16 %v3149
        %v3280 = vunpack.c.l.b16 %v3150
        %v3281 = vunpack.c.h.b16 %v3150
        %v3282 = vunpack.c.l.b16 %v3151
        %v3283 = vunpack.c.h.b16 %v3151
        %v3284 = vunpack.c.l.b16 %v3152
        %v3285 = vunpack.c.h.b16 %v3152
        %v3286 = vunpack.c.l.b16 %v3153
        %v3287 = vunpack.c.h.b16 %v3153
        %v3288 = vpack.c.b16 %v3226, %v3224
        %v3289 = vpack.c.b16 %v3227, %v3225
        %v3290 = vpack.c.b16 %v3230, %v3228
        %v3291 = vpack.c.b16 %v3231, %v3229
        %v3292 = vpack.c.b16 %v3234, %v3232
        %v3293 = vpack.c.b16 %v3235, %v3233
        %v3294 = vpack.c.b16 %v3238, %v3236
        %v3295 = vpack.c.b16 %v3239, %v3237
        %v3296 = vpack.c.b16 %v3242, %v3240
        %v3297 = vpack.c.b16 %v3243, %v3241
        %v3298 = vpack.c.b16 %v3246, %v3244
        %v3299 = vpack.c.b16 %v3247, %v3245
        %v3300 = vpack.c.b16 %v3250, %v3248
        %v3301 = vpack.c.b16 %v3251, %v3249
        %v3302 = vpack.c.b16 %v3254, %v3252
        %v3303 = vpack.c.b16 %v3255, %v3253
        %v3304 = vpack.c.b16 %v3258, %v3256
        %v3305 = vpack.c.b16 %v3259, %v3257
        %v3306 = vpack.c.b16 %v3262, %v3260
        %v3307 = vpack.c.b16 %v3263, %v3261
        %v3308 = vpack.c.b16 %v3266, %v3264
        %v3309 = vpack.c.b16 %v3267, %v3265
        %v3310 = vpack.c.b16 %v3270, %v3268
        %v3311 = vpack.c.b16 %v3271, %v3269
        %v3312 = vpack.c.b16 %v3274, %v3272
        %v3313 = vpack.c.b16 %v3275, %v3273
        %v3314 = vpack.c.b16 %v3278, %v3276
        %v3315 = vpack.c.b16 %v3279, %v3277
        %v3316 = vpack.c.b16 %v3282, %v3280
        %v3317 = vpack.c.b16 %v3283, %v3281
        %v3318 = vpack.c.b16 %v3286, %v3284
        %v3319 = vpack.c.b16 %v3287, %v3285
        %v3384 = vunpack.c.l.b16 %v3154
        %v3385 = vunpack.c.h.b16 %v3154
        %v3386 = vunpack.c.l.b16 %v3155
        %v3387 = vunpack.c.h.b16 %v3155
        %v3388 = vunpack.c.l.b16 %v3156
        %v3389 = vunpack.c.h.b16 %v3156
        %v3390 = vunpack.c.l.b16 %v3157
        %v3391 = vunpack.c.h.b16 %v3157
        %v3392 = vunpack.c.l.b16 %v3158
        %v3393 = vunpack.c.h.b16 %v3158
        %v3394 = vunpack.c.l.b16 %v3159
        %v3395 = vunpack.c.h.b16 %v3159
        %v3396 = vunpack.c.l.b16 %v3160
        %v3397 = vunpack.c.h.b16 %v3160
        %v3398 = vunpack.c.l.b16 %v3161
        %v3399 = vunpack.c.h.b16 %v3161
        %v3400 = vunpack.c.l.b16 %v3162
        %v3401 = vunpack.c.h.b16 %v3162
        %v3402 = vunpack.c.l.b16 %v3163
        %v3403 = vunpack.c.h.b16 %v3163
        %v3404 = vunpack.c.l.b16 %v3164
        %v3405 = vunpack.c.h.b16 %v3164
        %v3406 = vunpack.c.l.b16 %v3165
        %v3407 = vunpack.c.h.b16 %v3165
        %v3408 = vunpack.c.l.b16 %v3166
        %v3409 = vunpack.c.h.b16 %v3166
        %v3410 = vunpack.c.l.b16 %v3167
        %v3411 = vunpack.c.h.b16 %v3167
        %v3412 = vunpack.c.l.b16 %v3168
        %v3413 = vunpack.c.h.b16 %v3168
        %v3414 = vunpack.c.l.b16 %v3169
        %v3415 = vunpack.c.h.b16 %v3169
        %v3416 = vunpack.c.l.b16 %v3170
        %v3417 = vunpack.c.h.b16 %v3170
        %v3418 = vunpack.c.l.b16 %v3171
        %v3419 = vunpack.c.h.b16 %v3171
        %v3420 = vunpack.c.l.b16 %v3172
        %v3421 = vunpack.c.h.b16 %v3172
        %v3422 = vunpack.c.l.b16 %v3173
        %v3423 = vunpack.c.h.b16 %v3173
        %v3424 = vunpack.c.l.b16 %v3174
        %v3425 = vunpack.c.h.b16 %v3174
        %v3426 = vunpack.c.l.b16 %v3175
        %v3427 = vunpack.c.h.b16 %v3175
        %v3428 = vunpack.c.l.b16 %v3176
        %v3429 = vunpack.c.h.b16 %v3176
        %v3430 = vunpack.c.l.b16 %v3177
        %v3431 = vunpack.c.h.b16 %v3177
        %v3432 = vunpack.c.l.b16 %v3178
        %v3433 = vunpack.c.h.b16 %v3178
        %v3434 = vunpack.c.l.b16 %v3179
        %v3435 = vunpack.c.h.b16 %v3179
        %v3436 = vunpack.c.l.b16 %v3180
        %v3437 = vunpack.c.h.b16 %v3180
        %v3438 = vunpack.c.l.b16 %v3181
        %v3439 = vunpack.c.h.b16 %v3181
        %v3440 = vunpack.c.l.b16 %v3182
        %v3441 = vunpack.c.h.b16 %v3182
        %v3442 = vunpack.c.l.b16 %v3183
        %v3443 = vunpack.c.h.b16 %v3183
        %v3444 = vunpack.c.l.b16 %v3184
        %v3445 = vunpack.c.h.b16 %v3184
        %v3446 = vunpack.c.l.b16 %v3185
        %v3447 = vunpack.c.h.b16 %v3185
        %v3448 = vpack.c.b16 %v3386, %v3384
        %v3449 = vpack.c.b16 %v3387, %v3385
        %v3450 = vpack.c.b16 %v3390, %v3388
        %v3451 = vpack.c.b16 %v3391, %v3389
        %v3452 = vpack.c.b16 %v3394, %v3392
        %v3453 = vpack.c.b16 %v3395, %v3393
        %v3454 = vpack.c.b16 %v3398, %v3396
        %v3455 = vpack.c.b16 %v3399, %v3397
        %v3456 = vpack.c.b16 %v3402, %v3400
        %v3457 = vpack.c.b16 %v3403, %v3401
        %v3458 = vpack.c.b16 %v3406, %v3404
        %v3459 = vpack.c.b16 %v3407, %v3405
        %v3460 = vpack.c.b16 %v3410, %v3408
        %v3461 = vpack.c.b16 %v3411, %v3409
        %v3462 = vpack.c.b16 %v3414, %v3412
        %v3463 = vpack.c.b16 %v3415, %v3413
        %v3464 = vpack.c.b16 %v3418, %v3416
        %v3465 = vpack.c.b16 %v3419, %v3417
        %v3466 = vpack.c.b16 %v3422, %v3420
        %v3467 = vpack.c.b16 %v3423, %v3421
        %v3468 = vpack.c.b16 %v3426, %v3424
        %v3469 = vpack.c.b16 %v3427, %v3425
        %v3470 = vpack.c.b16 %v3430, %v3428
        %v3471 = vpack.c.b16 %v3431, %v3429
        %v3472 = vpack.c.b16 %v3434, %v3432
        %v3473 = vpack.c.b16 %v3435, %v3433
        %v3474 = vpack.c.b16 %v3438, %v3436
        %v3475 = vpack.c.b16 %v3439, %v3437
        %v3476 = vpack.c.b16 %v3442, %v3440
        %v3477 = vpack.c.b16 %v3443, %v3441
        %v3478 = vpack.c.b16 %v3446, %v3444
        %v3479 = vpack.c.b16 %v3447, %v3445
        %3512 = vmatpush.bf16.msra.mxu0 %v3462
        %3513 = vmatpush.bf16.msra.mxu0 %v3460
        %3514 = vmatpush.bf16.msra.mxu0 %v3458
        %3515 = vmatpush.bf16.msra.mxu0 %v3456
        %3516 = vmatpush.bf16.msra.mxu0 %v3454
        %3517 = vmatpush.bf16.msra.mxu0 %v3452
        %3518 = vmatpush.bf16.msra.mxu0 %v3450
        %3519 = vmatpush.bf16.msra.mxu0 %v3448
        %3520 = vmatmul.bf16.gmra.mxu0 %v3288
        %v3521 = vpop.f32.mrf.mxu0
        %v3522 = vadd.f32 %v3188, %v3521
        %v3523 = vpop.f32.mrf.mxu0
        %v3524 = vadd.f32 %v3188, %v3523
        %3525 = vmatmul.bf16.gmra.mxu0 %v3290
        %v3526 = vpop.f32.mrf.mxu0
        %v3527 = vadd.f32 %v3188, %v3526
        %v3528 = vpop.f32.mrf.mxu0
        %v3529 = vadd.f32 %v3188, %v3528
        %3530 = vmatmul.bf16.gmra.mxu0 %v3292
        %v3531 = vpop.f32.mrf.mxu0
        %v3532 = vadd.f32 %v3188, %v3531
        %v3533 = vpop.f32.mrf.mxu0
        %v3534 = vadd.f32 %v3188, %v3533
        %3535 = vmatmul.bf16.gmra.mxu0 %v3294
        %v3536 = vpop.f32.mrf.mxu0
        %v3537 = vadd.f32 %v3188, %v3536
        %v3538 = vpop.f32.mrf.mxu0
        %v3539 = vadd.f32 %v3188, %v3538
        %3540 = vmatmul.bf16.gmra.mxu0 %v3296
        %v3541 = vpop.f32.mrf.mxu0
        %v3542 = vadd.f32 %v3188, %v3541
        %v3543 = vpop.f32.mrf.mxu0
        %v3544 = vadd.f32 %v3188, %v3543
        %3545 = vmatmul.bf16.gmra.mxu0 %v3298
        %v3546 = vpop.f32.mrf.mxu0
        %v3547 = vadd.f32 %v3188, %v3546
        %v3548 = vpop.f32.mrf.mxu0
        %v3549 = vadd.f32 %v3188, %v3548
        %3550 = vmatmul.bf16.gmra.mxu0 %v3300
        %v3551 = vpop.f32.mrf.mxu0
        %v3552 = vadd.f32 %v3188, %v3551
        %v3553 = vpop.f32.mrf.mxu0
        %v3554 = vadd.f32 %v3188, %v3553
        %3555 = vmatmul.bf16.gmra.mxu0 %v3302
        %v3556 = vpop.f32.mrf.mxu0
        %v3557 = vadd.f32 %v3188, %v3556
        %v3558 = vpop.f32.mrf.mxu0
        %v3559 = vadd.f32 %v3188, %v3558
        %3560 = vmatmul.bf16.gmra.mxu0 %v3304
        %v3561 = vpop.f32.mrf.mxu0
        %v3562 = vadd.f32 %v3188, %v3561
        %v3563 = vpop.f32.mrf.mxu0
        %v3564 = vadd.f32 %v3188, %v3563
        %3565 = vmatmul.bf16.gmra.mxu0 %v3306
        %v3566 = vpop.f32.mrf.mxu0
        %v3567 = vadd.f32 %v3188, %v3566
        %v3568 = vpop.f32.mrf.mxu0
        %v3569 = vadd.f32 %v3188, %v3568
        %3570 = vmatmul.bf16.gmra.mxu0 %v3308
        %v3571 = vpop.f32.mrf.mxu0
        %v3572 = vadd.f32 %v3188, %v3571
        %v3573 = vpop.f32.mrf.mxu0
        %v3574 = vadd.f32 %v3188, %v3573
        %3575 = vmatmul.bf16.gmra.mxu0 %v3310
        %v3576 = vpop.f32.mrf.mxu0
        %v3577 = vadd.f32 %v3188, %v3576
        %v3578 = vpop.f32.mrf.mxu0
        %v3579 = vadd.f32 %v3188, %v3578
        %3580 = vmatmul.bf16.gmra.mxu0 %v3312
        %v3581 = vpop.f32.mrf.mxu0
        %v3582 = vadd.f32 %v3188, %v3581
        %v3583 = vpop.f32.mrf.mxu0
        %v3584 = vadd.f32 %v3188, %v3583
        %3585 = vmatmul.bf16.gmra.mxu0 %v3314
        %v3586 = vpop.f32.mrf.mxu0
        %v3587 = vadd.f32 %v3188, %v3586
        %v3588 = vpop.f32.mrf.mxu0
        %v3589 = vadd.f32 %v3188, %v3588
        %3590 = vmatmul.bf16.gmra.mxu0 %v3316
        %v3591 = vpop.f32.mrf.mxu0
        %v3592 = vadd.f32 %v3188, %v3591
        %v3593 = vpop.f32.mrf.mxu0
        %v3594 = vadd.f32 %v3188, %v3593
        %3595 = vmatmul.bf16.gmra.mxu0 %v3318
        %v3596 = vpop.f32.mrf.mxu0
        %v3597 = vadd.f32 %v3188, %v3596
        %v3598 = vpop.f32.mrf.mxu0
        %v3599 = vadd.f32 %v3188, %v3598
        %3600 = vdwg.mxu0
        %3601 = vmatpush.bf16.msra.mxu0 %v3478
        %3602 = vmatpush.bf16.msra.mxu0 %v3476
        %3603 = vmatpush.bf16.msra.mxu0 %v3474
        %3604 = vmatpush.bf16.msra.mxu0 %v3472
        %3605 = vmatpush.bf16.msra.mxu0 %v3470
        %3606 = vmatpush.bf16.msra.mxu0 %v3468
        %3607 = vmatpush.bf16.msra.mxu0 %v3466
        %3608 = vmatpush.bf16.msra.mxu0 %v3464
        %3609 = vmatmul.bf16.gmra.mxu0 %v3289
        %v3610 = vpop.f32.mrf.mxu0
        %v3611 = vadd.f32 %v3522, %v3610
        %v3612 = vpop.f32.mrf.mxu0
        %v3613 = vadd.f32 %v3524, %v3612
        %3614 = vmatmul.bf16.gmra.mxu0 %v3291
        %v3615 = vpop.f32.mrf.mxu0
        %v3616 = vadd.f32 %v3527, %v3615
        %v3617 = vpop.f32.mrf.mxu0
        %v3618 = vadd.f32 %v3529, %v3617
        %3619 = vmatmul.bf16.gmra.mxu0 %v3293
        %v3620 = vpop.f32.mrf.mxu0
        %v3621 = vadd.f32 %v3532, %v3620
        %v3622 = vpop.f32.mrf.mxu0
        %v3623 = vadd.f32 %v3534, %v3622
        %3624 = vmatmul.bf16.gmra.mxu0 %v3295
        %v3625 = vpop.f32.mrf.mxu0
        %v3626 = vadd.f32 %v3537, %v3625
        %v3627 = vpop.f32.mrf.mxu0
        %v3628 = vadd.f32 %v3539, %v3627
        %3629 = vmatmul.bf16.gmra.mxu0 %v3297
        %v3630 = vpop.f32.mrf.mxu0
        %v3631 = vadd.f32 %v3542, %v3630
        %v3632 = vpop.f32.mrf.mxu0
        %v3633 = vadd.f32 %v3544, %v3632
        %3634 = vmatmul.bf16.gmra.mxu0 %v3299
        %v3635 = vpop.f32.mrf.mxu0
        %v3636 = vadd.f32 %v3547, %v3635
        %v3637 = vpop.f32.mrf.mxu0
        %v3638 = vadd.f32 %v3549, %v3637
        %3639 = vmatmul.bf16.gmra.mxu0 %v3301
        %v3640 = vpop.f32.mrf.mxu0
        %v3641 = vadd.f32 %v3552, %v3640
        %v3642 = vpop.f32.mrf.mxu0
        %v3643 = vadd.f32 %v3554, %v3642
        %3644 = vmatmul.bf16.gmra.mxu0 %v3303
        %v3645 = vpop.f32.mrf.mxu0
        %v3646 = vadd.f32 %v3557, %v3645
        %v3647 = vpop.f32.mrf.mxu0
        %v3648 = vadd.f32 %v3559, %v3647
        %3649 = vmatmul.bf16.gmra.mxu0 %v3305
        %v3650 = vpop.f32.mrf.mxu0
        %v3651 = vadd.f32 %v3562, %v3650
        %v3652 = vpop.f32.mrf.mxu0
        %v3653 = vadd.f32 %v3564, %v3652
        %3654 = vmatmul.bf16.gmra.mxu0 %v3307
        %v3655 = vpop.f32.mrf.mxu0
        %v3656 = vadd.f32 %v3567, %v3655
        %v3657 = vpop.f32.mrf.mxu0
        %v3658 = vadd.f32 %v3569, %v3657
        %3659 = vmatmul.bf16.gmra.mxu0 %v3309
        %v3660 = vpop.f32.mrf.mxu0
        %v3661 = vadd.f32 %v3572, %v3660
        %v3662 = vpop.f32.mrf.mxu0
        %v3663 = vadd.f32 %v3574, %v3662
        %3664 = vmatmul.bf16.gmra.mxu0 %v3311
        %v3665 = vpop.f32.mrf.mxu0
        %v3666 = vadd.f32 %v3577, %v3665
        %v3667 = vpop.f32.mrf.mxu0
        %v3668 = vadd.f32 %v3579, %v3667
        %3669 = vmatmul.bf16.gmra.mxu0 %v3313
        %v3670 = vpop.f32.mrf.mxu0
        %v3671 = vadd.f32 %v3582, %v3670
        %v3672 = vpop.f32.mrf.mxu0
        %v3673 = vadd.f32 %v3584, %v3672
        %3674 = vmatmul.bf16.gmra.mxu0 %v3315
        %v3675 = vpop.f32.mrf.mxu0
        %v3676 = vadd.f32 %v3587, %v3675
        %v3677 = vpop.f32.mrf.mxu0
        %v3678 = vadd.f32 %v3589, %v3677
        %3679 = vmatmul.bf16.gmra.mxu0 %v3317
        %v3680 = vpop.f32.mrf.mxu0
        %v3681 = vadd.f32 %v3592, %v3680
        %v3682 = vpop.f32.mrf.mxu0
        %v3683 = vadd.f32 %v3594, %v3682
        %3684 = vmatmul.bf16.gmra.mxu0 %v3319
        %v3685 = vpop.f32.mrf.mxu0
        %v3686 = vadd.f32 %v3597, %v3685
        %v3687 = vpop.f32.mrf.mxu0
        %v3688 = vadd.f32 %v3599, %v3687
        %3689 = vdwg.mxu0
        %3690 = vmatpush.bf16.msra.mxu0 %v3463
        %3691 = vmatpush.bf16.msra.mxu0 %v3461
        %3692 = vmatpush.bf16.msra.mxu0 %v3459
        %3693 = vmatpush.bf16.msra.mxu0 %v3457
        %3694 = vmatpush.bf16.msra.mxu0 %v3455
        %3695 = vmatpush.bf16.msra.mxu0 %v3453
        %3696 = vmatpush.bf16.msra.mxu0 %v3451
        %3697 = vmatpush.bf16.msra.mxu0 %v3449
        %3698 = vmatmul.bf16.gmra.mxu0 %v3288
        %v3699 = vpop.f32.mrf.mxu0
        %v3700 = vadd.f32 %v3189, %v3699
        %v3701 = vpop.f32.mrf.mxu0
        %v3702 = vadd.f32 %v3189, %v3701
        %3703 = vmatmul.bf16.gmra.mxu0 %v3290
        %v3704 = vpop.f32.mrf.mxu0
        %v3705 = vadd.f32 %v3189, %v3704
        %v3706 = vpop.f32.mrf.mxu0
        %v3707 = vadd.f32 %v3189, %v3706
        %3708 = vmatmul.bf16.gmra.mxu0 %v3292
        %v3709 = vpop.f32.mrf.mxu0
        %v3710 = vadd.f32 %v3189, %v3709
        %v3711 = vpop.f32.mrf.mxu0
        %v3712 = vadd.f32 %v3189, %v3711
        %3713 = vmatmul.bf16.gmra.mxu0 %v3294
        %v3714 = vpop.f32.mrf.mxu0
        %v3715 = vadd.f32 %v3189, %v3714
        %v3716 = vpop.f32.mrf.mxu0
        %v3717 = vadd.f32 %v3189, %v3716
        %3718 = vmatmul.bf16.gmra.mxu0 %v3296
        %v3719 = vpop.f32.mrf.mxu0
        %v3720 = vadd.f32 %v3189, %v3719
        %v3721 = vpop.f32.mrf.mxu0
        %v3722 = vadd.f32 %v3189, %v3721
        %3723 = vmatmul.bf16.gmra.mxu0 %v3298
        %v3724 = vpop.f32.mrf.mxu0
        %v3725 = vadd.f32 %v3189, %v3724
        %v3726 = vpop.f32.mrf.mxu0
        %v3727 = vadd.f32 %v3189, %v3726
        %3728 = vmatmul.bf16.gmra.mxu0 %v3300
        %v3729 = vpop.f32.mrf.mxu0
        %v3730 = vadd.f32 %v3189, %v3729
        %v3731 = vpop.f32.mrf.mxu0
        %v3732 = vadd.f32 %v3189, %v3731
        %3733 = vmatmul.bf16.gmra.mxu0 %v3302
        %v3734 = vpop.f32.mrf.mxu0
        %v3735 = vadd.f32 %v3189, %v3734
        %v3736 = vpop.f32.mrf.mxu0
        %v3737 = vadd.f32 %v3189, %v3736
        %3738 = vmatmul.bf16.gmra.mxu0 %v3304
        %v3739 = vpop.f32.mrf.mxu0
        %v3740 = vadd.f32 %v3189, %v3739
        %v3741 = vpop.f32.mrf.mxu0
        %v3742 = vadd.f32 %v3189, %v3741
        %3743 = vmatmul.bf16.gmra.mxu0 %v3306
        %v3744 = vpop.f32.mrf.mxu0
        %v3745 = vadd.f32 %v3189, %v3744
        %v3746 = vpop.f32.mrf.mxu0
        %v3747 = vadd.f32 %v3189, %v3746
        %3748 = vmatmul.bf16.gmra.mxu0 %v3308
        %v3749 = vpop.f32.mrf.mxu0
        %v3750 = vadd.f32 %v3189, %v3749
        %v3751 = vpop.f32.mrf.mxu0
        %v3752 = vadd.f32 %v3189, %v3751
        %3753 = vmatmul.bf16.gmra.mxu0 %v3310
        %v3754 = vpop.f32.mrf.mxu0
        %v3755 = vadd.f32 %v3189, %v3754
        %v3756 = vpop.f32.mrf.mxu0
        %v3757 = vadd.f32 %v3189, %v3756
        %3758 = vmatmul.bf16.gmra.mxu0 %v3312
        %v3759 = vpop.f32.mrf.mxu0
        %v3760 = vadd.f32 %v3189, %v3759
        %v3761 = vpop.f32.mrf.mxu0
        %v3762 = vadd.f32 %v3189, %v3761
        %3763 = vmatmul.bf16.gmra.mxu0 %v3314
        %v3764 = vpop.f32.mrf.mxu0
        %v3765 = vadd.f32 %v3189, %v3764
        %v3766 = vpop.f32.mrf.mxu0
        %v3767 = vadd.f32 %v3189, %v3766
        %3768 = vmatmul.bf16.gmra.mxu0 %v3316
        %v3769 = vpop.f32.mrf.mxu0
        %v3770 = vadd.f32 %v3189, %v3769
        %v3771 = vpop.f32.mrf.mxu0
        %v3772 = vadd.f32 %v3189, %v3771
        %3773 = vmatmul.bf16.gmra.mxu0 %v3318
        %v3774 = vpop.f32.mrf.mxu0
        %v3775 = vadd.f32 %v3189, %v3774
        %v3776 = vpop.f32.mrf.mxu0
        %v3777 = vadd.f32 %v3189, %v3776
        %3778 = vdwg.mxu0
        %3779 = vmatpush.bf16.msra.mxu0 %v3479
        %3780 = vmatpush.bf16.msra.mxu0 %v3477
        %3781 = vmatpush.bf16.msra.mxu0 %v3475
        %3782 = vmatpush.bf16.msra.mxu0 %v3473
        %3783 = vmatpush.bf16.msra.mxu0 %v3471
        %3784 = vmatpush.bf16.msra.mxu0 %v3469
        %3785 = vmatpush.bf16.msra.mxu0 %v3467
        %3786 = vmatpush.bf16.msra.mxu0 %v3465
        %3787 = vmatmul.bf16.gmra.mxu0 %v3289
        %v3788 = vpop.f32.mrf.mxu0
        %v3789 = vadd.f32 %v3700, %v3788
        %v3790 = vpop.f32.mrf.mxu0
        %v3791 = vadd.f32 %v3702, %v3790
        %3792 = vmatmul.bf16.gmra.mxu0 %v3291
        %v3793 = vpop.f32.mrf.mxu0
        %v3794 = vadd.f32 %v3705, %v3793
        %v3795 = vpop.f32.mrf.mxu0
        %v3796 = vadd.f32 %v3707, %v3795
        %3797 = vmatmul.bf16.gmra.mxu0 %v3293
        %v3798 = vpop.f32.mrf.mxu0
        %v3799 = vadd.f32 %v3710, %v3798
        %v3800 = vpop.f32.mrf.mxu0
        %v3801 = vadd.f32 %v3712, %v3800
        %3802 = vmatmul.bf16.gmra.mxu0 %v3295
        %v3803 = vpop.f32.mrf.mxu0
        %v3804 = vadd.f32 %v3715, %v3803
        %v3805 = vpop.f32.mrf.mxu0
        %v3806 = vadd.f32 %v3717, %v3805
        %3807 = vmatmul.bf16.gmra.mxu0 %v3297
        %v3808 = vpop.f32.mrf.mxu0
        %v3809 = vadd.f32 %v3720, %v3808
        %v3810 = vpop.f32.mrf.mxu0
        %v3811 = vadd.f32 %v3722, %v3810
        %3812 = vmatmul.bf16.gmra.mxu0 %v3299
        %v3813 = vpop.f32.mrf.mxu0
        %v3814 = vadd.f32 %v3725, %v3813
        %v3815 = vpop.f32.mrf.mxu0
        %v3816 = vadd.f32 %v3727, %v3815
        %3817 = vmatmul.bf16.gmra.mxu0 %v3301
        %v3818 = vpop.f32.mrf.mxu0
        %v3819 = vadd.f32 %v3730, %v3818
        %v3820 = vpop.f32.mrf.mxu0
        %v3821 = vadd.f32 %v3732, %v3820
        %3822 = vmatmul.bf16.gmra.mxu0 %v3303
        %v3823 = vpop.f32.mrf.mxu0
        %v3824 = vadd.f32 %v3735, %v3823
        %v3825 = vpop.f32.mrf.mxu0
        %v3826 = vadd.f32 %v3737, %v3825
        %3827 = vmatmul.bf16.gmra.mxu0 %v3305
        %v3828 = vpop.f32.mrf.mxu0
        %v3829 = vadd.f32 %v3740, %v3828
        %v3830 = vpop.f32.mrf.mxu0
        %v3831 = vadd.f32 %v3742, %v3830
        %3832 = vmatmul.bf16.gmra.mxu0 %v3307
        %v3833 = vpop.f32.mrf.mxu0
        %v3834 = vadd.f32 %v3745, %v3833
        %v3835 = vpop.f32.mrf.mxu0
        %v3836 = vadd.f32 %v3747, %v3835
        %3837 = vmatmul.bf16.gmra.mxu0 %v3309
        %v3838 = vpop.f32.mrf.mxu0
        %v3839 = vadd.f32 %v3750, %v3838
        %v3840 = vpop.f32.mrf.mxu0
        %v3841 = vadd.f32 %v3752, %v3840
        %3842 = vmatmul.bf16.gmra.mxu0 %v3311
        %v3843 = vpop.f32.mrf.mxu0
        %v3844 = vadd.f32 %v3755, %v3843
        %v3845 = vpop.f32.mrf.mxu0
        %v3846 = vadd.f32 %v3757, %v3845
        %3847 = vmatmul.bf16.gmra.mxu0 %v3313
        %v3848 = vpop.f32.mrf.mxu0
        %v3849 = vadd.f32 %v3760, %v3848
        %v3850 = vpop.f32.mrf.mxu0
        %v3851 = vadd.f32 %v3762, %v3850
        %3852 = vmatmul.bf16.gmra.mxu0 %v3315
        %v3853 = vpop.f32.mrf.mxu0
        %v3854 = vadd.f32 %v3765, %v3853
        %v3855 = vpop.f32.mrf.mxu0
        %v3856 = vadd.f32 %v3767, %v3855
        %3857 = vmatmul.bf16.gmra.mxu0 %v3317
        %v3858 = vpop.f32.mrf.mxu0
        %v3859 = vadd.f32 %v3770, %v3858
        %v3860 = vpop.f32.mrf.mxu0
        %v3861 = vadd.f32 %v3772, %v3860
        %3862 = vmatmul.bf16.gmra.mxu0 %v3319
        %v3863 = vpop.f32.mrf.mxu0
        %v3864 = vadd.f32 %v3775, %v3863
        %v3865 = vpop.f32.mrf.mxu0
        %v3866 = vadd.f32 %v3777, %v3865
        %3867 = vdwg.mxu0
        %v3868 = vmax.f32 %v3611, 0.0
        %v3869 = vmax.f32 %v3789, 0.0
        %v3870 = vmax.f32 %v3613, 0.0
        %v3871 = vmax.f32 %v3791, 0.0
        %v3872 = vmax.f32 %v3616, 0.0
        %v3873 = vmax.f32 %v3794, 0.0
        %v3874 = vmax.f32 %v3618, 0.0
        %v3875 = vmax.f32 %v3796, 0.0
        %v3876 = vmax.f32 %v3621, 0.0
        %v3877 = vmax.f32 %v3799, 0.0
        %v3878 = vmax.f32 %v3623, 0.0
        %v3879 = vmax.f32 %v3801, 0.0
        %v3880 = vmax.f32 %v3626, 0.0
        %v3881 = vmax.f32 %v3804, 0.0
        %v3882 = vmax.f32 %v3628, 0.0
        %v3883 = vmax.f32 %v3806, 0.0
        %v3884 = vmax.f32 %v3631, 0.0
        %v3885 = vmax.f32 %v3809, 0.0
        %v3886 = vmax.f32 %v3633, 0.0
        %v3887 = vmax.f32 %v3811, 0.0
        %v3888 = vmax.f32 %v3636, 0.0
        %v3889 = vmax.f32 %v3814, 0.0
        %v3890 = vmax.f32 %v3638, 0.0
        %v3891 = vmax.f32 %v3816, 0.0
        %v3892 = vmax.f32 %v3641, 0.0
        %v3893 = vmax.f32 %v3819, 0.0
        %v3894 = vmax.f32 %v3643, 0.0
        %v3895 = vmax.f32 %v3821, 0.0
        %v3896 = vmax.f32 %v3646, 0.0
        %v3897 = vmax.f32 %v3824, 0.0
        %v3898 = vmax.f32 %v3648, 0.0
        %v3899 = vmax.f32 %v3826, 0.0
        %v3900 = vmax.f32 %v3651, 0.0
        %v3901 = vmax.f32 %v3829, 0.0
        %v3902 = vmax.f32 %v3653, 0.0
        %v3903 = vmax.f32 %v3831, 0.0
        %v3904 = vmax.f32 %v3656, 0.0
        %v3905 = vmax.f32 %v3834, 0.0
        %v3906 = vmax.f32 %v3658, 0.0
        %v3907 = vmax.f32 %v3836, 0.0
        %v3908 = vmax.f32 %v3661, 0.0
        %v3909 = vmax.f32 %v3839, 0.0
        %v3910 = vmax.f32 %v3663, 0.0
        %v3911 = vmax.f32 %v3841, 0.0
        %v3912 = vmax.f32 %v3666, 0.0
        %v3913 = vmax.f32 %v3844, 0.0
        %v3914 = vmax.f32 %v3668, 0.0
        %v3915 = vmax.f32 %v3846, 0.0
        %v3916 = vmax.f32 %v3671, 0.0
        %v3917 = vmax.f32 %v3849, 0.0
        %v3918 = vmax.f32 %v3673, 0.0
        %v3919 = vmax.f32 %v3851, 0.0
        %v3920 = vmax.f32 %v3676, 0.0
        %v3921 = vmax.f32 %v3854, 0.0
        %v3922 = vmax.f32 %v3678, 0.0
        %v3923 = vmax.f32 %v3856, 0.0
        %v3924 = vmax.f32 %v3681, 0.0
        %v3925 = vmax.f32 %v3859, 0.0
        %v3926 = vmax.f32 %v3683, 0.0
        %v3927 = vmax.f32 %v3861, 0.0
        %v3928 = vmax.f32 %v3686, 0.0
        %v3929 = vmax.f32 %v3864, 0.0
        %v3930 = vmax.f32 %v3688, 0.0
        %v3931 = vmax.f32 %v3866, 0.0
        %v3932 = vpack.c.bf16 %v3869, %v3868
        %v3933 = vpack.c.bf16 %v3871, %v3870
        %v3934 = vpack.c.bf16 %v3873, %v3872
        %v3935 = vpack.c.bf16 %v3875, %v3874
        %v3936 = vpack.c.bf16 %v3877, %v3876
        %v3937 = vpack.c.bf16 %v3879, %v3878
        %v3938 = vpack.c.bf16 %v3881, %v3880
        %v3939 = vpack.c.bf16 %v3883, %v3882
        %v3940 = vpack.c.bf16 %v3885, %v3884
        %v3941 = vpack.c.bf16 %v3887, %v3886
        %v3942 = vpack.c.bf16 %v3889, %v3888
        %v3943 = vpack.c.bf16 %v3891, %v3890
        %v3944 = vpack.c.bf16 %v3893, %v3892
        %v3945 = vpack.c.bf16 %v3895, %v3894
        %v3946 = vpack.c.bf16 %v3897, %v3896
        %v3947 = vpack.c.bf16 %v3899, %v3898
        %v3948 = vpack.c.bf16 %v3901, %v3900
        %v3949 = vpack.c.bf16 %v3903, %v3902
        %v3950 = vpack.c.bf16 %v3905, %v3904
        %v3951 = vpack.c.bf16 %v3907, %v3906
        %v3952 = vpack.c.bf16 %v3909, %v3908
        %v3953 = vpack.c.bf16 %v3911, %v3910
        %v3954 = vpack.c.bf16 %v3913, %v3912
        %v3955 = vpack.c.bf16 %v3915, %v3914
        %v3956 = vpack.c.bf16 %v3917, %v3916
        %v3957 = vpack.c.bf16 %v3919, %v3918
        %v3958 = vpack.c.bf16 %v3921, %v3920
        %v3959 = vpack.c.bf16 %v3923, %v3922
        %v3960 = vpack.c.bf16 %v3925, %v3924
        %v3961 = vpack.c.bf16 %v3927, %v3926
        %v3962 = vpack.c.bf16 %v3929, %v3928
        %v3963 = vpack.c.bf16 %v3931, %v3930
        %3964 = vst [vmem:[#allocation3] sm:$0xff] %v3932
        %3965 = vst [vmem:[#allocation3 + $0x8] sm:$0xff] %v3933
        %3966 = vst [vmem:[#allocation3 + $0x10] sm:$0xff] %v3934
        %3967 = vst [vmem:[#allocation3 + $0x18] sm:$0xff] %v3935
        %3968 = vst [vmem:[#allocation3 + $0x20] sm:$0xff] %v3936
        %3969 = vst [vmem:[#allocation3 + $0x28] sm:$0xff] %v3937
        %3970 = vst [vmem:[#allocation3 + $0x30] sm:$0xff] %v3938
        %3971 = vst [vmem:[#allocation3 + $0x38] sm:$0xff] %v3939
        %3972 = vst [vmem:[#allocation3 + $0x40] sm:$0xff] %v3940
        %3973 = vst [vmem:[#allocation3 + $0x48] sm:$0xff] %v3941
        %3974 = vst [vmem:[#allocation3 + $0x50] sm:$0xff] %v3942
        %3975 = vst [vmem:[#allocation3 + $0x58] sm:$0xff] %v3943
        %3976 = vst [vmem:[#allocation3 + $0x60] sm:$0xff] %v3944
        %3977 = vst [vmem:[#allocation3 + $0x68] sm:$0xff] %v3945
        %3978 = vst [vmem:[#allocation3 + $0x70] sm:$0xff] %v3946
        %3979 = vst [vmem:[#allocation3 + $0x78] sm:$0xff] %v3947
        %3980 = vst [vmem:[#allocation3 + $0x80] sm:$0xff] %v3948
        %3981 = vst [vmem:[#allocation3 + $0x88] sm:$0xff] %v3949
        %3982 = vst [vmem:[#allocation3 + $0x90] sm:$0xff] %v3950
        %3983 = vst [vmem:[#allocation3 + $0x98] sm:$0xff] %v3951
        %3984 = vst [vmem:[#allocation3 + $0xa0] sm:$0xff] %v3952
        %3985 = vst [vmem:[#allocation3 + $0xa8] sm:$0xff] %v3953
        %3986 = vst [vmem:[#allocation3 + $0xb0] sm:$0xff] %v3954
        %3987 = vst [vmem:[#allocation3 + $0xb8] sm:$0xff] %v3955
        %3988 = vst [vmem:[#allocation3 + $0xc0] sm:$0xff] %v3956
        %3989 = vst [vmem:[#allocation3 + $0xc8] sm:$0xff] %v3957
        %3990 = vst [vmem:[#allocation3 + $0xd0] sm:$0xff] %v3958
        %3991 = vst [vmem:[#allocation3 + $0xd8] sm:$0xff] %v3959
        %3992 = vst [vmem:[#allocation3 + $0xe0] sm:$0xff] %v3960
        %3993 = vst [vmem:[#allocation3 + $0xe8] sm:$0xff] %v3961
        %3994 = vst [vmem:[#allocation3 + $0xf0] sm:$0xff] %v3962
        %3995 = vst [vmem:[#allocation3 + $0xf8] sm:$0xff] %v3963
        %v3996 = vld [vmem:[#allocation3] sm:$0xff]
        %v3997 = vld [vmem:[#allocation3 + $0x8] sm:$0xff]
        %v3998 = vld [vmem:[#allocation3 + $0x10] sm:$0xff]
        %v3999 = vld [vmem:[#allocation3 + $0x18] sm:$0xff]
        %v4000 = vld [vmem:[#allocation3 + $0x20] sm:$0xff]
        %v4001 = vld [vmem:[#allocation3 + $0x28] sm:$0xff]
        %v4002 = vld [vmem:[#allocation3 + $0x30] sm:$0xff]
        %v4003 = vld [vmem:[#allocation3 + $0x38] sm:$0xff]
        %v4004 = vld [vmem:[#allocation3 + $0x40] sm:$0xff]
        %v4005 = vld [vmem:[#allocation3 + $0x48] sm:$0xff]
        %v4006 = vld [vmem:[#allocation3 + $0x50] sm:$0xff]
        %v4007 = vld [vmem:[#allocation3 + $0x58] sm:$0xff]
        %v4008 = vld [vmem:[#allocation3 + $0x60] sm:$0xff]
        %v4009 = vld [vmem:[#allocation3 + $0x68] sm:$0xff]
        %v4010 = vld [vmem:[#allocation3 + $0x70] sm:$0xff]
        %v4011 = vld [vmem:[#allocation3 + $0x78] sm:$0xff]
        %v4012 = vld [vmem:[#allocation3 + $0x80] sm:$0xff]
        %v4013 = vld [vmem:[#allocation3 + $0x88] sm:$0xff]
        %v4014 = vld [vmem:[#allocation3 + $0x90] sm:$0xff]
        %v4015 = vld [vmem:[#allocation3 + $0x98] sm:$0xff]
        %v4016 = vld [vmem:[#allocation3 + $0xa0] sm:$0xff]
        %v4017 = vld [vmem:[#allocation3 + $0xa8] sm:$0xff]
        %v4018 = vld [vmem:[#allocation3 + $0xb0] sm:$0xff]
        %v4019 = vld [vmem:[#allocation3 + $0xb8] sm:$0xff]
        %v4020 = vld [vmem:[#allocation3 + $0xc0] sm:$0xff]
        %v4021 = vld [vmem:[#allocation3 + $0xc8] sm:$0xff]
        %v4022 = vld [vmem:[#allocation3 + $0xd0] sm:$0xff]
        %v4023 = vld [vmem:[#allocation3 + $0xd8] sm:$0xff]
        %v4024 = vld [vmem:[#allocation3 + $0xe0] sm:$0xff]
        %v4025 = vld [vmem:[#allocation3 + $0xe8] sm:$0xff]
        %v4026 = vld [vmem:[#allocation3 + $0xf0] sm:$0xff]
        %v4027 = vld [vmem:[#allocation3 + $0xf8] sm:$0xff]
        %v4028 = vld [vmem:[#allocation12] sm:$0xf]
        %v4029 = vld [vmem:[#allocation12 + $0x4] sm:$0xf]
        %v4030 = vld [vmem:[#allocation12 + $0x8] sm:$0xf]
        %v4031 = vld [vmem:[#allocation12 + $0xc] sm:$0xf]
        %v4032 = vld [vmem:[#allocation12 + $0x10] sm:$0xf]
        %v4033 = vld [vmem:[#allocation12 + $0x14] sm:$0xf]
        %v4034 = vld [vmem:[#allocation12 + $0x18] sm:$0xf]
        %v4035 = vld [vmem:[#allocation12 + $0x1c] sm:$0xf]
        %v4036 = vld [vmem:[#allocation12 + $0x20] sm:$0xf]
        %v4037 = vld [vmem:[#allocation12 + $0x24] sm:$0xf]
        %v4038 = vld [vmem:[#allocation12 + $0x28] sm:$0xf]
        %v4039 = vld [vmem:[#allocation12 + $0x2c] sm:$0xf]
        %v4040 = vld [vmem:[#allocation12 + $0x30] sm:$0xf]
        %v4041 = vld [vmem:[#allocation12 + $0x34] sm:$0xf]
        %v4042 = vld [vmem:[#allocation12 + $0x38] sm:$0xf]
        %v4043 = vld [vmem:[#allocation12 + $0x3c] sm:$0xf]
        %v4044 = vld [vmem:[#allocation12 + $0x40] sm:$0xf]
        %v4045 = vld [vmem:[#allocation12 + $0x44] sm:$0xf]
        %v4046 = vld [vmem:[#allocation12 + $0x48] sm:$0xf]
        %v4047 = vld [vmem:[#allocation12 + $0x4c] sm:$0xf]
        %v4048 = vld [vmem:[#allocation12 + $0x50] sm:$0xf]
        %v4049 = vld [vmem:[#allocation12 + $0x54] sm:$0xf]
        %v4050 = vld [vmem:[#allocation12 + $0x58] sm:$0xf]
        %v4051 = vld [vmem:[#allocation12 + $0x5c] sm:$0xf]
        %v4052 = vld [vmem:[#allocation12 + $0x60] sm:$0xf]
        %v4053 = vld [vmem:[#allocation12 + $0x64] sm:$0xf]
        %v4054 = vld [vmem:[#allocation12 + $0x68] sm:$0xf]
        %v4055 = vld [vmem:[#allocation12 + $0x6c] sm:$0xf]
        %v4056 = vld [vmem:[#allocation12 + $0x70] sm:$0xf]
        %v4057 = vld [vmem:[#allocation12 + $0x74] sm:$0xf]
        %v4058 = vld [vmem:[#allocation12 + $0x78] sm:$0xf]
        %v4059 = vld [vmem:[#allocation12 + $0x7c] sm:$0xf]
        %v4060 = vld [vmem:[%s6] sm:$0x1]
        %v4062 = vperm.slane %v4060, 0
        %v4096 = vunpack.c.l.b16 %v3996
        %v4097 = vunpack.c.h.b16 %v3996
        %v4098 = vunpack.c.l.b16 %v3997
        %v4099 = vunpack.c.h.b16 %v3997
        %v4100 = vunpack.c.l.b16 %v3998
        %v4101 = vunpack.c.h.b16 %v3998
        %v4102 = vunpack.c.l.b16 %v3999
        %v4103 = vunpack.c.h.b16 %v3999
        %v4104 = vunpack.c.l.b16 %v4000
        %v4105 = vunpack.c.h.b16 %v4000
        %v4106 = vunpack.c.l.b16 %v4001
        %v4107 = vunpack.c.h.b16 %v4001
        %v4108 = vunpack.c.l.b16 %v4002
        %v4109 = vunpack.c.h.b16 %v4002
        %v4110 = vunpack.c.l.b16 %v4003
        %v4111 = vunpack.c.h.b16 %v4003
        %v4112 = vunpack.c.l.b16 %v4004
        %v4113 = vunpack.c.h.b16 %v4004
        %v4114 = vunpack.c.l.b16 %v4005
        %v4115 = vunpack.c.h.b16 %v4005
        %v4116 = vunpack.c.l.b16 %v4006
        %v4117 = vunpack.c.h.b16 %v4006
        %v4118 = vunpack.c.l.b16 %v4007
        %v4119 = vunpack.c.h.b16 %v4007
        %v4120 = vunpack.c.l.b16 %v4008
        %v4121 = vunpack.c.h.b16 %v4008
        %v4122 = vunpack.c.l.b16 %v4009
        %v4123 = vunpack.c.h.b16 %v4009
        %v4124 = vunpack.c.l.b16 %v4010
        %v4125 = vunpack.c.h.b16 %v4010
        %v4126 = vunpack.c.l.b16 %v4011
        %v4127 = vunpack.c.h.b16 %v4011
        %v4128 = vunpack.c.l.b16 %v4012
        %v4129 = vunpack.c.h.b16 %v4012
        %v4130 = vunpack.c.l.b16 %v4013
        %v4131 = vunpack.c.h.b16 %v4013
        %v4132 = vunpack.c.l.b16 %v4014
        %v4133 = vunpack.c.h.b16 %v4014
        %v4134 = vunpack.c.l.b16 %v4015
        %v4135 = vunpack.c.h.b16 %v4015
        %v4136 = vunpack.c.l.b16 %v4016
        %v4137 = vunpack.c.h.b16 %v4016
        %v4138 = vunpack.c.l.b16 %v4017
        %v4139 = vunpack.c.h.b16 %v4017
        %v4140 = vunpack.c.l.b16 %v4018
        %v4141 = vunpack.c.h.b16 %v4018
        %v4142 = vunpack.c.l.b16 %v4019
        %v4143 = vunpack.c.h.b16 %v4019
        %v4144 = vunpack.c.l.b16 %v4020
        %v4145 = vunpack.c.h.b16 %v4020
        %v4146 = vunpack.c.l.b16 %v4021
        %v4147 = vunpack.c.h.b16 %v4021
        %v4148 = vunpack.c.l.b16 %v4022
        %v4149 = vunpack.c.h.b16 %v4022
        %v4150 = vunpack.c.l.b16 %v4023
        %v4151 = vunpack.c.h.b16 %v4023
        %v4152 = vunpack.c.l.b16 %v4024
        %v4153 = vunpack.c.h.b16 %v4024
        %v4154 = vunpack.c.l.b16 %v4025
        %v4155 = vunpack.c.h.b16 %v4025
        %v4156 = vunpack.c.l.b16 %v4026
        %v4157 = vunpack.c.h.b16 %v4026
        %v4158 = vunpack.c.l.b16 %v4027
        %v4159 = vunpack.c.h.b16 %v4027
        %v4160 = vpack.c.b16 %v4098, %v4096
        %v4161 = vpack.c.b16 %v4099, %v4097
        %v4162 = vpack.c.b16 %v4102, %v4100
        %v4163 = vpack.c.b16 %v4103, %v4101
        %v4164 = vpack.c.b16 %v4106, %v4104
        %v4165 = vpack.c.b16 %v4107, %v4105
        %v4166 = vpack.c.b16 %v4110, %v4108
        %v4167 = vpack.c.b16 %v4111, %v4109
        %v4168 = vpack.c.b16 %v4114, %v4112
        %v4169 = vpack.c.b16 %v4115, %v4113
        %v4170 = vpack.c.b16 %v4118, %v4116
        %v4171 = vpack.c.b16 %v4119, %v4117
        %v4172 = vpack.c.b16 %v4122, %v4120
        %v4173 = vpack.c.b16 %v4123, %v4121
        %v4174 = vpack.c.b16 %v4126, %v4124
        %v4175 = vpack.c.b16 %v4127, %v4125
        %v4176 = vpack.c.b16 %v4130, %v4128
        %v4177 = vpack.c.b16 %v4131, %v4129
        %v4178 = vpack.c.b16 %v4134, %v4132
        %v4179 = vpack.c.b16 %v4135, %v4133
        %v4180 = vpack.c.b16 %v4138, %v4136
        %v4181 = vpack.c.b16 %v4139, %v4137
        %v4182 = vpack.c.b16 %v4142, %v4140
        %v4183 = vpack.c.b16 %v4143, %v4141
        %v4184 = vpack.c.b16 %v4146, %v4144
        %v4185 = vpack.c.b16 %v4147, %v4145
        %v4186 = vpack.c.b16 %v4150, %v4148
        %v4187 = vpack.c.b16 %v4151, %v4149
        %v4188 = vpack.c.b16 %v4154, %v4152
        %v4189 = vpack.c.b16 %v4155, %v4153
        %v4190 = vpack.c.b16 %v4158, %v4156
        %v4191 = vpack.c.b16 %v4159, %v4157
        %v4256 = vunpack.c.l.b16 %v4028
        %v4257 = vunpack.c.l.b16 %v4029
        %v4258 = vunpack.c.l.b16 %v4030
        %v4259 = vunpack.c.l.b16 %v4031
        %v4260 = vunpack.c.l.b16 %v4032
        %v4261 = vunpack.c.l.b16 %v4033
        %v4262 = vunpack.c.l.b16 %v4034
        %v4263 = vunpack.c.l.b16 %v4035
        %v4264 = vunpack.c.l.b16 %v4036
        %v4265 = vunpack.c.l.b16 %v4037
        %v4266 = vunpack.c.l.b16 %v4038
        %v4267 = vunpack.c.l.b16 %v4039
        %v4268 = vunpack.c.l.b16 %v4040
        %v4269 = vunpack.c.l.b16 %v4041
        %v4270 = vunpack.c.l.b16 %v4042
        %v4271 = vunpack.c.l.b16 %v4043
        %v4272 = vunpack.c.l.b16 %v4044
        %v4273 = vunpack.c.l.b16 %v4045
        %v4274 = vunpack.c.l.b16 %v4046
        %v4275 = vunpack.c.l.b16 %v4047
        %v4276 = vunpack.c.l.b16 %v4048
        %v4277 = vunpack.c.l.b16 %v4049
        %v4278 = vunpack.c.l.b16 %v4050
        %v4279 = vunpack.c.l.b16 %v4051
        %v4280 = vunpack.c.l.b16 %v4052
        %v4281 = vunpack.c.l.b16 %v4053
        %v4282 = vunpack.c.l.b16 %v4054
        %v4283 = vunpack.c.l.b16 %v4055
        %v4284 = vunpack.c.l.b16 %v4056
        %v4285 = vunpack.c.l.b16 %v4057
        %v4286 = vunpack.c.l.b16 %v4058
        %v4287 = vunpack.c.l.b16 %v4059
        %v4288 = vpack.c.b16 %v4257, %v4256
        %v4289 = vpack.c.b16 %v4259, %v4258
        %v4290 = vpack.c.b16 %v4261, %v4260
        %v4291 = vpack.c.b16 %v4263, %v4262
        %v4292 = vpack.c.b16 %v4265, %v4264
        %v4293 = vpack.c.b16 %v4267, %v4266
        %v4294 = vpack.c.b16 %v4269, %v4268
        %v4295 = vpack.c.b16 %v4271, %v4270
        %v4296 = vpack.c.b16 %v4273, %v4272
        %v4297 = vpack.c.b16 %v4275, %v4274
        %v4298 = vpack.c.b16 %v4277, %v4276
        %v4299 = vpack.c.b16 %v4279, %v4278
        %v4300 = vpack.c.b16 %v4281, %v4280
        %v4301 = vpack.c.b16 %v4283, %v4282
        %v4302 = vpack.c.b16 %v4285, %v4284
        %v4303 = vpack.c.b16 %v4287, %v4286
        %4320 = vmatpush.bf16.msra.mxu0 %v4295
        %4321 = vmatpush.bf16.msra.mxu0 %v4294
        %4322 = vmatpush.bf16.msra.mxu0 %v4293
        %4323 = vmatpush.bf16.msra.mxu0 %v4292
        %4324 = vmatpush.bf16.msra.mxu0 %v4291
        %4325 = vmatpush.bf16.msra.mxu0 %v4290
        %4326 = vmatpush.bf16.msra.mxu0 %v4289
        %4327 = vmatpush.bf16.msra.mxu0 %v4288
        %4328 = vmatmul.bf16.gmra.mxu0 %v4160
        %v4329 = vpop.f32.mrf.mxu0
        %v4330 = vadd.f32 %v4062, %v4329
        %v4331 = vpop.f32.mrf.mxu0
        %v4332 = vadd.f32 %v4062, %v4331
        %4333 = vmatmul.bf16.gmra.mxu0 %v4162
        %v4334 = vpop.f32.mrf.mxu0
        %v4335 = vadd.f32 %v4062, %v4334
        %v4336 = vpop.f32.mrf.mxu0
        %v4337 = vadd.f32 %v4062, %v4336
        %4338 = vmatmul.bf16.gmra.mxu0 %v4164
        %v4339 = vpop.f32.mrf.mxu0
        %v4340 = vadd.f32 %v4062, %v4339
        %v4341 = vpop.f32.mrf.mxu0
        %v4342 = vadd.f32 %v4062, %v4341
        %4343 = vmatmul.bf16.gmra.mxu0 %v4166
        %v4344 = vpop.f32.mrf.mxu0
        %v4345 = vadd.f32 %v4062, %v4344
        %v4346 = vpop.f32.mrf.mxu0
        %v4347 = vadd.f32 %v4062, %v4346
        %4348 = vmatmul.bf16.gmra.mxu0 %v4168
        %v4349 = vpop.f32.mrf.mxu0
        %v4350 = vadd.f32 %v4062, %v4349
        %v4351 = vpop.f32.mrf.mxu0
        %v4352 = vadd.f32 %v4062, %v4351
        %4353 = vmatmul.bf16.gmra.mxu0 %v4170
        %v4354 = vpop.f32.mrf.mxu0
        %v4355 = vadd.f32 %v4062, %v4354
        %v4356 = vpop.f32.mrf.mxu0
        %v4357 = vadd.f32 %v4062, %v4356
        %4358 = vmatmul.bf16.gmra.mxu0 %v4172
        %v4359 = vpop.f32.mrf.mxu0
        %v4360 = vadd.f32 %v4062, %v4359
        %v4361 = vpop.f32.mrf.mxu0
        %v4362 = vadd.f32 %v4062, %v4361
        %4363 = vmatmul.bf16.gmra.mxu0 %v4174
        %v4364 = vpop.f32.mrf.mxu0
        %v4365 = vadd.f32 %v4062, %v4364
        %v4366 = vpop.f32.mrf.mxu0
        %v4367 = vadd.f32 %v4062, %v4366
        %4368 = vmatmul.bf16.gmra.mxu0 %v4176
        %v4369 = vpop.f32.mrf.mxu0
        %v4370 = vadd.f32 %v4062, %v4369
        %v4371 = vpop.f32.mrf.mxu0
        %v4372 = vadd.f32 %v4062, %v4371
        %4373 = vmatmul.bf16.gmra.mxu0 %v4178
        %v4374 = vpop.f32.mrf.mxu0
        %v4375 = vadd.f32 %v4062, %v4374
        %v4376 = vpop.f32.mrf.mxu0
        %v4377 = vadd.f32 %v4062, %v4376
        %4378 = vmatmul.bf16.gmra.mxu0 %v4180
        %v4379 = vpop.f32.mrf.mxu0
        %v4380 = vadd.f32 %v4062, %v4379
        %v4381 = vpop.f32.mrf.mxu0
        %v4382 = vadd.f32 %v4062, %v4381
        %4383 = vmatmul.bf16.gmra.mxu0 %v4182
        %v4384 = vpop.f32.mrf.mxu0
        %v4385 = vadd.f32 %v4062, %v4384
        %v4386 = vpop.f32.mrf.mxu0
        %v4387 = vadd.f32 %v4062, %v4386
        %4388 = vmatmul.bf16.gmra.mxu0 %v4184
        %v4389 = vpop.f32.mrf.mxu0
        %v4390 = vadd.f32 %v4062, %v4389
        %v4391 = vpop.f32.mrf.mxu0
        %v4392 = vadd.f32 %v4062, %v4391
        %4393 = vmatmul.bf16.gmra.mxu0 %v4186
        %v4394 = vpop.f32.mrf.mxu0
        %v4395 = vadd.f32 %v4062, %v4394
        %v4396 = vpop.f32.mrf.mxu0
        %v4397 = vadd.f32 %v4062, %v4396
        %4398 = vmatmul.bf16.gmra.mxu0 %v4188
        %v4399 = vpop.f32.mrf.mxu0
        %v4400 = vadd.f32 %v4062, %v4399
        %v4401 = vpop.f32.mrf.mxu0
        %v4402 = vadd.f32 %v4062, %v4401
        %4403 = vmatmul.bf16.gmra.mxu0 %v4190
        %v4404 = vpop.f32.mrf.mxu0
        %v4405 = vadd.f32 %v4062, %v4404
        %v4406 = vpop.f32.mrf.mxu0
        %v4407 = vadd.f32 %v4062, %v4406
        %4408 = vdwg.mxu0
        %4409 = vmatpush.bf16.msra.mxu0 %v4303
        %4410 = vmatpush.bf16.msra.mxu0 %v4302
        %4411 = vmatpush.bf16.msra.mxu0 %v4301
        %4412 = vmatpush.bf16.msra.mxu0 %v4300
        %4413 = vmatpush.bf16.msra.mxu0 %v4299
        %4414 = vmatpush.bf16.msra.mxu0 %v4298
        %4415 = vmatpush.bf16.msra.mxu0 %v4297
        %4416 = vmatpush.bf16.msra.mxu0 %v4296
        %4417 = vmatmul.bf16.gmra.mxu0 %v4161
        %v4418 = vpop.f32.mrf.mxu0
        %v4419 = vadd.f32 %v4330, %v4418
        %v4420 = vpop.f32.mrf.mxu0
        %v4421 = vadd.f32 %v4332, %v4420
        %4422 = vmatmul.bf16.gmra.mxu0 %v4163
        %v4423 = vpop.f32.mrf.mxu0
        %v4424 = vadd.f32 %v4335, %v4423
        %v4425 = vpop.f32.mrf.mxu0
        %v4426 = vadd.f32 %v4337, %v4425
        %4427 = vmatmul.bf16.gmra.mxu0 %v4165
        %v4428 = vpop.f32.mrf.mxu0
        %v4429 = vadd.f32 %v4340, %v4428
        %v4430 = vpop.f32.mrf.mxu0
        %v4431 = vadd.f32 %v4342, %v4430
        %4432 = vmatmul.bf16.gmra.mxu0 %v4167
        %v4433 = vpop.f32.mrf.mxu0
        %v4434 = vadd.f32 %v4345, %v4433
        %v4435 = vpop.f32.mrf.mxu0
        %v4436 = vadd.f32 %v4347, %v4435
        %4437 = vmatmul.bf16.gmra.mxu0 %v4169
        %v4438 = vpop.f32.mrf.mxu0
        %v4439 = vadd.f32 %v4350, %v4438
        %v4440 = vpop.f32.mrf.mxu0
        %v4441 = vadd.f32 %v4352, %v4440
        %4442 = vmatmul.bf16.gmra.mxu0 %v4171
        %v4443 = vpop.f32.mrf.mxu0
        %v4444 = vadd.f32 %v4355, %v4443
        %v4445 = vpop.f32.mrf.mxu0
        %v4446 = vadd.f32 %v4357, %v4445
        %4447 = vmatmul.bf16.gmra.mxu0 %v4173
        %v4448 = vpop.f32.mrf.mxu0
        %v4449 = vadd.f32 %v4360, %v4448
        %v4450 = vpop.f32.mrf.mxu0
        %v4451 = vadd.f32 %v4362, %v4450
        %4452 = vmatmul.bf16.gmra.mxu0 %v4175
        %v4453 = vpop.f32.mrf.mxu0
        %v4454 = vadd.f32 %v4365, %v4453
        %v4455 = vpop.f32.mrf.mxu0
        %v4456 = vadd.f32 %v4367, %v4455
        %4457 = vmatmul.bf16.gmra.mxu0 %v4177
        %v4458 = vpop.f32.mrf.mxu0
        %v4459 = vadd.f32 %v4370, %v4458
        %v4460 = vpop.f32.mrf.mxu0
        %v4461 = vadd.f32 %v4372, %v4460
        %4462 = vmatmul.bf16.gmra.mxu0 %v4179
        %v4463 = vpop.f32.mrf.mxu0
        %v4464 = vadd.f32 %v4375, %v4463
        %v4465 = vpop.f32.mrf.mxu0
        %v4466 = vadd.f32 %v4377, %v4465
        %4467 = vmatmul.bf16.gmra.mxu0 %v4181
        %v4468 = vpop.f32.mrf.mxu0
        %v4469 = vadd.f32 %v4380, %v4468
        %v4470 = vpop.f32.mrf.mxu0
        %v4471 = vadd.f32 %v4382, %v4470
        %4472 = vmatmul.bf16.gmra.mxu0 %v4183
        %v4473 = vpop.f32.mrf.mxu0
        %v4474 = vadd.f32 %v4385, %v4473
        %v4475 = vpop.f32.mrf.mxu0
        %v4476 = vadd.f32 %v4387, %v4475
        %4477 = vmatmul.bf16.gmra.mxu0 %v4185
        %v4478 = vpop.f32.mrf.mxu0
        %v4479 = vadd.f32 %v4390, %v4478
        %v4480 = vpop.f32.mrf.mxu0
        %v4481 = vadd.f32 %v4392, %v4480
        %4482 = vmatmul.bf16.gmra.mxu0 %v4187
        %v4483 = vpop.f32.mrf.mxu0
        %v4484 = vadd.f32 %v4395, %v4483
        %v4485 = vpop.f32.mrf.mxu0
        %v4486 = vadd.f32 %v4397, %v4485
        %4487 = vmatmul.bf16.gmra.mxu0 %v4189
        %v4488 = vpop.f32.mrf.mxu0
        %v4489 = vadd.f32 %v4400, %v4488
        %v4490 = vpop.f32.mrf.mxu0
        %v4491 = vadd.f32 %v4402, %v4490
        %4492 = vmatmul.bf16.gmra.mxu0 %v4191
        %v4493 = vpop.f32.mrf.mxu0
        %v4494 = vadd.f32 %v4405, %v4493
        %v4495 = vpop.f32.mrf.mxu0
        %v4496 = vadd.f32 %v4407, %v4495
        %4497 = vdwg.mxu0
        %4498 = vst [vmem:[%s363] sm:$0xff] %v4419
        %4499 = vst [vmem:[%s363 + $0x8] sm:$0xff] %v4421
        %4500 = vst [vmem:[%s363 + $0x10] sm:$0xff] %v4424
        %4501 = vst [vmem:[%s363 + $0x18] sm:$0xff] %v4426
        %4502 = vst [vmem:[%s363 + $0x20] sm:$0xff] %v4429
        %4503 = vst [vmem:[%s363 + $0x28] sm:$0xff] %v4431
        %4504 = vst [vmem:[%s363 + $0x30] sm:$0xff] %v4434
        %4505 = vst [vmem:[%s363 + $0x38] sm:$0xff] %v4436
        %4506 = vst [vmem:[%s363 + $0x40] sm:$0xff] %v4439
        %4507 = vst [vmem:[%s363 + $0x48] sm:$0xff] %v4441
        %4508 = vst [vmem:[%s363 + $0x50] sm:$0xff] %v4444
        %4509 = vst [vmem:[%s363 + $0x58] sm:$0xff] %v4446
        %4510 = vst [vmem:[%s363 + $0x60] sm:$0xff] %v4449
        %4511 = vst [vmem:[%s363 + $0x68] sm:$0xff] %v4451
        %4512 = vst [vmem:[%s363 + $0x70] sm:$0xff] %v4454
        %4513 = vst [vmem:[%s363 + $0x78] sm:$0xff] %v4456
        %4514 = vst [vmem:[%s363 + $0x80] sm:$0xff] %v4459
        %4515 = vst [vmem:[%s363 + $0x88] sm:$0xff] %v4461
        %4516 = vst [vmem:[%s363 + $0x90] sm:$0xff] %v4464
        %4517 = vst [vmem:[%s363 + $0x98] sm:$0xff] %v4466
        %4518 = vst [vmem:[%s363 + $0xa0] sm:$0xff] %v4469
        %4519 = vst [vmem:[%s363 + $0xa8] sm:$0xff] %v4471
        %4520 = vst [vmem:[%s363 + $0xb0] sm:$0xff] %v4474
        %4521 = vst [vmem:[%s363 + $0xb8] sm:$0xff] %v4476
        %4522 = vst [vmem:[%s363 + $0xc0] sm:$0xff] %v4479
        %4523 = vst [vmem:[%s363 + $0xc8] sm:$0xff] %v4481
        %4524 = vst [vmem:[%s363 + $0xd0] sm:$0xff] %v4484
        %4525 = vst [vmem:[%s363 + $0xd8] sm:$0xff] %v4486
        %4526 = vst [vmem:[%s363 + $0xe0] sm:$0xff] %v4489
        %4527 = vst [vmem:[%s363 + $0xe8] sm:$0xff] %v4491
        %4528 = vst [vmem:[%s363 + $0xf0] sm:$0xff] %v4494
        %4529 = vst [vmem:[%s363 + $0xf8] sm:$0xff] %v4496
        %s4530 = sand.u32 %s186, 1
        %s4531 = scalar_lea.sflag [#allocation6], %s4530
        %s4532 = sand.u32 %s186, 1
        %s4533 = smul.addr %s4532, 256
        %s4534 = scalar_lea.vmem [#allocation13], %s4533
        // Predicated region
        $region69: #{tpu_custom_call.1} parent=47 // pred_check
          %p4535 = pneg %p196
        $region70: #{tpu_custom_call.1} parent=47 // pred_check_branch
          %4537 = sbr.rel (%p4535) target = $region72
        $region71: #{tpu_custom_call.1} parent=47 // pred_region
          %s4538 = smul.u32 32, %s26
          %4540 = vsyncadd %s4531, 0
          %s4541 = smul.addr %s4538, 8
          %s4542 = scalar_lea.hbm %s7, %s4541
          %s4543 = sshll.u32 %s4534, 4
          %s4544 = int_to_ptr.vmem [resolvable:$true] %s4543
          %s4545 = sshll.u32 %s4542, 4
          %s4546 = int_to_ptr.hbm [resolvable:$true] %s4545
          %4551 = dma.vmem_to_hbm [thread:$0]  %s4544, 4096, %s4546, %s4531, 128, 128, 8
        $region72: #{tpu_custom_call.1} parent=47 // pred_fallthru
          _
      $region48: #{tpu_custom_call.1} parent=5 // pred_fallthru
        _
      %p4552 = scmp.le.s32.totalorder 2, %s21
      // Predicated region
      $region73: #{tpu_custom_call.1} parent=5 // pred_check
        %p4553 = pneg %p4552
      $region74: #{tpu_custom_call.1} parent=5 // pred_check_branch
        %4555 = sbr.rel (%p4553) target = $region76
      $region75: #{tpu_custom_call.1} parent=5 // pred_region
        %s4556 = ssub.s32 %s21, 2
        // Predicated region
        $region77: #{tpu_custom_call.1} parent=75 // pred_check
          %p4557 = pneg %p202
        $region78: #{tpu_custom_call.1} parent=75 // pred_check_branch
          %4559 = sbr.rel (%p4557) target = $region80
        $region79: #{tpu_custom_call.1} parent=75 // pred_region
          %s4560 = sand.u32 %s187, 1
          %s4561 = scalar_lea.sflag [#allocation6], %s4560
          %s4562 = sand.u32 %s187, 1
          %s4563 = smul.addr %s4562, 256
          %s4564 = scalar_lea.vmem [#allocation13], %s4563
          %4566 = dma.done %s4561, 4096
        $region80: #{tpu_custom_call.1} parent=75 // pred_fallthru
          _
      $region76: #{tpu_custom_call.1} parent=5 // pred_fallthru
        _
    $region6: #{tpu_custom_call.1} parent=1 // loop_footer
      %s25 = sadd.s32 1, %s21
    $region7: #{tpu_custom_call.1} parent=1 // loop_footer_branch
      %20 = sbr.rel target = $region3
    $region8: #{tpu_custom_call.1} parent=1 // loop_exit
      _
    %4567 = vsyncpa [#allocation5], 1
    %s4568 = scalar_lea.sflag [#allocation5], 1
    %4569 = vsyncpa %s4568, 1
    %4570 = vsyncpa [#allocation8], 1
    %4571 = vsyncpa [#allocation11], 1
    %4572 = vsyncpa [#allocation6], 1
    %s4573 = scalar_lea.sflag [#allocation6], 1
    %4574 = vsyncpa %s4573, 1

</llo_original>
